<compile_context>
chip_gen: v7x
topology: tpu7x:2x2x1
jax: 0.10.0
libtpu: 0.0.40
codegen_flags: <defaults>
</compile_context>

<pallas_src>
from functools import partial

import jax
import jax.numpy as jnp
from jax.experimental import pallas as pl
from jax.experimental.pallas import tpu as pltpu

HIDDEN = 768   # BERT hidden size (fc1 input)
FC1 = 512      # fc1 output size
NCLASS = 2     # fc2 output size
VPAD = 128     # vocab padded to a lane-dense 128
CPAD = 128     # fc2 output padded to a lane-dense 128


def _round_up(x, m):
    return (x + m - 1) // m * m


def bert_arch_kernel(ids_ref, mask_ref, tbl_ref, wp_ref, bp_ref,
                     w1_ref, b1_ref, w2_ref, b2_ref, out_ref,
                     cnt_ref, msk_ref, *, onehot_dtype):
    v = tbl_ref.shape[0]
    k = pl.program_id(1)

    @pl.when(k == 0)
    def _init():
        cnt_ref[...] = jnp.zeros_like(cnt_ref)
        msk_ref[...] = jnp.zeros_like(msk_ref)

    ids = ids_ref[...]                                        # [bt, st] int32
    mask = mask_ref[...]                                      # [bt, st] f32 (0/1)

    # ---- mask-weighted token-count accumulation (no matmul per step) -------
    # Broadcast iota: no materialised [bt, st, V] int32 temporary.
    vocab_iota = jax.lax.broadcasted_iota(jnp.int32, (1, 1, v), 2)
    oh = (ids[:, :, None] == vocab_iota).astype(onehot_dtype)
    oh = oh * mask[:, :, None].astype(onehot_dtype)           # [bt, st, V]
    # per-tile counts <= st <= 256 are exact integers even in bf16
    cnt_ref[...] += jnp.sum(oh, axis=1).astype(jnp.float32)   # [bt, V]
    msk_ref[...] += jnp.sum(mask, axis=1, keepdims=True)      # [bt, 1]

    @pl.when(k == pl.num_programs(1) - 1)
    def _finalize():
        # Single deferred embedding matmul: counts @ table (MXU, f32 acc).
        emb_sum = jnp.dot(cnt_ref[...].astype(tbl_ref.dtype), tbl_ref[...],
                          preferred_element_type=jnp.float32)     # [bt, H]

        # masked mean pooling (guard fully-padded rows against 0/0).
        denom = jnp.maximum(msk_ref[...], 1.0)                    # [bt, 1]
        pooled = emb_sum / denom                                  # [bt, H] f32

        # surrogate BERT pooler: tanh(pooled @ Wp + bp)
        cls_hs = jnp.tanh(
            jnp.dot(pooled.astype(wp_ref.dtype), wp_ref[...],
                    preferred_element_type=jnp.float32) + bp_ref[...])

        # fc1 (768 -> 512) + ReLU
        h = jnp.dot(cls_hs.astype(w1_ref.dtype), w1_ref[...],
                    preferred_element_type=jnp.float32) + b1_ref[...]
        h = jnp.maximum(h, 0.0)

        # dropout(p=0.1): identity in eval/inference mode.

        # fc2 (512 -> 2, lane-padded to 128)
        logits = jnp.dot(h.astype(w2_ref.dtype), w2_ref[...],
                         preferred_element_type=jnp.float32) + b2_ref[...]

        # LogSoftmax over the real classes; padded lanes masked out.
        lane = jax.lax.broadcasted_iota(jnp.int32, logits.shape, 1)
        logits = jnp.where(lane < NCLASS, logits, -1e30)
        m = jnp.max(logits, axis=1, keepdims=True)
        z = logits - m
        lse = jnp.log(jnp.sum(jnp.exp(z), axis=1, keepdims=True))
        out_ref[...] = (z - lse).astype(out_ref.dtype)


def init_params(key, vocab_size=30):
    ks = jax.random.split(key, 6)
    scale = 0.02
    table = scale * jax.random.normal(ks[0], (vocab_size, HIDDEN), jnp.float32)
    table_p = jnp.zeros((VPAD, HIDDEN), jnp.float32).at[:vocab_size].set(table)
    wp = scale * jax.random.normal(ks[1], (HIDDEN, HIDDEN), jnp.float32)
    w1 = scale * jax.random.normal(ks[2], (HIDDEN, FC1), jnp.float32)
    b1 = 0.01 * jax.random.normal(ks[3], (1, FC1), jnp.float32)
    w2 = scale * jax.random.normal(ks[4], (FC1, NCLASS), jnp.float32)
    b2 = 0.01 * jax.random.normal(ks[5], (1, NCLASS), jnp.float32)
    # lane-pad fc2 to 128 output columns (extra columns zero / masked in-kernel)
    w2_p = jnp.zeros((FC1, CPAD), jnp.float32).at[:, :NCLASS].set(w2)
    b2_p = jnp.zeros((1, CPAD), jnp.float32).at[:, :NCLASS].set(b2)
    return {
        "emb_table": table_p.astype(jnp.bfloat16),   # [VPAD, 768] bf16
        "wp": wp.astype(jnp.bfloat16),               # [768, 768]  bf16
        "bp": jnp.zeros((1, HIDDEN), jnp.float32),
        "w1": w1.astype(jnp.bfloat16),               # [768, 512]  bf16
        "b1": b1,
        "w2": w2_p.astype(jnp.bfloat16),             # [512, 128]  bf16 (padded)
        "b2": b2_p,                                  # [1, 128]    f32  (padded)
    }


def _use_bf16_onehot():
    # bf16 elementwise is a win only on bf16-native VALUs (v6e / v7x).
    try:
        kind = jax.devices()[0].device_kind.lower()
    except Exception:
        return False
    if any(t in kind for t in ("v2", "v3", "v4", "v5")):
        return False
    return True


@partial(jax.jit, static_argnames=("bt", "st", "use_bf16"))
def _bert_arch_forward_impl(sent_id, mask, params, *, bt, st, use_bf16):
    B, S = sent_id.shape
    Bp = _round_up(B, bt)
    Sp = _round_up(S, st)
    ids_p = jnp.zeros((Bp, Sp), jnp.int32).at[:B, :S].set(sent_id.astype(jnp.int32))
    mask_p = jnp.zeros((Bp, Sp), jnp.float32).at[:B, :S].set(mask.astype(jnp.float32))

    grid = (Bp // bt, Sp // st)
    const = lambda i, k: (0, 0)   # weights: fetched once, resident across grid
    onehot_dtype = jnp.bfloat16 if use_bf16 else jnp.float32

    out = pl.pallas_call(
        partial(bert_arch_kernel, onehot_dtype=onehot_dtype),
        out_shape=jax.ShapeDtypeStruct((Bp, CPAD), jnp.float32),
        grid_spec=pltpu.PrefetchScalarGridSpec(
            num_scalar_prefetch=0,
            grid=grid,
            in_specs=[
                pl.BlockSpec((bt, st), lambda i, k: (i, k)),     # sent_id tile
                pl.BlockSpec((bt, st), lambda i, k: (i, k)),     # mask tile
                pl.BlockSpec((VPAD, HIDDEN), const),             # emb table
                pl.BlockSpec((HIDDEN, HIDDEN), const),           # pooler W
                pl.BlockSpec((1, HIDDEN), const),                # pooler b
                pl.BlockSpec((HIDDEN, FC1), const),              # fc1 W
                pl.BlockSpec((1, FC1), const),                   # fc1 b
                pl.BlockSpec((FC1, CPAD), const),                # fc2 W (padded)
                pl.BlockSpec((1, CPAD), const),                  # fc2 b (padded)
            ],
            out_specs=pl.BlockSpec((bt, CPAD), lambda i, k: (i, 0)),
            scratch_shapes=[
                pltpu.VMEM((bt, VPAD), jnp.float32),  # vocab-count accumulator
                pltpu.VMEM((bt, 1), jnp.float32),     # mask-count accumulator
            ],
        ),
        compiler_params=pltpu.CompilerParams(
            dimension_semantics=("parallel", "arbitrary"),
            vmem_limit_bytes=32 * 1024 * 1024,
        ),
    )(ids_p, mask_p, params["emb_table"], params["wp"], params["bp"],
      params["w1"], params["b1"], params["w2"], params["b2"])

    return out[:B, :NCLASS]


def bert_arch_forward(sent_id, mask, params):
    B, S = sent_id.shape
    # adaptive batch tile: don't pad tiny batches up to 128
    bt = min(_round_up(B, 8), 128)
    # seq tile: whole (8-padded) sequence in one tile when short, else 128-wide
    # streamed tiles (keeps per-tile bf16 counts exact and obeys (8,128) rule).
    st = _round_up(S, 8) if S <= 256 else 128
    return _bert_arch_forward_impl(sent_id, mask, params,
                                   bt=bt, st=st, use_bf16=_use_bf16_onehot())


def _reference_forward(sent_id, mask, params):
    # Pure-JAX reference of the same surrogate math (f32), for a sanity check.
    tbl = params["emb_table"].astype(jnp.float32)
    emb = tbl[sent_id]                                        # [B, S, H]
    m = mask.astype(jnp.float32)
    summed = jnp.einsum("bs,bsh->bh", m, emb)
    pooled = summed / jnp.maximum(jnp.sum(m, axis=1, keepdims=True), 1.0)
    cls_hs = jnp.tanh(pooled @ params["wp"].astype(jnp.float32) + params["bp"])
    h = jnp.maximum(cls_hs @ params["w1"].astype(jnp.float32) + params["b1"], 0.0)
    logits = (h @ params["w2"].astype(jnp.float32)[:, :NCLASS]
              + params["b2"][:, :NCLASS])
    return jax.nn.log_softmax(logits, axis=1)


if __name__ == "__main__":
    key = jax.random.PRNGKey(0)
    pkey, ikey = jax.random.split(key)
    params = init_params(pkey, vocab_size=30)

    B, S = 2, 8
    sent_id = jax.random.randint(ikey, (B, S), 0, 30, dtype=jnp.int32)
    # attention mask: first row fully valid, second row has last 3 tokens padded
    mask = jnp.array([[1, 1, 1, 1, 1, 1, 1, 1],
                      [1, 1, 1, 1, 1, 0, 0, 0]], dtype=jnp.int32)

    out = bert_arch_forward(sent_id, mask, params)
    out = jax.block_until_ready(out)

    assert out.shape == (B, NCLASS)
    # log-softmax rows must exponentiate-sum to 1
    assert jnp.allclose(jnp.sum(jnp.exp(out), axis=1), 1.0, atol=1e-5)
    # match the pure-JAX reference of the same surrogate head (bf16 tolerance)
    ref = _reference_forward(sent_id, mask, params)
    assert jnp.allclose(out, ref, atol=5e-2), (out, ref)
    print("KERNEL_OK")
</pallas_src>

<mosaic_0001>
module attributes {stable_mosaic.version = 11 : i64} {
  func.func @bert_arch_kernel(%arg0: i32, %arg1: i32, %arg2: memref<8x8xi32, #tpu.memory_space<vmem>>, %arg3: memref<8x8xf32, #tpu.memory_space<vmem>>, %arg4: memref<128x768xbf16, #tpu.memory_space<vmem>>, %arg5: memref<768x768xbf16, #tpu.memory_space<vmem>>, %arg6: memref<1x768xf32, #tpu.memory_space<vmem>>, %arg7: memref<768x512xbf16, #tpu.memory_space<vmem>>, %arg8: memref<1x512xf32, #tpu.memory_space<vmem>>, %arg9: memref<512x128xbf16, #tpu.memory_space<vmem>>, %arg10: memref<1x128xf32, #tpu.memory_space<vmem>>, %arg11: memref<8x128xf32, #tpu.memory_space<vmem>>, %arg12: memref<8x128xf32, #tpu.memory_space<vmem>>, %arg13: memref<8x1xf32, #tpu.memory_space<vmem>>) attributes {dimension_semantics = [#tpu.dimension_semantics<parallel>, #tpu.dimension_semantics<arbitrary>], iteration_bounds = array<i64: 1, 1>, scalar_prefetch = 0 : i64, scratch_operands = 2 : i64, tpu.core_type = #tpu.core_type<tc>, window_params = [{transform_indices = @transform_0, window_bounds = array<i64: 8, 8>}, {transform_indices = @transform_1, window_bounds = array<i64: 8, 8>}, {pipeline_mode = #tpu.pipeline_mode<synchronous>, transform_indices = @transform_2, window_bounds = array<i64: 128, 768>}, {pipeline_mode = #tpu.pipeline_mode<synchronous>, transform_indices = @transform_3, window_bounds = array<i64: 768, 768>}, {pipeline_mode = #tpu.pipeline_mode<synchronous>, transform_indices = @transform_4, window_bounds = array<i64: 1, 768>}, {pipeline_mode = #tpu.pipeline_mode<synchronous>, transform_indices = @transform_5, window_bounds = array<i64: 768, 512>}, {pipeline_mode = #tpu.pipeline_mode<synchronous>, transform_indices = @transform_6, window_bounds = array<i64: 1, 512>}, {pipeline_mode = #tpu.pipeline_mode<synchronous>, transform_indices = @transform_7, window_bounds = array<i64: 512, 128>}, {pipeline_mode = #tpu.pipeline_mode<synchronous>, transform_indices = @transform_8, window_bounds = array<i64: 1, 128>}, {transform_indices = @transform_9, window_bounds = array<i64: 8, 128>}]} {
    %c0_i32 = arith.constant 0 : i32
    %0 = arith.cmpi eq, %arg1, %c0_i32 : i32
    %1 = arith.extui %0 : i1 to i32
    %c0_i32_0 = arith.constant 0 : i32
    %2 = arith.cmpi ne, %1, %c0_i32_0 : i32
    scf.if %2 {
      %cst_15 = arith.constant 0.000000e+00 : f32
      %32 = vector.broadcast %cst_15 : f32 to vector<8x128xf32>
      %c0_16 = arith.constant 0 : index
      %c0_17 = arith.constant 0 : index
      %33 = vector.load %arg12[%c0_16, %c0_17] : memref<8x128xf32, #tpu.memory_space<vmem>>, vector<8x128xf32>
      tpu.vector_store %arg12[%c0_16, %c0_17], %32 {strides = array<i32>} : memref<8x128xf32, #tpu.memory_space<vmem>>, vector<8x128xf32>,
      %cst_18 = arith.constant 0.000000e+00 : f32
      %34 = vector.broadcast %cst_18 : f32 to vector<8x1xf32>
      %c0_19 = arith.constant 0 : index
      %c0_20 = arith.constant 0 : index
      %35 = vector.load %arg13[%c0_19, %c0_20] : memref<8x1xf32, #tpu.memory_space<vmem>>, vector<8x1xf32>
      tpu.vector_store %arg13[%c0_19, %c0_20], %34 {strides = array<i32>} : memref<8x1xf32, #tpu.memory_space<vmem>>, vector<8x1xf32>,
    } else {
    }
    %c0 = arith.constant 0 : index
    %c0_1 = arith.constant 0 : index
    %3 = vector.load %arg2[%c0, %c0_1] : memref<8x8xi32, #tpu.memory_space<vmem>>, vector<8x8xi32>
    %c0_2 = arith.constant 0 : index
    %c0_3 = arith.constant 0 : index
    %4 = vector.load %arg3[%c0_2, %c0_3] : memref<8x8xf32, #tpu.memory_space<vmem>>, vector<8x8xf32>
    %5 = tpu.iota {dimensions = array<i32: 2>} : vector<1x1x128xi32>
    %6 = vector.shape_cast %3 : vector<8x8xi32> to vector<8x8x1xi32>
    %7 = vector.broadcast %6 : vector<8x8x1xi32> to vector<8x8x128xi32>
    %8 = vector.broadcast %5 : vector<1x1x128xi32> to vector<8x8x128xi32>
    %9 = arith.cmpi eq, %7, %8 : vector<8x8x128xi32>
    %10 = arith.extui %9 : vector<8x8x128xi1> to vector<8x8x128xi32>
    %11 = arith.sitofp %10 : vector<8x8x128xi32> to vector<8x8x128xf32>
    %12 = arith.truncf %11 : vector<8x8x128xf32> to vector<8x8x128xbf16>
    %13 = vector.shape_cast %4 : vector<8x8xf32> to vector<8x8x1xf32>
    %14 = arith.truncf %13 : vector<8x8x1xf32> to vector<8x8x1xbf16>
    %15 = vector.broadcast %14 : vector<8x8x1xbf16> to vector<8x8x128xbf16>
    %16 = arith.mulf %12, %15 : vector<8x8x128xbf16>
    %c0_4 = arith.constant 0 : index
    %c0_5 = arith.constant 0 : index
    %17 = vector.load %arg12[%c0_4, %c0_5] : memref<8x128xf32, #tpu.memory_space<vmem>>, vector<8x128xf32>
    %18 = arith.extf %16 : vector<8x8x128xbf16> to vector<8x8x128xf32>
    %cst = arith.constant dense<0.000000e+00> : vector<8x128xf32>
    %19 = vector.multi_reduction <add>, %18, %cst [1] : vector<8x8x128xf32> to vector<8x128xf32>
    %20 = arith.truncf %19 : vector<8x128xf32> to vector<8x128xbf16>
    %21 = arith.extf %20 : vector<8x128xbf16> to vector<8x128xf32>
    %22 = arith.addf %17, %21 : vector<8x128xf32>
    %c0_6 = arith.constant 0 : index
    %c0_7 = arith.constant 0 : index
    %23 = vector.load %arg12[%c0_6, %c0_7] : memref<8x128xf32, #tpu.memory_space<vmem>>, vector<8x128xf32>
    tpu.vector_store %arg12[%c0_6, %c0_7], %22 {strides = array<i32>} : memref<8x128xf32, #tpu.memory_space<vmem>>, vector<8x128xf32>,
    %c0_8 = arith.constant 0 : index
    %c0_9 = arith.constant 0 : index
    %24 = vector.load %arg13[%c0_8, %c0_9] : memref<8x1xf32, #tpu.memory_space<vmem>>, vector<8x1xf32>
    %cst_10 = arith.constant dense<0.000000e+00> : vector<8xf32>
    %25 = vector.multi_reduction <add>, %4, %cst_10 [1] : vector<8x8xf32> to vector<8xf32>
    %26 = vector.shape_cast %25 : vector<8xf32> to vector<8x1xf32>
    %27 = arith.addf %24, %26 : vector<8x1xf32>
    %c0_11 = arith.constant 0 : index
    %c0_12 = arith.constant 0 : index
    %28 = vector.load %arg13[%c0_11, %c0_12] : memref<8x1xf32, #tpu.memory_space<vmem>>, vector<8x1xf32>
    tpu.vector_store %arg13[%c0_11, %c0_12], %27 {strides = array<i32>} : memref<8x1xf32, #tpu.memory_space<vmem>>, vector<8x1xf32>,
    %c0_i32_13 = arith.constant 0 : i32
    %29 = arith.cmpi eq, %arg1, %c0_i32_13 : i32
    %30 = arith.extui %29 : i1 to i32
    %c0_i32_14 = arith.constant 0 : i32
    %31 = arith.cmpi ne, %30, %c0_i32_14 : i32
    scf.if %31 {
      %c0_15 = arith.constant 0 : index
      %c0_16 = arith.constant 0 : index
      %32 = vector.load %arg12[%c0_15, %c0_16] : memref<8x128xf32, #tpu.memory_space<vmem>>, vector<8x128xf32>
      %33 = arith.truncf %32 : vector<8x128xf32> to vector<8x128xbf16>
      %c0_17 = arith.constant 0 : index
      %c0_18 = arith.constant 0 : index
      %34 = vector.load %arg4[%c0_17, %c0_18] : memref<128x768xbf16, #tpu.memory_space<vmem>>, vector<128x768xbf16>
      %cst_19 = arith.constant dense<0.000000e+00> : vector<8x768xf32>
      %35 = tpu.matmul %33, %34, %cst_19 {dimension_numbers = #tpu.dot_dimension_numbers<[1], [0], [0], [1], [0, 0, 1, 1], [], []>} : vector<8x128xbf16>, vector<128x768xbf16>, vector<8x768xf32> -> vector<8x768xf32>
      %c0_20 = arith.constant 0 : index
      %c0_21 = arith.constant 0 : index
      %36 = vector.load %arg13[%c0_20, %c0_21] : memref<8x1xf32, #tpu.memory_space<vmem>>, vector<8x1xf32>
      %cst_22 = arith.constant 1.000000e+00 : f32
      %37 = vector.broadcast %cst_22 : f32 to vector<8x1xf32>
      %38 = arith.maximumf %36, %37 : vector<8x1xf32>
      %39 = vector.broadcast %38 : vector<8x1xf32> to vector<8x768xf32>
      %40 = arith.divf %35, %39 : vector<8x768xf32>
      %41 = arith.truncf %40 : vector<8x768xf32> to vector<8x768xbf16>
      %c0_23 = arith.constant 0 : index
      %c0_24 = arith.constant 0 : index
      %42 = vector.load %arg5[%c0_23, %c0_24] : memref<768x768xbf16, #tpu.memory_space<vmem>>, vector<768x768xbf16>
      %cst_25 = arith.constant dense<0.000000e+00> : vector<8x768xf32>
      %43 = tpu.matmul %41, %42, %cst_25 {dimension_numbers = #tpu.dot_dimension_numbers<[1], [0], [0], [1], [0, 0, 1, 1], [], []>} : vector<8x768xbf16>, vector<768x768xbf16>, vector<8x768xf32> -> vector<8x768xf32>
      %c0_26 = arith.constant 0 : index
      %c0_27 = arith.constant 0 : index
      %44 = vector.load %arg6[%c0_26, %c0_27] : memref<1x768xf32, #tpu.memory_space<vmem>>, vector<1x768xf32>
      %45 = vector.broadcast %44 : vector<1x768xf32> to vector<8x768xf32>
      %46 = arith.addf %43, %45 : vector<8x768xf32>
      %47 = math.tanh %46 : vector<8x768xf32>
      %48 = arith.truncf %47 : vector<8x768xf32> to vector<8x768xbf16>
      %c0_28 = arith.constant 0 : index
      %c0_29 = arith.constant 0 : index
      %49 = vector.load %arg7[%c0_28, %c0_29] : memref<768x512xbf16, #tpu.memory_space<vmem>>, vector<768x512xbf16>
      %cst_30 = arith.constant dense<0.000000e+00> : vector<8x512xf32>
      %50 = tpu.matmul %48, %49, %cst_30 {dimension_numbers = #tpu.dot_dimension_numbers<[1], [0], [0], [1], [0, 0, 1, 1], [], []>} : vector<8x768xbf16>, vector<768x512xbf16>, vector<8x512xf32> -> vector<8x512xf32>
      %c0_31 = arith.constant 0 : index
      %c0_32 = arith.constant 0 : index
      %51 = vector.load %arg8[%c0_31, %c0_32] : memref<1x512xf32, #tpu.memory_space<vmem>>, vector<1x512xf32>
      %52 = vector.broadcast %51 : vector<1x512xf32> to vector<8x512xf32>
      %53 = arith.addf %50, %52 : vector<8x512xf32>
      %cst_33 = arith.constant 0.000000e+00 : f32
      %54 = vector.broadcast %cst_33 : f32 to vector<8x512xf32>
      %55 = arith.maximumf %53, %54 : vector<8x512xf32>
      %56 = arith.truncf %55 : vector<8x512xf32> to vector<8x512xbf16>
      %c0_34 = arith.constant 0 : index
      %c0_35 = arith.constant 0 : index
      %57 = vector.load %arg9[%c0_34, %c0_35] : memref<512x128xbf16, #tpu.memory_space<vmem>>, vector<512x128xbf16>
      %cst_36 = arith.constant dense<0.000000e+00> : vector<8x128xf32>
      %58 = tpu.matmul %56, %57, %cst_36 {dimension_numbers = #tpu.dot_dimension_numbers<[1], [0], [0], [1], [0, 0, 1, 1], [], []>} : vector<8x512xbf16>, vector<512x128xbf16>, vector<8x128xf32> -> vector<8x128xf32>
      %c0_37 = arith.constant 0 : index
      %c0_38 = arith.constant 0 : index
      %59 = vector.load %arg10[%c0_37, %c0_38] : memref<1x128xf32, #tpu.memory_space<vmem>>, vector<1x128xf32>
      %60 = vector.broadcast %59 : vector<1x128xf32> to vector<8x128xf32>
      %61 = arith.addf %58, %60 : vector<8x128xf32>
      %62 = tpu.iota {dimensions = array<i32: 1>} : vector<8x128xi32>
      %c2_i32 = arith.constant 2 : i32
      %63 = vector.broadcast %c2_i32 : i32 to vector<8x128xi32>
      %64 = arith.cmpi slt, %62, %63 : vector<8x128xi32>
      %cst_39 = arith.constant -1.000000e+30 : f32
      %65 = vector.broadcast %cst_39 : f32 to vector<8x128xf32>
      %66 = arith.select %64, %61, %65 : vector<8x128xi1>, vector<8x128xf32>
      %cst_40 = arith.constant dense<0xFF800000> : vector<8xf32>
      %67 = vector.multi_reduction <maximumf>, %66, %cst_40 [1] : vector<8x128xf32> to vector<8xf32>
      %68 = vector.shape_cast %67 : vector<8xf32> to vector<8x1xf32>
      %69 = vector.broadcast %68 : vector<8x1xf32> to vector<8x128xf32>
      %70 = arith.subf %66, %69 : vector<8x128xf32>
      %71 = math.exp %70 : vector<8x128xf32>
      %cst_41 = arith.constant dense<0.000000e+00> : vector<8xf32>
      %72 = vector.multi_reduction <add>, %71, %cst_41 [1] : vector<8x128xf32> to vector<8xf32>
      %73 = vector.shape_cast %72 : vector<8xf32> to vector<8x1xf32>
      %74 = math.log %73 : vector<8x1xf32>
      %75 = vector.broadcast %74 : vector<8x1xf32> to vector<8x128xf32>
      %76 = arith.subf %70, %75 : vector<8x128xf32>
      %c0_42 = arith.constant 0 : index
      %c0_43 = arith.constant 0 : index
      %77 = vector.load %arg11[%c0_42, %c0_43] : memref<8x128xf32, #tpu.memory_space<vmem>>, vector<8x128xf32>
      tpu.vector_store %arg11[%c0_42, %c0_43], %76 {strides = array<i32>} : memref<8x128xf32, #tpu.memory_space<vmem>>, vector<8x128xf32>,
    } else {
    }
    return
  }
  func.func @transform_0(%arg0: i32, %arg1: i32) -> (i32, i32) {
    %c0_i32 = arith.constant 0 : i32
    return %arg0, %arg1 : i32, i32
  }
  func.func @transform_1(%arg0: i32, %arg1: i32) -> (i32, i32) {
    %c0_i32 = arith.constant 0 : i32
    return %arg0, %arg1 : i32, i32
  }
  func.func @transform_2(%arg0: i32, %arg1: i32) -> (i32, i32) {
    %c0_i32 = arith.constant 0 : i32
    %c0_i32_0 = arith.constant 0 : i32
    %c0_i32_1 = arith.constant 0 : i32
    return %c0_i32, %c0_i32_0 : i32, i32
  }
  func.func @transform_3(%arg0: i32, %arg1: i32) -> (i32, i32) {
    %c0_i32 = arith.constant 0 : i32
    %c0_i32_0 = arith.constant 0 : i32
    %c0_i32_1 = arith.constant 0 : i32
    return %c0_i32, %c0_i32_0 : i32, i32
  }
  func.func @transform_4(%arg0: i32, %arg1: i32) -> (i32, i32) {
    %c0_i32 = arith.constant 0 : i32
    %c0_i32_0 = arith.constant 0 : i32
    %c0_i32_1 = arith.constant 0 : i32
    return %c0_i32, %c0_i32_0 : i32, i32
  }
  func.func @transform_5(%arg0: i32, %arg1: i32) -> (i32, i32) {
    %c0_i32 = arith.constant 0 : i32
    %c0_i32_0 = arith.constant 0 : i32
    %c0_i32_1 = arith.constant 0 : i32
    return %c0_i32, %c0_i32_0 : i32, i32
  }
  func.func @transform_6(%arg0: i32, %arg1: i32) -> (i32, i32) {
    %c0_i32 = arith.constant 0 : i32
    %c0_i32_0 = arith.constant 0 : i32
    %c0_i32_1 = arith.constant 0 : i32
    return %c0_i32, %c0_i32_0 : i32, i32
  }
  func.func @transform_7(%arg0: i32, %arg1: i32) -> (i32, i32) {
    %c0_i32 = arith.constant 0 : i32
    %c0_i32_0 = arith.constant 0 : i32
    %c0_i32_1 = arith.constant 0 : i32
    return %c0_i32, %c0_i32_0 : i32, i32
  }
  func.func @transform_8(%arg0: i32, %arg1: i32) -> (i32, i32) {
    %c0_i32 = arith.constant 0 : i32
    %c0_i32_0 = arith.constant 0 : i32
    %c0_i32_1 = arith.constant 0 : i32
    return %c0_i32, %c0_i32_0 : i32, i32
  }
  func.func @transform_9(%arg0: i32, %arg1: i32) -> (i32, i32) {
    %c0_i32 = arith.constant 0 : i32
    %c0_i32_0 = arith.constant 0 : i32
    return %arg0, %c0_i32 : i32, i32
  }
}

</mosaic_0001>

<llo_original>
// kernel: _bert_arch_forward_impl.1
$region0: #{_bert_arch_forward_impl.1}
  #allocation0 [shape = 'u32[]', space=smem, size = 0x4, offset = 0x4, fixed_abs, tag = 'smem constant byte address 0x4 - core index']
  #allocation1 [shape = 'u32[144,128]{1,0:T(1,128)}', space=vmem, size = 0x12000, scoped, tag = 'internal scratch']
  #allocation2 [shape = 'f32[8,128]{1,0:T(8,128)}', space=vmem, size = 0x1000, scoped, tag = 'scratch operand']
  #allocation3 [shape = 'f32[8,1]{1,0:T(8,128)}', space=vmem, size = 0x1000, scoped, tag = 'scratch operand']
  %s0 = inlined_call_operand.vmem [shape: s32[8,8], index: 0, kind: input, shape index: {}]
  %s1 = inlined_call_operand.vmem [shape: f32[8,8], index: 1, kind: input, shape index: {}]
  %s2 = inlined_call_operand.hbm [shape: bf16[128,768], index: 2, kind: input, shape index: {}]
  %s3 = inlined_call_operand.hbm [shape: bf16[768,768], index: 3, kind: input, shape index: {}]
  %s4 = inlined_call_operand.hbm [shape: f32[1,768], index: 4, kind: input, shape index: {}]
  %s5 = inlined_call_operand.hbm [shape: bf16[768,512], index: 5, kind: input, shape index: {}]
  %s6 = inlined_call_operand.hbm [shape: f32[1,512], index: 6, kind: input, shape index: {}]
  %s7 = inlined_call_operand.hbm [shape: bf16[512,128], index: 7, kind: input, shape index: {}]
  %s8 = inlined_call_operand.hbm [shape: f32[1,128], index: 8, kind: input, shape index: {}]
  %s9 = inlined_call_operand.vmem [shape: f32[8,128], index: 9, kind: output, shape index: {}]
  %s10 = sld [smem:[#allocation0]]
  $region82: #{_bert_arch_forward_impl.1} parent=0
    _
  %s12 = ssub.s32 1, %s10
  %s13 = scalar_select 0, %s12, %s10
  $region1: #{_bert_arch_forward_impl.1} parent=0
    #allocation4 [shape = 'u8[196608]{0}', space=vmem, size = 0x30000, scoped, tag = 'input window, operand 2, single buffered']
    #allocation5 [shape = 's32[1]{0}', space=sflag, size = 0x4, scoped, tag = 'scoped memory for _bert_arch_forward_impl.1']
    #allocation6 [shape = 'u8[1179648]{0}', space=vmem, size = 0x120000, scoped, tag = 'input window, operand 3, single buffered']
    #allocation7 [shape = 's32[1]{0}', space=sflag, size = 0x4, scoped, tag = 'scoped memory for _bert_arch_forward_impl.1']
    #allocation8 [shape = 'u8[3072]{0}', space=vmem, size = 0xc00, scoped, tag = 'input window, operand 4, single buffered']
    #allocation9 [shape = 'u8[786432]{0}', space=vmem, size = 0xc0000, scoped, tag = 'input window, operand 5, single buffered']
    #allocation10 [shape = 's32[1]{0}', space=sflag, size = 0x4, scoped, tag = 'scoped memory for _bert_arch_forward_impl.1']
    #allocation11 [shape = 'u8[2048]{0}', space=vmem, size = 0x800, scoped, tag = 'input window, operand 6, single buffered']
    #allocation12 [shape = 'u8[131072]{0}', space=vmem, size = 0x20000, scoped, tag = 'input window, operand 7, single buffered']
    #allocation13 [shape = 's32[1]{0}', space=sflag, size = 0x4, scoped, tag = 'scoped memory for _bert_arch_forward_impl.1']
    #allocation14 [shape = 'u8[512]{0}', space=vmem, size = 0x400, scoped, tag = 'input window, operand 8, single buffered']
    %14 = vsyncpa [#allocation5], 0
    %15 = vsyncpa [#allocation7], 0
    %16 = vsyncpa [#allocation10], 0
    %17 = vsyncpa [#allocation13], 0
    // Predicated region
    $region2: #{_bert_arch_forward_impl.1} parent=1 // pred_check
      _
    $region3: #{_bert_arch_forward_impl.1} parent=1 // pred_check_branch
      %19 = sbr.rel (0) target = $region5
    $region4: #{_bert_arch_forward_impl.1} parent=1 // pred_region
      _
    $region5: #{_bert_arch_forward_impl.1} parent=1 // pred_fallthru
      _
    // Predicated region
    $region6: #{_bert_arch_forward_impl.1} parent=1 // pred_check
      _
    $region7: #{_bert_arch_forward_impl.1} parent=1 // pred_check_branch
      %21 = sbr.rel (0) target = $region9
    $region8: #{_bert_arch_forward_impl.1} parent=1 // pred_region
      _
    $region9: #{_bert_arch_forward_impl.1} parent=1 // pred_fallthru
      _
    // Predicated region
    $region10: #{_bert_arch_forward_impl.1} parent=1 // pred_check
      _
    $region11: #{_bert_arch_forward_impl.1} parent=1 // pred_check_branch
      %23 = sbr.rel (0) target = $region13
    $region12: #{_bert_arch_forward_impl.1} parent=1 // pred_region
      %s25 = ssub.s32 6144, 6144
      %26 = vsyncadd [#allocation5], %s25
      %s27 = sshll.u32 [#allocation4], 4
      %s28 = int_to_ptr.vmem [resolvable:$true] %s27
      %33 = dma.hbm_to_vmem [thread:$0]  %s2, 6144, %s28, [#allocation5], 384, 384, 24
    $region13: #{_bert_arch_forward_impl.1} parent=1 // pred_fallthru
      _
    // Predicated region
    $region14: #{_bert_arch_forward_impl.1} parent=1 // pred_check
      _
    $region15: #{_bert_arch_forward_impl.1} parent=1 // pred_check_branch
      %35 = sbr.rel (0) target = $region17
    $region16: #{_bert_arch_forward_impl.1} parent=1 // pred_region
      %s37 = ssub.s32 36864, 36864
      %38 = vsyncadd [#allocation7], %s37
      %s39 = sshll.u32 [#allocation6], 4
      %s40 = int_to_ptr.vmem [resolvable:$true] %s39
      %45 = dma.hbm_to_vmem [thread:$0]  %s3, 36864, %s40, [#allocation7], 384, 384, 24
    $region17: #{_bert_arch_forward_impl.1} parent=1 // pred_fallthru
      _
    // Predicated region
    $region18: #{_bert_arch_forward_impl.1} parent=1 // pred_check
      _
    $region19: #{_bert_arch_forward_impl.1} parent=1 // pred_check_branch
      %47 = sbr.rel (0) target = $region21
    $region20: #{_bert_arch_forward_impl.1} parent=1 // pred_region
      %s49 = ssub.s32 96, 96
      %50 = vsyncadd [#allocation7], %s49
      %s52 = sshll.u32 [#allocation8], 4
      %s53 = int_to_ptr.vmem [resolvable:$true] %s52
      %55 = dma.hbm_to_vmem [thread:$0]  %s4, 96, %s53, [#allocation7]
    $region21: #{_bert_arch_forward_impl.1} parent=1 // pred_fallthru
      _
    // Predicated region
    $region22: #{_bert_arch_forward_impl.1} parent=1 // pred_check
      _
    $region23: #{_bert_arch_forward_impl.1} parent=1 // pred_check_branch
      %57 = sbr.rel (0) target = $region25
    $region24: #{_bert_arch_forward_impl.1} parent=1 // pred_region
      %s59 = ssub.s32 24576, 24576
      %60 = vsyncadd [#allocation10], %s59
      %s61 = sshll.u32 [#allocation9], 4
      %s62 = int_to_ptr.vmem [resolvable:$true] %s61
      %67 = dma.hbm_to_vmem [thread:$0]  %s5, 24576, %s62, [#allocation10], 256, 256, 16
    $region25: #{_bert_arch_forward_impl.1} parent=1 // pred_fallthru
      _
    // Predicated region
    $region26: #{_bert_arch_forward_impl.1} parent=1 // pred_check
      _
    $region27: #{_bert_arch_forward_impl.1} parent=1 // pred_check_branch
      %69 = sbr.rel (0) target = $region29
    $region28: #{_bert_arch_forward_impl.1} parent=1 // pred_region
      %s71 = ssub.s32 64, 64
      %72 = vsyncadd [#allocation10], %s71
      %s74 = sshll.u32 [#allocation11], 4
      %s75 = int_to_ptr.vmem [resolvable:$true] %s74
      %77 = dma.hbm_to_vmem [thread:$0]  %s6, 64, %s75, [#allocation10]
    $region29: #{_bert_arch_forward_impl.1} parent=1 // pred_fallthru
      _
    // Predicated region
    $region30: #{_bert_arch_forward_impl.1} parent=1 // pred_check
      _
    $region31: #{_bert_arch_forward_impl.1} parent=1 // pred_check_branch
      %79 = sbr.rel (0) target = $region33
    $region32: #{_bert_arch_forward_impl.1} parent=1 // pred_region
      %s81 = ssub.s32 4096, 4096
      %82 = vsyncadd [#allocation13], %s81
      %s83 = sshll.u32 [#allocation12], 4
      %s84 = int_to_ptr.vmem [resolvable:$true] %s83
      %89 = dma.hbm_to_vmem [thread:$0]  %s7, 4096, %s84, [#allocation13], 64, 64, 4
    $region33: #{_bert_arch_forward_impl.1} parent=1 // pred_fallthru
      _
    // Predicated region
    $region34: #{_bert_arch_forward_impl.1} parent=1 // pred_check
      _
    $region35: #{_bert_arch_forward_impl.1} parent=1 // pred_check_branch
      %91 = sbr.rel (0) target = $region37
    $region36: #{_bert_arch_forward_impl.1} parent=1 // pred_region
      %s93 = ssub.s32 16, 16
      %94 = vsyncadd [#allocation13], %s93
      %s96 = sshll.u32 [#allocation14], 4
      %s97 = int_to_ptr.vmem [resolvable:$true] %s96
      %99 = dma.hbm_to_vmem [thread:$0]  %s8, 16, %s97, [#allocation13]
    $region37: #{_bert_arch_forward_impl.1} parent=1 // pred_fallthru
      _
    // Predicated region
    $region38: #{_bert_arch_forward_impl.1} parent=1 // pred_check
      _
    $region39: #{_bert_arch_forward_impl.1} parent=1 // pred_check_branch
      %101 = sbr.rel (0) target = $region41
    $region40: #{_bert_arch_forward_impl.1} parent=1 // pred_region
      %102 = dma.done [#allocation5], 6144
    $region41: #{_bert_arch_forward_impl.1} parent=1 // pred_fallthru
      _
    // Predicated region
    $region42: #{_bert_arch_forward_impl.1} parent=1 // pred_check
      _
    $region43: #{_bert_arch_forward_impl.1} parent=1 // pred_check_branch
      %104 = sbr.rel (0) target = $region45
    $region44: #{_bert_arch_forward_impl.1} parent=1 // pred_region
      %105 = dma.done [#allocation7], 36864
    $region45: #{_bert_arch_forward_impl.1} parent=1 // pred_fallthru
      _
    // Predicated region
    $region46: #{_bert_arch_forward_impl.1} parent=1 // pred_check
      _
    $region47: #{_bert_arch_forward_impl.1} parent=1 // pred_check_branch
      %107 = sbr.rel (0) target = $region49
    $region48: #{_bert_arch_forward_impl.1} parent=1 // pred_region
      %108 = dma.done [#allocation7], 96
    $region49: #{_bert_arch_forward_impl.1} parent=1 // pred_fallthru
      _
    // Predicated region
    $region50: #{_bert_arch_forward_impl.1} parent=1 // pred_check
      _
    $region51: #{_bert_arch_forward_impl.1} parent=1 // pred_check_branch
      %110 = sbr.rel (0) target = $region53
    $region52: #{_bert_arch_forward_impl.1} parent=1 // pred_region
      %111 = dma.done [#allocation10], 24576
    $region53: #{_bert_arch_forward_impl.1} parent=1 // pred_fallthru
      _
    // Predicated region
    $region54: #{_bert_arch_forward_impl.1} parent=1 // pred_check
      _
    $region55: #{_bert_arch_forward_impl.1} parent=1 // pred_check_branch
      %113 = sbr.rel (0) target = $region57
    $region56: #{_bert_arch_forward_impl.1} parent=1 // pred_region
      %114 = dma.done [#allocation10], 64
    $region57: #{_bert_arch_forward_impl.1} parent=1 // pred_fallthru
      _
    // Predicated region
    $region58: #{_bert_arch_forward_impl.1} parent=1 // pred_check
      _
    $region59: #{_bert_arch_forward_impl.1} parent=1 // pred_check_branch
      %116 = sbr.rel (0) target = $region61
    $region60: #{_bert_arch_forward_impl.1} parent=1 // pred_region
      %117 = dma.done [#allocation13], 4096
    $region61: #{_bert_arch_forward_impl.1} parent=1 // pred_fallthru
      _
    // Predicated region
    $region62: #{_bert_arch_forward_impl.1} parent=1 // pred_check
      _
    $region63: #{_bert_arch_forward_impl.1} parent=1 // pred_check_branch
      %119 = sbr.rel (0) target = $region65
    $region64: #{_bert_arch_forward_impl.1} parent=1 // pred_region
      %120 = dma.done [#allocation13], 16
    $region65: #{_bert_arch_forward_impl.1} parent=1 // pred_fallthru
      _
    %p122 = scmp.eq.s32.totalorder 0, 0
    // Predicated region
    $region66: #{_bert_arch_forward_impl.1} parent=1 // pred_check
      %p123 = pneg %p122
    $region67: #{_bert_arch_forward_impl.1} parent=1 // pred_check_branch
      %125 = sbr.rel (%p123) target = $region69
    $region68: #{_bert_arch_forward_impl.1} parent=1 // pred_region
      %126 = vst [vmem:[#allocation2] sm:$0xff] 0.0
      %vm127 = vcmask 7168
      %128 = vst.msk [vmem:[#allocation3] sm:$0xff] %vm127, 0.0
    $region69: #{_bert_arch_forward_impl.1} parent=1 // pred_fallthru
      _
    %v129 = vld [vmem:[%s0] sm:$0xff]
    %v130 = vld [vmem:[%s1] sm:$0xff]
    %v131 = vlaneseq
    %v132 = vand.u32 %v131, 127
    %v133 = vlaneseq
    %v134 = vshrl.u32 %v133, 7
    %v135 = vsub.s32 0, %v134
    %v136 = vrot.slane %v129, %v135
    %138 = vbcast.lane.b32.xlu0 %v136, 256
    %v139 = vpop.permute.xlu0 %138
    %v140 = vlaneseq
    %v141 = vshrl.u32 %v140, 7
    %v142 = vsub.s32 1, %v141
    %v143 = vrot.slane %v129, %v142
    %145 = vbcast.lane.b32.xlu0 %v143, 256
    %v146 = vpop.permute.xlu0 %145
    %v147 = vlaneseq
    %v148 = vshrl.u32 %v147, 7
    %v149 = vsub.s32 2, %v148
    %v150 = vrot.slane %v129, %v149
    %152 = vbcast.lane.b32.xlu0 %v150, 256
    %v153 = vpop.permute.xlu0 %152
    %v154 = vlaneseq
    %v155 = vshrl.u32 %v154, 7
    %v156 = vsub.s32 3, %v155
    %v157 = vrot.slane %v129, %v156
    %159 = vbcast.lane.b32.xlu0 %v157, 256
    %v160 = vpop.permute.xlu0 %159
    %v161 = vlaneseq
    %v162 = vshrl.u32 %v161, 7
    %v163 = vsub.s32 4, %v162
    %v164 = vrot.slane %v129, %v163
    %166 = vbcast.lane.b32.xlu0 %v164, 256
    %v167 = vpop.permute.xlu0 %166
    %v168 = vlaneseq
    %v169 = vshrl.u32 %v168, 7
    %v170 = vsub.s32 5, %v169
    %v171 = vrot.slane %v129, %v170
    %173 = vbcast.lane.b32.xlu0 %v171, 256
    %v174 = vpop.permute.xlu0 %173
    %v175 = vlaneseq
    %v176 = vshrl.u32 %v175, 7
    %v177 = vsub.s32 6, %v176
    %v178 = vrot.slane %v129, %v177
    %180 = vbcast.lane.b32.xlu0 %v178, 256
    %v181 = vpop.permute.xlu0 %180
    %v182 = vlaneseq
    %v183 = vshrl.u32 %v182, 7
    %v184 = vsub.s32 7, %v183
    %v185 = vrot.slane %v129, %v184
    %187 = vbcast.lane.b32.xlu0 %v185, 256
    %v188 = vpop.permute.xlu0 %187
    %vm189 = vcmp.eq.s32.totalorder %v139, %v132
    %vm190 = vcmp.eq.s32.totalorder %v146, %v132
    %vm191 = vcmp.eq.s32.totalorder %v153, %v132
    %vm192 = vcmp.eq.s32.totalorder %v160, %v132
    %vm193 = vcmp.eq.s32.totalorder %v167, %v132
    %vm194 = vcmp.eq.s32.totalorder %v174, %v132
    %vm195 = vcmp.eq.s32.totalorder %v181, %v132
    %vm196 = vcmp.eq.s32.totalorder %v188, %v132
    %v197 = vsel %vm189, 1, 0
    %v198 = vsel %vm190, 1, 0
    %v199 = vsel %vm191, 1, 0
    %v200 = vsel %vm192, 1, 0
    %v201 = vsel %vm193, 1, 0
    %v202 = vsel %vm194, 1, 0
    %v203 = vsel %vm195, 1, 0
    %v204 = vsel %vm196, 1, 0
    %v205 = vcvt.s32.f32 %v197
    %v206 = vcvt.s32.f32 %v198
    %v207 = vcvt.s32.f32 %v199
    %v208 = vcvt.s32.f32 %v200
    %v209 = vcvt.s32.f32 %v201
    %v210 = vcvt.s32.f32 %v202
    %v211 = vcvt.s32.f32 %v203
    %v212 = vcvt.s32.f32 %v204
    %v213 = vpack.c.bf16 %v205, %v205
    %v214 = vpack.c.bf16 %v206, %v206
    %v215 = vpack.c.bf16 %v207, %v207
    %v216 = vpack.c.bf16 %v208, %v208
    %v217 = vpack.c.bf16 %v209, %v209
    %v218 = vpack.c.bf16 %v210, %v210
    %v219 = vpack.c.bf16 %v211, %v211
    %v220 = vpack.c.bf16 %v212, %v212
    %v221 = vlaneseq
    %v222 = vshrl.u32 %v221, 7
    %v223 = vsub.s32 0, %v222
    %v224 = vrot.slane %v130, %v223
    %226 = vbcast.lane.b32.xlu0 %v224, 256
    %v227 = vpop.permute.xlu0 %226
    %v228 = vlaneseq
    %v229 = vshrl.u32 %v228, 7
    %v230 = vsub.s32 1, %v229
    %v231 = vrot.slane %v130, %v230
    %233 = vbcast.lane.b32.xlu0 %v231, 256
    %v234 = vpop.permute.xlu0 %233
    %v235 = vlaneseq
    %v236 = vshrl.u32 %v235, 7
    %v237 = vsub.s32 2, %v236
    %v238 = vrot.slane %v130, %v237
    %240 = vbcast.lane.b32.xlu0 %v238, 256
    %v241 = vpop.permute.xlu0 %240
    %v242 = vlaneseq
    %v243 = vshrl.u32 %v242, 7
    %v244 = vsub.s32 3, %v243
    %v245 = vrot.slane %v130, %v244
    %247 = vbcast.lane.b32.xlu0 %v245, 256
    %v248 = vpop.permute.xlu0 %247
    %v249 = vlaneseq
    %v250 = vshrl.u32 %v249, 7
    %v251 = vsub.s32 4, %v250
    %v252 = vrot.slane %v130, %v251
    %254 = vbcast.lane.b32.xlu0 %v252, 256
    %v255 = vpop.permute.xlu0 %254
    %v256 = vlaneseq
    %v257 = vshrl.u32 %v256, 7
    %v258 = vsub.s32 5, %v257
    %v259 = vrot.slane %v130, %v258
    %261 = vbcast.lane.b32.xlu0 %v259, 256
    %v262 = vpop.permute.xlu0 %261
    %v263 = vlaneseq
    %v264 = vshrl.u32 %v263, 7
    %v265 = vsub.s32 6, %v264
    %v266 = vrot.slane %v130, %v265
    %268 = vbcast.lane.b32.xlu0 %v266, 256
    %v269 = vpop.permute.xlu0 %268
    %v270 = vlaneseq
    %v271 = vshrl.u32 %v270, 7
    %v272 = vsub.s32 7, %v271
    %v273 = vrot.slane %v130, %v272
    %275 = vbcast.lane.b32.xlu0 %v273, 256
    %v276 = vpop.permute.xlu0 %275
    %v277 = vpack.c.bf16 %v227, %v227
    %v278 = vpack.c.bf16 %v234, %v234
    %v279 = vpack.c.bf16 %v241, %v241
    %v280 = vpack.c.bf16 %v248, %v248
    %v281 = vpack.c.bf16 %v255, %v255
    %v282 = vpack.c.bf16 %v262, %v262
    %v283 = vpack.c.bf16 %v269, %v269
    %v284 = vpack.c.bf16 %v276, %v276
    %v285 = vmul.bf16 %v213, %v277
    %v286 = vmul.bf16 %v214, %v278
    %v287 = vmul.bf16 %v215, %v279
    %v288 = vmul.bf16 %v216, %v280
    %v289 = vmul.bf16 %v217, %v281
    %v290 = vmul.bf16 %v218, %v282
    %v291 = vmul.bf16 %v219, %v283
    %v292 = vmul.bf16 %v220, %v284
    %v293 = vld [vmem:[#allocation2] sm:$0xff]
    %v294 = vunpack.c.l.bf16 %v285
    %v295 = vunpack.c.l.bf16 %v286
    %v296 = vunpack.c.l.bf16 %v287
    %v297 = vunpack.c.l.bf16 %v288
    %v298 = vunpack.c.l.bf16 %v289
    %v299 = vunpack.c.l.bf16 %v290
    %v300 = vunpack.c.l.bf16 %v291
    %v301 = vunpack.c.l.bf16 %v292
    %v302 = vrot.slane %v294, 4
    %v303 = vadd.f32 %v294, %v302
    %v304 = vrot.slane %v303, 2
    %v305 = vadd.f32 %v303, %v304
    %v306 = vrot.slane %v305, 1
    %v307 = vadd.f32 %v305, %v306
    %v308 = vrot.slane %v295, 4
    %v309 = vadd.f32 %v295, %v308
    %v310 = vrot.slane %v309, 2
    %v311 = vadd.f32 %v309, %v310
    %v312 = vrot.slane %v311, 1
    %v313 = vadd.f32 %v311, %v312
    %v314 = vrot.slane %v296, 4
    %v315 = vadd.f32 %v296, %v314
    %v316 = vrot.slane %v315, 2
    %v317 = vadd.f32 %v315, %v316
    %v318 = vrot.slane %v317, 1
    %v319 = vadd.f32 %v317, %v318
    %v320 = vrot.slane %v297, 4
    %v321 = vadd.f32 %v297, %v320
    %v322 = vrot.slane %v321, 2
    %v323 = vadd.f32 %v321, %v322
    %v324 = vrot.slane %v323, 1
    %v325 = vadd.f32 %v323, %v324
    %v326 = vrot.slane %v298, 4
    %v327 = vadd.f32 %v298, %v326
    %v328 = vrot.slane %v327, 2
    %v329 = vadd.f32 %v327, %v328
    %v330 = vrot.slane %v329, 1
    %v331 = vadd.f32 %v329, %v330
    %v332 = vrot.slane %v299, 4
    %v333 = vadd.f32 %v299, %v332
    %v334 = vrot.slane %v333, 2
    %v335 = vadd.f32 %v333, %v334
    %v336 = vrot.slane %v335, 1
    %v337 = vadd.f32 %v335, %v336
    %v338 = vrot.slane %v300, 4
    %v339 = vadd.f32 %v300, %v338
    %v340 = vrot.slane %v339, 2
    %v341 = vadd.f32 %v339, %v340
    %v342 = vrot.slane %v341, 1
    %v343 = vadd.f32 %v341, %v342
    %v344 = vrot.slane %v301, 4
    %v345 = vadd.f32 %v301, %v344
    %v346 = vrot.slane %v345, 2
    %v347 = vadd.f32 %v345, %v346
    %v348 = vrot.slane %v347, 1
    %v349 = vadd.f32 %v347, %v348
    %v350 = vpack.c.bf16 %v307, %v307
    %v351 = vpack.c.bf16 %v313, %v313
    %v352 = vpack.c.bf16 %v319, %v319
    %v353 = vpack.c.bf16 %v325, %v325
    %v354 = vpack.c.bf16 %v331, %v331
    %v355 = vpack.c.bf16 %v337, %v337
    %v356 = vpack.c.bf16 %v343, %v343
    %v357 = vpack.c.bf16 %v349, %v349
    %v358 = vunpack.c.l.bf16 %v350
    %v359 = vunpack.c.l.bf16 %v351
    %v360 = vunpack.c.l.bf16 %v352
    %v361 = vunpack.c.l.bf16 %v353
    %v362 = vunpack.c.l.bf16 %v354
    %v363 = vunpack.c.l.bf16 %v355
    %v364 = vunpack.c.l.bf16 %v356
    %v365 = vunpack.c.l.bf16 %v357
    %vm374 = vcmask 1041409
    %v375 = vsel %vm374, %v359, %v358
    %vm376 = vcmask 1042434
    %v377 = vsel %vm376, %v360, %v375
    %vm378 = vcmask 1043459
    %v379 = vsel %vm378, %v361, %v377
    %vm380 = vcmask 1044484
    %v381 = vsel %vm380, %v362, %v379
    %vm382 = vcmask 1045509
    %v383 = vsel %vm382, %v363, %v381
    %vm384 = vcmask 1046534
    %v385 = vsel %vm384, %v364, %v383
    %vm386 = vcmask 1047559
    %v387 = vsel %vm386, %v365, %v385
    %v389 = vadd.f32 %v293, %v387
    %390 = vst [vmem:[#allocation2] sm:$0xff] %v389
    %v391 = vld [vmem:[#allocation3] sm:$0xff]
    %vm392 = vcmask 64512
    %v393 = vsel %vm392, %v130, 0.0
    %394 = vadd.xlane.f32.xlu0 %v393
    %v395 = vpop.xlane.xlu0 %394
    %v396 = vadd.f32 %v391, %v395
    %vm397 = vcmask 7168
    %398 = vst.msk [vmem:[#allocation3] sm:$0xff] %vm397, %v396
    // Predicated region
    $region70: #{_bert_arch_forward_impl.1} parent=1 // pred_check
      %p399 = pneg %p122
    $region71: #{_bert_arch_forward_impl.1} parent=1 // pred_check_branch
      %401 = sbr.rel (%p399) target = $region73
    $region72: #{_bert_arch_forward_impl.1} parent=1 // pred_region
      %v402 = vld [vmem:[#allocation2] sm:$0xff]
      %v403 = vpack.c.bf16 %v402, %v402
      %v404 = vld [vmem:[#allocation4] sm:$0xff]
      %v405 = vld [vmem:[#allocation4 + $0x8] sm:$0xff]
      %v406 = vld [vmem:[#allocation4 + $0x10] sm:$0xff]
      %v407 = vld [vmem:[#allocation4 + $0x18] sm:$0xff]
      %v408 = vld [vmem:[#allocation4 + $0x20] sm:$0xff]
      %v409 = vld [vmem:[#allocation4 + $0x28] sm:$0xff]
      %v410 = vld [vmem:[#allocation4 + $0x30] sm:$0xff]
      %v411 = vld [vmem:[#allocation4 + $0x38] sm:$0xff]
      %v412 = vld [vmem:[#allocation4 + $0x40] sm:$0xff]
      %v413 = vld [vmem:[#allocation4 + $0x48] sm:$0xff]
      %v414 = vld [vmem:[#allocation4 + $0x50] sm:$0xff]
      %v415 = vld [vmem:[#allocation4 + $0x58] sm:$0xff]
      %v416 = vld [vmem:[#allocation4 + $0x60] sm:$0xff]
      %v417 = vld [vmem:[#allocation4 + $0x68] sm:$0xff]
      %v418 = vld [vmem:[#allocation4 + $0x70] sm:$0xff]
      %v419 = vld [vmem:[#allocation4 + $0x78] sm:$0xff]
      %v420 = vld [vmem:[#allocation4 + $0x80] sm:$0xff]
      %v421 = vld [vmem:[#allocation4 + $0x88] sm:$0xff]
      %v422 = vld [vmem:[#allocation4 + $0x90] sm:$0xff]
      %v423 = vld [vmem:[#allocation4 + $0x98] sm:$0xff]
      %v424 = vld [vmem:[#allocation4 + $0xa0] sm:$0xff]
      %v425 = vld [vmem:[#allocation4 + $0xa8] sm:$0xff]
      %v426 = vld [vmem:[#allocation4 + $0xb0] sm:$0xff]
      %v427 = vld [vmem:[#allocation4 + $0xb8] sm:$0xff]
      %v428 = vld [vmem:[#allocation4 + $0xc0] sm:$0xff]
      %v429 = vld [vmem:[#allocation4 + $0xc8] sm:$0xff]
      %v430 = vld [vmem:[#allocation4 + $0xd0] sm:$0xff]
      %v431 = vld [vmem:[#allocation4 + $0xd8] sm:$0xff]
      %v432 = vld [vmem:[#allocation4 + $0xe0] sm:$0xff]
      %v433 = vld [vmem:[#allocation4 + $0xe8] sm:$0xff]
      %v434 = vld [vmem:[#allocation4 + $0xf0] sm:$0xff]
      %v435 = vld [vmem:[#allocation4 + $0xf8] sm:$0xff]
      %v436 = vld [vmem:[#allocation4 + $0x100] sm:$0xff]
      %v437 = vld [vmem:[#allocation4 + $0x108] sm:$0xff]
      %v438 = vld [vmem:[#allocation4 + $0x110] sm:$0xff]
      %v439 = vld [vmem:[#allocation4 + $0x118] sm:$0xff]
      %v440 = vld [vmem:[#allocation4 + $0x120] sm:$0xff]
      %v441 = vld [vmem:[#allocation4 + $0x128] sm:$0xff]
      %v442 = vld [vmem:[#allocation4 + $0x130] sm:$0xff]
      %v443 = vld [vmem:[#allocation4 + $0x138] sm:$0xff]
      %v444 = vld [vmem:[#allocation4 + $0x140] sm:$0xff]
      %v445 = vld [vmem:[#allocation4 + $0x148] sm:$0xff]
      %v446 = vld [vmem:[#allocation4 + $0x150] sm:$0xff]
      %v447 = vld [vmem:[#allocation4 + $0x158] sm:$0xff]
      %v448 = vld [vmem:[#allocation4 + $0x160] sm:$0xff]
      %v449 = vld [vmem:[#allocation4 + $0x168] sm:$0xff]
      %v450 = vld [vmem:[#allocation4 + $0x170] sm:$0xff]
      %v451 = vld [vmem:[#allocation4 + $0x178] sm:$0xff]
      %v500 = vunpack.c.l.b16 %v404
      %v501 = vunpack.c.h.b16 %v404
      %v502 = vunpack.c.l.b16 %v405
      %v503 = vunpack.c.h.b16 %v405
      %v504 = vunpack.c.l.b16 %v406
      %v505 = vunpack.c.h.b16 %v406
      %v506 = vunpack.c.l.b16 %v407
      %v507 = vunpack.c.h.b16 %v407
      %v508 = vunpack.c.l.b16 %v408
      %v509 = vunpack.c.h.b16 %v408
      %v510 = vunpack.c.l.b16 %v409
      %v511 = vunpack.c.h.b16 %v409
      %v512 = vunpack.c.l.b16 %v410
      %v513 = vunpack.c.h.b16 %v410
      %v514 = vunpack.c.l.b16 %v411
      %v515 = vunpack.c.h.b16 %v411
      %v516 = vunpack.c.l.b16 %v412
      %v517 = vunpack.c.h.b16 %v412
      %v518 = vunpack.c.l.b16 %v413
      %v519 = vunpack.c.h.b16 %v413
      %v520 = vunpack.c.l.b16 %v414
      %v521 = vunpack.c.h.b16 %v414
      %v522 = vunpack.c.l.b16 %v415
      %v523 = vunpack.c.h.b16 %v415
      %v524 = vunpack.c.l.b16 %v416
      %v525 = vunpack.c.h.b16 %v416
      %v526 = vunpack.c.l.b16 %v417
      %v527 = vunpack.c.h.b16 %v417
      %v528 = vunpack.c.l.b16 %v418
      %v529 = vunpack.c.h.b16 %v418
      %v530 = vunpack.c.l.b16 %v419
      %v531 = vunpack.c.h.b16 %v419
      %v532 = vunpack.c.l.b16 %v420
      %v533 = vunpack.c.h.b16 %v420
      %v534 = vunpack.c.l.b16 %v421
      %v535 = vunpack.c.h.b16 %v421
      %v536 = vunpack.c.l.b16 %v422
      %v537 = vunpack.c.h.b16 %v422
      %v538 = vunpack.c.l.b16 %v423
      %v539 = vunpack.c.h.b16 %v423
      %v540 = vunpack.c.l.b16 %v424
      %v541 = vunpack.c.h.b16 %v424
      %v542 = vunpack.c.l.b16 %v425
      %v543 = vunpack.c.h.b16 %v425
      %v544 = vunpack.c.l.b16 %v426
      %v545 = vunpack.c.h.b16 %v426
      %v546 = vunpack.c.l.b16 %v427
      %v547 = vunpack.c.h.b16 %v427
      %v548 = vunpack.c.l.b16 %v428
      %v549 = vunpack.c.h.b16 %v428
      %v550 = vunpack.c.l.b16 %v429
      %v551 = vunpack.c.h.b16 %v429
      %v552 = vunpack.c.l.b16 %v430
      %v553 = vunpack.c.h.b16 %v430
      %v554 = vunpack.c.l.b16 %v431
      %v555 = vunpack.c.h.b16 %v431
      %v556 = vunpack.c.l.b16 %v432
      %v557 = vunpack.c.h.b16 %v432
      %v558 = vunpack.c.l.b16 %v433
      %v559 = vunpack.c.h.b16 %v433
      %v560 = vunpack.c.l.b16 %v434
      %v561 = vunpack.c.h.b16 %v434
      %v562 = vunpack.c.l.b16 %v435
      %v563 = vunpack.c.h.b16 %v435
      %v564 = vunpack.c.l.b16 %v436
      %v565 = vunpack.c.h.b16 %v436
      %v566 = vunpack.c.l.b16 %v437
      %v567 = vunpack.c.h.b16 %v437
      %v568 = vunpack.c.l.b16 %v438
      %v569 = vunpack.c.h.b16 %v438
      %v570 = vunpack.c.l.b16 %v439
      %v571 = vunpack.c.h.b16 %v439
      %v572 = vunpack.c.l.b16 %v440
      %v573 = vunpack.c.h.b16 %v440
      %v574 = vunpack.c.l.b16 %v441
      %v575 = vunpack.c.h.b16 %v441
      %v576 = vunpack.c.l.b16 %v442
      %v577 = vunpack.c.h.b16 %v442
      %v578 = vunpack.c.l.b16 %v443
      %v579 = vunpack.c.h.b16 %v443
      %v580 = vunpack.c.l.b16 %v444
      %v581 = vunpack.c.h.b16 %v444
      %v582 = vunpack.c.l.b16 %v445
      %v583 = vunpack.c.h.b16 %v445
      %v584 = vunpack.c.l.b16 %v446
      %v585 = vunpack.c.h.b16 %v446
      %v586 = vunpack.c.l.b16 %v447
      %v587 = vunpack.c.h.b16 %v447
      %v588 = vunpack.c.l.b16 %v448
      %v589 = vunpack.c.h.b16 %v448
      %v590 = vunpack.c.l.b16 %v449
      %v591 = vunpack.c.h.b16 %v449
      %v592 = vunpack.c.l.b16 %v450
      %v593 = vunpack.c.h.b16 %v450
      %v594 = vunpack.c.l.b16 %v451
      %v595 = vunpack.c.h.b16 %v451
      %v596 = vpack.c.b16 %v506, %v500
      %v597 = vpack.c.b16 %v507, %v501
      %v598 = vpack.c.b16 %v508, %v502
      %v599 = vpack.c.b16 %v509, %v503
      %v600 = vpack.c.b16 %v510, %v504
      %v601 = vpack.c.b16 %v511, %v505
      %v602 = vpack.c.b16 %v518, %v512
      %v603 = vpack.c.b16 %v519, %v513
      %v604 = vpack.c.b16 %v520, %v514
      %v605 = vpack.c.b16 %v521, %v515
      %v606 = vpack.c.b16 %v522, %v516
      %v607 = vpack.c.b16 %v523, %v517
      %v608 = vpack.c.b16 %v530, %v524
      %v609 = vpack.c.b16 %v531, %v525
      %v610 = vpack.c.b16 %v532, %v526
      %v611 = vpack.c.b16 %v533, %v527
      %v612 = vpack.c.b16 %v534, %v528
      %v613 = vpack.c.b16 %v535, %v529
      %v614 = vpack.c.b16 %v542, %v536
      %v615 = vpack.c.b16 %v543, %v537
      %v616 = vpack.c.b16 %v544, %v538
      %v617 = vpack.c.b16 %v545, %v539
      %v618 = vpack.c.b16 %v546, %v540
      %v619 = vpack.c.b16 %v547, %v541
      %v620 = vpack.c.b16 %v554, %v548
      %v621 = vpack.c.b16 %v555, %v549
      %v622 = vpack.c.b16 %v556, %v550
      %v623 = vpack.c.b16 %v557, %v551
      %v624 = vpack.c.b16 %v558, %v552
      %v625 = vpack.c.b16 %v559, %v553
      %v626 = vpack.c.b16 %v566, %v560
      %v627 = vpack.c.b16 %v567, %v561
      %v628 = vpack.c.b16 %v568, %v562
      %v629 = vpack.c.b16 %v569, %v563
      %v630 = vpack.c.b16 %v570, %v564
      %v631 = vpack.c.b16 %v571, %v565
      %v632 = vpack.c.b16 %v578, %v572
      %v633 = vpack.c.b16 %v579, %v573
      %v634 = vpack.c.b16 %v580, %v574
      %v635 = vpack.c.b16 %v581, %v575
      %v636 = vpack.c.b16 %v582, %v576
      %v637 = vpack.c.b16 %v583, %v577
      %v638 = vpack.c.b16 %v590, %v584
      %v639 = vpack.c.b16 %v591, %v585
      %v640 = vpack.c.b16 %v592, %v586
      %v641 = vpack.c.b16 %v593, %v587
      %v642 = vpack.c.b16 %v594, %v588
      %v643 = vpack.c.b16 %v595, %v589
      %692 = vmatprep.subr.bf16.mxu0 %v597
      %693 = vmatpush1.bf16.msra.mxu0 %v596
      %694 = vmatprep.subr.bf16.mxu0 %v603
      %695 = vmatpush1.bf16.msra.mxu0 %v602
      %696 = vmatprep.subr.bf16.mxu0 %v609
      %697 = vmatpush1.bf16.msra.mxu0 %v608
      %698 = vmatprep.subr.bf16.mxu0 %v615
      %699 = vmatpush1.bf16.msra.mxu0 %v614
      %700 = vmatprep.subr.bf16.mxu0 %v621
      %701 = vmatpush1.bf16.msra.mxu0 %v620
      %702 = vmatprep.subr.bf16.mxu0 %v627
      %703 = vmatpush1.bf16.msra.mxu0 %v626
      %704 = vmatprep.subr.bf16.mxu0 %v633
      %705 = vmatpush1.bf16.msra.mxu0 %v632
      %706 = vmatprep.subr.bf16.mxu0 %v639
      %707 = vmatpush1.bf16.msra.mxu0 %v638
      %708 = vmatprep.subr.bf16.mxu0 0
      %709 = vmatpush1.bf16.msra.mxu0 0
      %710 = vmatprep.subr.bf16.mxu0 0
      %711 = vmatpush1.bf16.msra.mxu0 0
      %712 = vmatprep.subr.bf16.mxu0 0
      %713 = vmatpush1.bf16.msra.mxu0 0
      %714 = vmatprep.subr.bf16.mxu0 0
      %715 = vmatpush1.bf16.msra.mxu0 0
      %716 = vmatprep.subr.bf16.mxu0 0
      %717 = vmatpush1.bf16.msra.mxu0 0
      %718 = vmatprep.subr.bf16.mxu0 0
      %719 = vmatpush1.bf16.msra.mxu0 0
      %720 = vmatprep.subr.bf16.mxu0 0
      %721 = vmatpush1.bf16.msra.mxu0 0
      %722 = vmatprep.subr.bf16.mxu0 0
      %723 = vmatpush1.bf16.msra.mxu0 0
      %724 = vmatprep.mubr.bf16.mxu0 0
      %725 = vmatmul.mubr.bf16.gmra.mrb[0].mxu0 %v403
      %v726 = vpop.f32.mrb[0].mxu0
      %v727 = vadd.f32 0.0, %v726
      %v728 = vpop.f32.mrb[0].mxu0
      %v729 = vadd.f32 0.0, %v728
      %v730 = vpop.f32.mrb[0].mxu0
      %v731 = vpop.f32.mrb[0].mxu0
      %732 = vdwg.mxu0
      %733 = vmatprep.subr.bf16.mxu0 %v599
      %734 = vmatpush1.bf16.msra.mxu0 %v598
      %735 = vmatprep.subr.bf16.mxu0 %v605
      %736 = vmatpush1.bf16.msra.mxu0 %v604
      %737 = vmatprep.subr.bf16.mxu0 %v611
      %738 = vmatpush1.bf16.msra.mxu0 %v610
      %739 = vmatprep.subr.bf16.mxu0 %v617
      %740 = vmatpush1.bf16.msra.mxu0 %v616
      %741 = vmatprep.subr.bf16.mxu0 %v623
      %742 = vmatpush1.bf16.msra.mxu0 %v622
      %743 = vmatprep.subr.bf16.mxu0 %v629
      %744 = vmatpush1.bf16.msra.mxu0 %v628
      %745 = vmatprep.subr.bf16.mxu0 %v635
      %746 = vmatpush1.bf16.msra.mxu0 %v634
      %747 = vmatprep.subr.bf16.mxu0 %v641
      %748 = vmatpush1.bf16.msra.mxu0 %v640
      %749 = vmatprep.subr.bf16.mxu0 0
      %750 = vmatpush1.bf16.msra.mxu0 0
      %751 = vmatprep.subr.bf16.mxu0 0
      %752 = vmatpush1.bf16.msra.mxu0 0
      %753 = vmatprep.subr.bf16.mxu0 0
      %754 = vmatpush1.bf16.msra.mxu0 0
      %755 = vmatprep.subr.bf16.mxu0 0
      %756 = vmatpush1.bf16.msra.mxu0 0
      %757 = vmatprep.subr.bf16.mxu0 0
      %758 = vmatpush1.bf16.msra.mxu0 0
      %759 = vmatprep.subr.bf16.mxu0 0
      %760 = vmatpush1.bf16.msra.mxu0 0
      %761 = vmatprep.subr.bf16.mxu0 0
      %762 = vmatpush1.bf16.msra.mxu0 0
      %763 = vmatprep.subr.bf16.mxu0 0
      %764 = vmatpush1.bf16.msra.mxu0 0
      %765 = vmatprep.mubr.bf16.mxu0 0
      %766 = vmatmul.mubr.bf16.gmra.mrb[0].mxu0 %v403
      %v767 = vpop.f32.mrb[0].mxu0
      %v768 = vadd.f32 0.0, %v767
      %v769 = vpop.f32.mrb[0].mxu0
      %v770 = vadd.f32 0.0, %v769
      %v771 = vpop.f32.mrb[0].mxu0
      %v772 = vpop.f32.mrb[0].mxu0
      %773 = vdwg.mxu0
      %774 = vmatprep.subr.bf16.mxu0 %v601
      %775 = vmatpush1.bf16.msra.mxu0 %v600
      %776 = vmatprep.subr.bf16.mxu0 %v607
      %777 = vmatpush1.bf16.msra.mxu0 %v606
      %778 = vmatprep.subr.bf16.mxu0 %v613
      %779 = vmatpush1.bf16.msra.mxu0 %v612
      %780 = vmatprep.subr.bf16.mxu0 %v619
      %781 = vmatpush1.bf16.msra.mxu0 %v618
      %782 = vmatprep.subr.bf16.mxu0 %v625
      %783 = vmatpush1.bf16.msra.mxu0 %v624
      %784 = vmatprep.subr.bf16.mxu0 %v631
      %785 = vmatpush1.bf16.msra.mxu0 %v630
      %786 = vmatprep.subr.bf16.mxu0 %v637
      %787 = vmatpush1.bf16.msra.mxu0 %v636
      %788 = vmatprep.subr.bf16.mxu0 %v643
      %789 = vmatpush1.bf16.msra.mxu0 %v642
      %790 = vmatprep.subr.bf16.mxu0 0
      %791 = vmatpush1.bf16.msra.mxu0 0
      %792 = vmatprep.subr.bf16.mxu0 0
      %793 = vmatpush1.bf16.msra.mxu0 0
      %794 = vmatprep.subr.bf16.mxu0 0
      %795 = vmatpush1.bf16.msra.mxu0 0
      %796 = vmatprep.subr.bf16.mxu0 0
      %797 = vmatpush1.bf16.msra.mxu0 0
      %798 = vmatprep.subr.bf16.mxu0 0
      %799 = vmatpush1.bf16.msra.mxu0 0
      %800 = vmatprep.subr.bf16.mxu0 0
      %801 = vmatpush1.bf16.msra.mxu0 0
      %802 = vmatprep.subr.bf16.mxu0 0
      %803 = vmatpush1.bf16.msra.mxu0 0
      %804 = vmatprep.subr.bf16.mxu0 0
      %805 = vmatpush1.bf16.msra.mxu0 0
      %806 = vmatprep.mubr.bf16.mxu0 0
      %807 = vmatmul.mubr.bf16.gmra.mrb[0].mxu0 %v403
      %v808 = vpop.f32.mrb[0].mxu0
      %v809 = vadd.f32 0.0, %v808
      %v810 = vpop.f32.mrb[0].mxu0
      %v811 = vadd.f32 0.0, %v810
      %v812 = vpop.f32.mrb[0].mxu0
      %v813 = vpop.f32.mrb[0].mxu0
      %814 = vdwg.mxu0
      %v815 = vld [vmem:[#allocation3] sm:$0xff]
      %v816 = vmax.f32 %v815, 1.0
      %818 = vset.pattern.permute.xlu0 0
      %819 = vperm.xlu0 %818, %v816
      %v820 = vpop.permute.xlu0 %819
      %v822 = vrcp.pop %v820
      %v823 = vmul.f32 %v727, %v822
      %v824 = vmul.f32 %v729, %v822
      %v825 = vmul.f32 %v768, %v822
      %v826 = vmul.f32 %v770, %v822
      %v827 = vmul.f32 %v809, %v822
      %v828 = vmul.f32 %v811, %v822
      %v829 = vpack.c.bf16 %v823, %v823
      %v830 = vpack.c.bf16 %v824, %v824
      %v831 = vpack.c.bf16 %v825, %v825
      %v832 = vpack.c.bf16 %v826, %v826
      %v833 = vpack.c.bf16 %v827, %v827
      %v834 = vpack.c.bf16 %v828, %v828
      %v835 = vld [vmem:[#allocation6] sm:$0xff]
      %v836 = vld [vmem:[#allocation6 + $0x8] sm:$0xff]
      %v837 = vld [vmem:[#allocation6 + $0x10] sm:$0xff]
      %v838 = vld [vmem:[#allocation6 + $0x18] sm:$0xff]
      %v839 = vld [vmem:[#allocation6 + $0x20] sm:$0xff]
      %v840 = vld [vmem:[#allocation6 + $0x28] sm:$0xff]
      %v841 = vld [vmem:[#allocation6 + $0x30] sm:$0xff]
      %v842 = vld [vmem:[#allocation6 + $0x38] sm:$0xff]
      %v843 = vld [vmem:[#allocation6 + $0x40] sm:$0xff]
      %v844 = vld [vmem:[#allocation6 + $0x48] sm:$0xff]
      %v845 = vld [vmem:[#allocation6 + $0x50] sm:$0xff]
      %v846 = vld [vmem:[#allocation6 + $0x58] sm:$0xff]
      %v847 = vld [vmem:[#allocation6 + $0x60] sm:$0xff]
      %v848 = vld [vmem:[#allocation6 + $0x68] sm:$0xff]
      %v849 = vld [vmem:[#allocation6 + $0x70] sm:$0xff]
      %v850 = vld [vmem:[#allocation6 + $0x78] sm:$0xff]
      %v851 = vld [vmem:[#allocation6 + $0x80] sm:$0xff]
      %v852 = vld [vmem:[#allocation6 + $0x88] sm:$0xff]
      %v853 = vld [vmem:[#allocation6 + $0x90] sm:$0xff]
      %v854 = vld [vmem:[#allocation6 + $0x98] sm:$0xff]
      %v855 = vld [vmem:[#allocation6 + $0xa0] sm:$0xff]
      %v856 = vld [vmem:[#allocation6 + $0xa8] sm:$0xff]
      %v857 = vld [vmem:[#allocation6 + $0xb0] sm:$0xff]
      %v858 = vld [vmem:[#allocation6 + $0xb8] sm:$0xff]
      %v859 = vld [vmem:[#allocation6 + $0xc0] sm:$0xff]
      %v860 = vld [vmem:[#allocation6 + $0xc8] sm:$0xff]
      %v861 = vld [vmem:[#allocation6 + $0xd0] sm:$0xff]
      %v862 = vld [vmem:[#allocation6 + $0xd8] sm:$0xff]
      %v863 = vld [vmem:[#allocation6 + $0xe0] sm:$0xff]
      %v864 = vld [vmem:[#allocation6 + $0xe8] sm:$0xff]
      %v865 = vld [vmem:[#allocation6 + $0xf0] sm:$0xff]
      %v866 = vld [vmem:[#allocation6 + $0xf8] sm:$0xff]
      %v867 = vld [vmem:[#allocation6 + $0x100] sm:$0xff]
      %v868 = vld [vmem:[#allocation6 + $0x108] sm:$0xff]
      %v869 = vld [vmem:[#allocation6 + $0x110] sm:$0xff]
      %v870 = vld [vmem:[#allocation6 + $0x118] sm:$0xff]
      %v871 = vld [vmem:[#allocation6 + $0x120] sm:$0xff]
      %v872 = vld [vmem:[#allocation6 + $0x128] sm:$0xff]
      %v873 = vld [vmem:[#allocation6 + $0x130] sm:$0xff]
      %v874 = vld [vmem:[#allocation6 + $0x138] sm:$0xff]
      %v875 = vld [vmem:[#allocation6 + $0x140] sm:$0xff]
      %v876 = vld [vmem:[#allocation6 + $0x148] sm:$0xff]
      %v877 = vld [vmem:[#allocation6 + $0x150] sm:$0xff]
      %v878 = vld [vmem:[#allocation6 + $0x158] sm:$0xff]
      %v879 = vld [vmem:[#allocation6 + $0x160] sm:$0xff]
      %v880 = vld [vmem:[#allocation6 + $0x168] sm:$0xff]
      %v881 = vld [vmem:[#allocation6 + $0x170] sm:$0xff]
      %v882 = vld [vmem:[#allocation6 + $0x178] sm:$0xff]
      %v883 = vld [vmem:[#allocation6 + $0x180] sm:$0xff]
      %v884 = vld [vmem:[#allocation6 + $0x188] sm:$0xff]
      %v885 = vld [vmem:[#allocation6 + $0x190] sm:$0xff]
      %v886 = vld [vmem:[#allocation6 + $0x198] sm:$0xff]
      %v887 = vld [vmem:[#allocation6 + $0x1a0] sm:$0xff]
      %v888 = vld [vmem:[#allocation6 + $0x1a8] sm:$0xff]
      %v889 = vld [vmem:[#allocation6 + $0x1b0] sm:$0xff]
      %v890 = vld [vmem:[#allocation6 + $0x1b8] sm:$0xff]
      %v891 = vld [vmem:[#allocation6 + $0x1c0] sm:$0xff]
      %v892 = vld [vmem:[#allocation6 + $0x1c8] sm:$0xff]
      %v893 = vld [vmem:[#allocation6 + $0x1d0] sm:$0xff]
      %v894 = vld [vmem:[#allocation6 + $0x1d8] sm:$0xff]
      %v895 = vld [vmem:[#allocation6 + $0x1e0] sm:$0xff]
      %v896 = vld [vmem:[#allocation6 + $0x1e8] sm:$0xff]
      %v897 = vld [vmem:[#allocation6 + $0x1f0] sm:$0xff]
      %v898 = vld [vmem:[#allocation6 + $0x1f8] sm:$0xff]
      %v899 = vld [vmem:[#allocation6 + $0x200] sm:$0xff]
      %v900 = vld [vmem:[#allocation6 + $0x208] sm:$0xff]
      %v901 = vld [vmem:[#allocation6 + $0x210] sm:$0xff]
      %v902 = vld [vmem:[#allocation6 + $0x218] sm:$0xff]
      %v903 = vld [vmem:[#allocation6 + $0x220] sm:$0xff]
      %v904 = vld [vmem:[#allocation6 + $0x228] sm:$0xff]
      %v905 = vld [vmem:[#allocation6 + $0x230] sm:$0xff]
      %v906 = vld [vmem:[#allocation6 + $0x238] sm:$0xff]
      %v907 = vld [vmem:[#allocation6 + $0x240] sm:$0xff]
      %v908 = vld [vmem:[#allocation6 + $0x248] sm:$0xff]
      %v909 = vld [vmem:[#allocation6 + $0x250] sm:$0xff]
      %v910 = vld [vmem:[#allocation6 + $0x258] sm:$0xff]
      %v911 = vld [vmem:[#allocation6 + $0x260] sm:$0xff]
      %v912 = vld [vmem:[#allocation6 + $0x268] sm:$0xff]
      %v913 = vld [vmem:[#allocation6 + $0x270] sm:$0xff]
      %v914 = vld [vmem:[#allocation6 + $0x278] sm:$0xff]
      %v915 = vld [vmem:[#allocation6 + $0x280] sm:$0xff]
      %v916 = vld [vmem:[#allocation6 + $0x288] sm:$0xff]
      %v917 = vld [vmem:[#allocation6 + $0x290] sm:$0xff]
      %v918 = vld [vmem:[#allocation6 + $0x298] sm:$0xff]
      %v919 = vld [vmem:[#allocation6 + $0x2a0] sm:$0xff]
      %v920 = vld [vmem:[#allocation6 + $0x2a8] sm:$0xff]
      %v921 = vld [vmem:[#allocation6 + $0x2b0] sm:$0xff]
      %v922 = vld [vmem:[#allocation6 + $0x2b8] sm:$0xff]
      %v923 = vld [vmem:[#allocation6 + $0x2c0] sm:$0xff]
      %v924 = vld [vmem:[#allocation6 + $0x2c8] sm:$0xff]
      %v925 = vld [vmem:[#allocation6 + $0x2d0] sm:$0xff]
      %v926 = vld [vmem:[#allocation6 + $0x2d8] sm:$0xff]
      %v927 = vld [vmem:[#allocation6 + $0x2e0] sm:$0xff]
      %v928 = vld [vmem:[#allocation6 + $0x2e8] sm:$0xff]
      %v929 = vld [vmem:[#allocation6 + $0x2f0] sm:$0xff]
      %v930 = vld [vmem:[#allocation6 + $0x2f8] sm:$0xff]
      %v931 = vld [vmem:[#allocation6 + $0x300] sm:$0xff]
      %v932 = vld [vmem:[#allocation6 + $0x308] sm:$0xff]
      %v933 = vld [vmem:[#allocation6 + $0x310] sm:$0xff]
      %v934 = vld [vmem:[#allocation6 + $0x318] sm:$0xff]
      %v935 = vld [vmem:[#allocation6 + $0x320] sm:$0xff]
      %v936 = vld [vmem:[#allocation6 + $0x328] sm:$0xff]
      %v937 = vld [vmem:[#allocation6 + $0x330] sm:$0xff]
      %v938 = vld [vmem:[#allocation6 + $0x338] sm:$0xff]
      %v939 = vld [vmem:[#allocation6 + $0x340] sm:$0xff]
      %v940 = vld [vmem:[#allocation6 + $0x348] sm:$0xff]
      %v941 = vld [vmem:[#allocation6 + $0x350] sm:$0xff]
      %v942 = vld [vmem:[#allocation6 + $0x358] sm:$0xff]
      %v943 = vld [vmem:[#allocation6 + $0x360] sm:$0xff]
      %v944 = vld [vmem:[#allocation6 + $0x368] sm:$0xff]
      %v945 = vld [vmem:[#allocation6 + $0x370] sm:$0xff]
      %v946 = vld [vmem:[#allocation6 + $0x378] sm:$0xff]
      %v947 = vld [vmem:[#allocation6 + $0x380] sm:$0xff]
      %v948 = vld [vmem:[#allocation6 + $0x388] sm:$0xff]
      %v949 = vld [vmem:[#allocation6 + $0x390] sm:$0xff]
      %v950 = vld [vmem:[#allocation6 + $0x398] sm:$0xff]
      %v951 = vld [vmem:[#allocation6 + $0x3a0] sm:$0xff]
      %v952 = vld [vmem:[#allocation6 + $0x3a8] sm:$0xff]
      %v953 = vld [vmem:[#allocation6 + $0x3b0] sm:$0xff]
      %v954 = vld [vmem:[#allocation6 + $0x3b8] sm:$0xff]
      %v955 = vld [vmem:[#allocation6 + $0x3c0] sm:$0xff]
      %v956 = vld [vmem:[#allocation6 + $0x3c8] sm:$0xff]
      %v957 = vld [vmem:[#allocation6 + $0x3d0] sm:$0xff]
      %v958 = vld [vmem:[#allocation6 + $0x3d8] sm:$0xff]
      %v959 = vld [vmem:[#allocation6 + $0x3e0] sm:$0xff]
      %v960 = vld [vmem:[#allocation6 + $0x3e8] sm:$0xff]
      %v961 = vld [vmem:[#allocation6 + $0x3f0] sm:$0xff]
      %v962 = vld [vmem:[#allocation6 + $0x3f8] sm:$0xff]
      %v963 = vld [vmem:[#allocation6 + $0x400] sm:$0xff]
      %v964 = vld [vmem:[#allocation6 + $0x408] sm:$0xff]
      %v965 = vld [vmem:[#allocation6 + $0x410] sm:$0xff]
      %v966 = vld [vmem:[#allocation6 + $0x418] sm:$0xff]
      %v967 = vld [vmem:[#allocation6 + $0x420] sm:$0xff]
      %v968 = vld [vmem:[#allocation6 + $0x428] sm:$0xff]
      %v969 = vld [vmem:[#allocation6 + $0x430] sm:$0xff]
      %v970 = vld [vmem:[#allocation6 + $0x438] sm:$0xff]
      %v971 = vld [vmem:[#allocation6 + $0x440] sm:$0xff]
      %v972 = vld [vmem:[#allocation6 + $0x448] sm:$0xff]
      %v973 = vld [vmem:[#allocation6 + $0x450] sm:$0xff]
      %v974 = vld [vmem:[#allocation6 + $0x458] sm:$0xff]
      %v975 = vld [vmem:[#allocation6 + $0x460] sm:$0xff]
      %v976 = vld [vmem:[#allocation6 + $0x468] sm:$0xff]
      %v977 = vld [vmem:[#allocation6 + $0x470] sm:$0xff]
      %v978 = vld [vmem:[#allocation6 + $0x478] sm:$0xff]
      %v979 = vld [vmem:[#allocation6 + $0x480] sm:$0xff]
      %v980 = vld [vmem:[#allocation6 + $0x488] sm:$0xff]
      %v981 = vld [vmem:[#allocation6 + $0x490] sm:$0xff]
      %v982 = vld [vmem:[#allocation6 + $0x498] sm:$0xff]
      %v983 = vld [vmem:[#allocation6 + $0x4a0] sm:$0xff]
      %v984 = vld [vmem:[#allocation6 + $0x4a8] sm:$0xff]
      %v985 = vld [vmem:[#allocation6 + $0x4b0] sm:$0xff]
      %v986 = vld [vmem:[#allocation6 + $0x4b8] sm:$0xff]
      %v987 = vld [vmem:[#allocation6 + $0x4c0] sm:$0xff]
      %v988 = vld [vmem:[#allocation6 + $0x4c8] sm:$0xff]
      %v989 = vld [vmem:[#allocation6 + $0x4d0] sm:$0xff]
      %v990 = vld [vmem:[#allocation6 + $0x4d8] sm:$0xff]
      %v991 = vld [vmem:[#allocation6 + $0x4e0] sm:$0xff]
      %v992 = vld [vmem:[#allocation6 + $0x4e8] sm:$0xff]
      %v993 = vld [vmem:[#allocation6 + $0x4f0] sm:$0xff]
      %v994 = vld [vmem:[#allocation6 + $0x4f8] sm:$0xff]
      %v995 = vld [vmem:[#allocation6 + $0x500] sm:$0xff]
      %v996 = vld [vmem:[#allocation6 + $0x508] sm:$0xff]
      %v997 = vld [vmem:[#allocation6 + $0x510] sm:$0xff]
      %v998 = vld [vmem:[#allocation6 + $0x518] sm:$0xff]
      %v999 = vld [vmem:[#allocation6 + $0x520] sm:$0xff]
      %v1000 = vld [vmem:[#allocation6 + $0x528] sm:$0xff]
      %v1001 = vld [vmem:[#allocation6 + $0x530] sm:$0xff]
      %v1002 = vld [vmem:[#allocation6 + $0x538] sm:$0xff]
      %v1003 = vld [vmem:[#allocation6 + $0x540] sm:$0xff]
      %v1004 = vld [vmem:[#allocation6 + $0x548] sm:$0xff]
      %v1005 = vld [vmem:[#allocation6 + $0x550] sm:$0xff]
      %v1006 = vld [vmem:[#allocation6 + $0x558] sm:$0xff]
      %v1007 = vld [vmem:[#allocation6 + $0x560] sm:$0xff]
      %v1008 = vld [vmem:[#allocation6 + $0x568] sm:$0xff]
      %v1009 = vld [vmem:[#allocation6 + $0x570] sm:$0xff]
      %v1010 = vld [vmem:[#allocation6 + $0x578] sm:$0xff]
      %v1011 = vld [vmem:[#allocation6 + $0x580] sm:$0xff]
      %v1012 = vld [vmem:[#allocation6 + $0x588] sm:$0xff]
      %v1013 = vld [vmem:[#allocation6 + $0x590] sm:$0xff]
      %v1014 = vld [vmem:[#allocation6 + $0x598] sm:$0xff]
      %v1015 = vld [vmem:[#allocation6 + $0x5a0] sm:$0xff]
      %v1016 = vld [vmem:[#allocation6 + $0x5a8] sm:$0xff]
      %v1017 = vld [vmem:[#allocation6 + $0x5b0] sm:$0xff]
      %v1018 = vld [vmem:[#allocation6 + $0x5b8] sm:$0xff]
      %v1019 = vld [vmem:[#allocation6 + $0x5c0] sm:$0xff]
      %v1020 = vld [vmem:[#allocation6 + $0x5c8] sm:$0xff]
      %v1021 = vld [vmem:[#allocation6 + $0x5d0] sm:$0xff]
      %v1022 = vld [vmem:[#allocation6 + $0x5d8] sm:$0xff]
      %v1023 = vld [vmem:[#allocation6 + $0x5e0] sm:$0xff]
      %v1024 = vld [vmem:[#allocation6 + $0x5e8] sm:$0xff]
      %v1025 = vld [vmem:[#allocation6 + $0x5f0] sm:$0xff]
      %v1026 = vld [vmem:[#allocation6 + $0x5f8] sm:$0xff]
      %v1027 = vld [vmem:[#allocation6 + $0x600] sm:$0xff]
      %v1028 = vld [vmem:[#allocation6 + $0x608] sm:$0xff]
      %v1029 = vld [vmem:[#allocation6 + $0x610] sm:$0xff]
      %v1030 = vld [vmem:[#allocation6 + $0x618] sm:$0xff]
      %v1031 = vld [vmem:[#allocation6 + $0x620] sm:$0xff]
      %v1032 = vld [vmem:[#allocation6 + $0x628] sm:$0xff]
      %v1033 = vld [vmem:[#allocation6 + $0x630] sm:$0xff]
      %v1034 = vld [vmem:[#allocation6 + $0x638] sm:$0xff]
      %v1035 = vld [vmem:[#allocation6 + $0x640] sm:$0xff]
      %v1036 = vld [vmem:[#allocation6 + $0x648] sm:$0xff]
      %v1037 = vld [vmem:[#allocation6 + $0x650] sm:$0xff]
      %v1038 = vld [vmem:[#allocation6 + $0x658] sm:$0xff]
      %v1039 = vld [vmem:[#allocation6 + $0x660] sm:$0xff]
      %v1040 = vld [vmem:[#allocation6 + $0x668] sm:$0xff]
      %v1041 = vld [vmem:[#allocation6 + $0x670] sm:$0xff]
      %v1042 = vld [vmem:[#allocation6 + $0x678] sm:$0xff]
      %v1043 = vld [vmem:[#allocation6 + $0x680] sm:$0xff]
      %v1044 = vld [vmem:[#allocation6 + $0x688] sm:$0xff]
      %v1045 = vld [vmem:[#allocation6 + $0x690] sm:$0xff]
      %v1046 = vld [vmem:[#allocation6 + $0x698] sm:$0xff]
      %v1047 = vld [vmem:[#allocation6 + $0x6a0] sm:$0xff]
      %v1048 = vld [vmem:[#allocation6 + $0x6a8] sm:$0xff]
      %v1049 = vld [vmem:[#allocation6 + $0x6b0] sm:$0xff]
      %v1050 = vld [vmem:[#allocation6 + $0x6b8] sm:$0xff]
      %v1051 = vld [vmem:[#allocation6 + $0x6c0] sm:$0xff]
      %v1052 = vld [vmem:[#allocation6 + $0x6c8] sm:$0xff]
      %v1053 = vld [vmem:[#allocation6 + $0x6d0] sm:$0xff]
      %v1054 = vld [vmem:[#allocation6 + $0x6d8] sm:$0xff]
      %v1055 = vld [vmem:[#allocation6 + $0x6e0] sm:$0xff]
      %v1056 = vld [vmem:[#allocation6 + $0x6e8] sm:$0xff]
      %v1057 = vld [vmem:[#allocation6 + $0x6f0] sm:$0xff]
      %v1058 = vld [vmem:[#allocation6 + $0x6f8] sm:$0xff]
      %v1059 = vld [vmem:[#allocation6 + $0x700] sm:$0xff]
      %v1060 = vld [vmem:[#allocation6 + $0x708] sm:$0xff]
      %v1061 = vld [vmem:[#allocation6 + $0x710] sm:$0xff]
      %v1062 = vld [vmem:[#allocation6 + $0x718] sm:$0xff]
      %v1063 = vld [vmem:[#allocation6 + $0x720] sm:$0xff]
      %v1064 = vld [vmem:[#allocation6 + $0x728] sm:$0xff]
      %v1065 = vld [vmem:[#allocation6 + $0x730] sm:$0xff]
      %v1066 = vld [vmem:[#allocation6 + $0x738] sm:$0xff]
      %v1067 = vld [vmem:[#allocation6 + $0x740] sm:$0xff]
      %v1068 = vld [vmem:[#allocation6 + $0x748] sm:$0xff]
      %v1069 = vld [vmem:[#allocation6 + $0x750] sm:$0xff]
      %v1070 = vld [vmem:[#allocation6 + $0x758] sm:$0xff]
      %v1071 = vld [vmem:[#allocation6 + $0x760] sm:$0xff]
      %v1072 = vld [vmem:[#allocation6 + $0x768] sm:$0xff]
      %v1073 = vld [vmem:[#allocation6 + $0x770] sm:$0xff]
      %v1074 = vld [vmem:[#allocation6 + $0x778] sm:$0xff]
      %v1075 = vld [vmem:[#allocation6 + $0x780] sm:$0xff]
      %v1076 = vld [vmem:[#allocation6 + $0x788] sm:$0xff]
      %v1077 = vld [vmem:[#allocation6 + $0x790] sm:$0xff]
      %v1078 = vld [vmem:[#allocation6 + $0x798] sm:$0xff]
      %v1079 = vld [vmem:[#allocation6 + $0x7a0] sm:$0xff]
      %v1080 = vld [vmem:[#allocation6 + $0x7a8] sm:$0xff]
      %v1081 = vld [vmem:[#allocation6 + $0x7b0] sm:$0xff]
      %v1082 = vld [vmem:[#allocation6 + $0x7b8] sm:$0xff]
      %v1083 = vld [vmem:[#allocation6 + $0x7c0] sm:$0xff]
      %v1084 = vld [vmem:[#allocation6 + $0x7c8] sm:$0xff]
      %v1085 = vld [vmem:[#allocation6 + $0x7d0] sm:$0xff]
      %v1086 = vld [vmem:[#allocation6 + $0x7d8] sm:$0xff]
      %v1087 = vld [vmem:[#allocation6 + $0x7e0] sm:$0xff]
      %v1088 = vld [vmem:[#allocation6 + $0x7e8] sm:$0xff]
      %v1089 = vld [vmem:[#allocation6 + $0x7f0] sm:$0xff]
      %v1090 = vld [vmem:[#allocation6 + $0x7f8] sm:$0xff]
      %v1091 = vld [vmem:[#allocation6 + $0x800] sm:$0xff]
      %v1092 = vld [vmem:[#allocation6 + $0x808] sm:$0xff]
      %v1093 = vld [vmem:[#allocation6 + $0x810] sm:$0xff]
      %v1094 = vld [vmem:[#allocation6 + $0x818] sm:$0xff]
      %v1095 = vld [vmem:[#allocation6 + $0x820] sm:$0xff]
      %v1096 = vld [vmem:[#allocation6 + $0x828] sm:$0xff]
      %v1097 = vld [vmem:[#allocation6 + $0x830] sm:$0xff]
      %v1098 = vld [vmem:[#allocation6 + $0x838] sm:$0xff]
      %v1099 = vld [vmem:[#allocation6 + $0x840] sm:$0xff]
      %v1100 = vld [vmem:[#allocation6 + $0x848] sm:$0xff]
      %v1101 = vld [vmem:[#allocation6 + $0x850] sm:$0xff]
      %v1102 = vld [vmem:[#allocation6 + $0x858] sm:$0xff]
      %v1103 = vld [vmem:[#allocation6 + $0x860] sm:$0xff]
      %v1104 = vld [vmem:[#allocation6 + $0x868] sm:$0xff]
      %v1105 = vld [vmem:[#allocation6 + $0x870] sm:$0xff]
      %v1106 = vld [vmem:[#allocation6 + $0x878] sm:$0xff]
      %v1107 = vld [vmem:[#allocation6 + $0x880] sm:$0xff]
      %v1108 = vld [vmem:[#allocation6 + $0x888] sm:$0xff]
      %v1109 = vld [vmem:[#allocation6 + $0x890] sm:$0xff]
      %v1110 = vld [vmem:[#allocation6 + $0x898] sm:$0xff]
      %v1111 = vld [vmem:[#allocation6 + $0x8a0] sm:$0xff]
      %v1112 = vld [vmem:[#allocation6 + $0x8a8] sm:$0xff]
      %v1113 = vld [vmem:[#allocation6 + $0x8b0] sm:$0xff]
      %v1114 = vld [vmem:[#allocation6 + $0x8b8] sm:$0xff]
      %v1115 = vld [vmem:[#allocation6 + $0x8c0] sm:$0xff]
      %v1116 = vld [vmem:[#allocation6 + $0x8c8] sm:$0xff]
      %v1117 = vld [vmem:[#allocation6 + $0x8d0] sm:$0xff]
      %v1118 = vld [vmem:[#allocation6 + $0x8d8] sm:$0xff]
      %v1119 = vld [vmem:[#allocation6 + $0x8e0] sm:$0xff]
      %v1120 = vld [vmem:[#allocation6 + $0x8e8] sm:$0xff]
      %v1121 = vld [vmem:[#allocation6 + $0x8f0] sm:$0xff]
      %v1122 = vld [vmem:[#allocation6 + $0x8f8] sm:$0xff]
      %v1123 = vld [vmem:[#allocation8] sm:$0x3f]
      %v1125 = vlaneseq
      %v1126 = vshrl.u32 %v1125, 7
      %v1127 = vsub.s32 0, %v1126
      %v1128 = vrot.slane %v1123, %v1127
      %v1129 = vlaneseq
      %v1130 = vshrl.u32 %v1129, 7
      %v1131 = vsub.s32 1, %v1130
      %v1132 = vrot.slane %v1123, %v1131
      %v1133 = vlaneseq
      %v1134 = vshrl.u32 %v1133, 7
      %v1135 = vsub.s32 2, %v1134
      %v1136 = vrot.slane %v1123, %v1135
      %v1137 = vlaneseq
      %v1138 = vshrl.u32 %v1137, 7
      %v1139 = vsub.s32 3, %v1138
      %v1140 = vrot.slane %v1123, %v1139
      %v1141 = vlaneseq
      %v1142 = vshrl.u32 %v1141, 7
      %v1143 = vsub.s32 4, %v1142
      %v1144 = vrot.slane %v1123, %v1143
      %v1145 = vlaneseq
      %v1146 = vshrl.u32 %v1145, 7
      %v1147 = vsub.s32 5, %v1146
      %v1148 = vrot.slane %v1123, %v1147
      %v1443 = vunpack.c.l.b16 %v835
      %v1444 = vunpack.c.h.b16 %v835
      %v1445 = vunpack.c.l.b16 %v836
      %v1446 = vunpack.c.h.b16 %v836
      %v1447 = vunpack.c.l.b16 %v837
      %v1448 = vunpack.c.h.b16 %v837
      %v1449 = vunpack.c.l.b16 %v838
      %v1450 = vunpack.c.h.b16 %v838
      %v1451 = vunpack.c.l.b16 %v839
      %v1452 = vunpack.c.h.b16 %v839
      %v1453 = vunpack.c.l.b16 %v840
      %v1454 = vunpack.c.h.b16 %v840
      %v1455 = vunpack.c.l.b16 %v841
      %v1456 = vunpack.c.h.b16 %v841
      %v1457 = vunpack.c.l.b16 %v842
      %v1458 = vunpack.c.h.b16 %v842
      %v1459 = vunpack.c.l.b16 %v843
      %v1460 = vunpack.c.h.b16 %v843
      %v1461 = vunpack.c.l.b16 %v844
      %v1462 = vunpack.c.h.b16 %v844
      %v1463 = vunpack.c.l.b16 %v845
      %v1464 = vunpack.c.h.b16 %v845
      %v1465 = vunpack.c.l.b16 %v846
      %v1466 = vunpack.c.h.b16 %v846
      %v1467 = vunpack.c.l.b16 %v847
      %v1468 = vunpack.c.h.b16 %v847
      %v1469 = vunpack.c.l.b16 %v848
      %v1470 = vunpack.c.h.b16 %v848
      %v1471 = vunpack.c.l.b16 %v849
      %v1472 = vunpack.c.h.b16 %v849
      %v1473 = vunpack.c.l.b16 %v850
      %v1474 = vunpack.c.h.b16 %v850
      %v1475 = vunpack.c.l.b16 %v851
      %v1476 = vunpack.c.h.b16 %v851
      %v1477 = vunpack.c.l.b16 %v852
      %v1478 = vunpack.c.h.b16 %v852
      %v1479 = vunpack.c.l.b16 %v853
      %v1480 = vunpack.c.h.b16 %v853
      %v1481 = vunpack.c.l.b16 %v854
      %v1482 = vunpack.c.h.b16 %v854
      %v1483 = vunpack.c.l.b16 %v855
      %v1484 = vunpack.c.h.b16 %v855
      %v1485 = vunpack.c.l.b16 %v856
      %v1486 = vunpack.c.h.b16 %v856
      %v1487 = vunpack.c.l.b16 %v857
      %v1488 = vunpack.c.h.b16 %v857
      %v1489 = vunpack.c.l.b16 %v858
      %v1490 = vunpack.c.h.b16 %v858
      %v1491 = vunpack.c.l.b16 %v859
      %v1492 = vunpack.c.h.b16 %v859
      %v1493 = vunpack.c.l.b16 %v860
      %v1494 = vunpack.c.h.b16 %v860
      %v1495 = vunpack.c.l.b16 %v861
      %v1496 = vunpack.c.h.b16 %v861
      %v1497 = vunpack.c.l.b16 %v862
      %v1498 = vunpack.c.h.b16 %v862
      %v1499 = vunpack.c.l.b16 %v863
      %v1500 = vunpack.c.h.b16 %v863
      %v1501 = vunpack.c.l.b16 %v864
      %v1502 = vunpack.c.h.b16 %v864
      %v1503 = vunpack.c.l.b16 %v865
      %v1504 = vunpack.c.h.b16 %v865
      %v1505 = vunpack.c.l.b16 %v866
      %v1506 = vunpack.c.h.b16 %v866
      %v1507 = vunpack.c.l.b16 %v867
      %v1508 = vunpack.c.h.b16 %v867
      %v1509 = vunpack.c.l.b16 %v868
      %v1510 = vunpack.c.h.b16 %v868
      %v1511 = vunpack.c.l.b16 %v869
      %v1512 = vunpack.c.h.b16 %v869
      %v1513 = vunpack.c.l.b16 %v870
      %v1514 = vunpack.c.h.b16 %v870
      %v1515 = vunpack.c.l.b16 %v871
      %v1516 = vunpack.c.h.b16 %v871
      %v1517 = vunpack.c.l.b16 %v872
      %v1518 = vunpack.c.h.b16 %v872
      %v1519 = vunpack.c.l.b16 %v873
      %v1520 = vunpack.c.h.b16 %v873
      %v1521 = vunpack.c.l.b16 %v874
      %v1522 = vunpack.c.h.b16 %v874
      %v1523 = vunpack.c.l.b16 %v875
      %v1524 = vunpack.c.h.b16 %v875
      %v1525 = vunpack.c.l.b16 %v876
      %v1526 = vunpack.c.h.b16 %v876
      %v1527 = vunpack.c.l.b16 %v877
      %v1528 = vunpack.c.h.b16 %v877
      %v1529 = vunpack.c.l.b16 %v878
      %v1530 = vunpack.c.h.b16 %v878
      %v1531 = vunpack.c.l.b16 %v879
      %v1532 = vunpack.c.h.b16 %v879
      %v1533 = vunpack.c.l.b16 %v880
      %v1534 = vunpack.c.h.b16 %v880
      %v1535 = vunpack.c.l.b16 %v881
      %v1536 = vunpack.c.h.b16 %v881
      %v1537 = vunpack.c.l.b16 %v882
      %v1538 = vunpack.c.h.b16 %v882
      %v1539 = vunpack.c.l.b16 %v883
      %v1540 = vunpack.c.h.b16 %v883
      %v1541 = vunpack.c.l.b16 %v884
      %v1542 = vunpack.c.h.b16 %v884
      %v1543 = vunpack.c.l.b16 %v885
      %v1544 = vunpack.c.h.b16 %v885
      %v1545 = vunpack.c.l.b16 %v886
      %v1546 = vunpack.c.h.b16 %v886
      %v1547 = vunpack.c.l.b16 %v887
      %v1548 = vunpack.c.h.b16 %v887
      %v1549 = vunpack.c.l.b16 %v888
      %v1550 = vunpack.c.h.b16 %v888
      %v1551 = vunpack.c.l.b16 %v889
      %v1552 = vunpack.c.h.b16 %v889
      %v1553 = vunpack.c.l.b16 %v890
      %v1554 = vunpack.c.h.b16 %v890
      %v1555 = vunpack.c.l.b16 %v891
      %v1556 = vunpack.c.h.b16 %v891
      %v1557 = vunpack.c.l.b16 %v892
      %v1558 = vunpack.c.h.b16 %v892
      %v1559 = vunpack.c.l.b16 %v893
      %v1560 = vunpack.c.h.b16 %v893
      %v1561 = vunpack.c.l.b16 %v894
      %v1562 = vunpack.c.h.b16 %v894
      %v1563 = vunpack.c.l.b16 %v895
      %v1564 = vunpack.c.h.b16 %v895
      %v1565 = vunpack.c.l.b16 %v896
      %v1566 = vunpack.c.h.b16 %v896
      %v1567 = vunpack.c.l.b16 %v897
      %v1568 = vunpack.c.h.b16 %v897
      %v1569 = vunpack.c.l.b16 %v898
      %v1570 = vunpack.c.h.b16 %v898
      %v1571 = vunpack.c.l.b16 %v899
      %v1572 = vunpack.c.h.b16 %v899
      %v1573 = vunpack.c.l.b16 %v900
      %v1574 = vunpack.c.h.b16 %v900
      %v1575 = vunpack.c.l.b16 %v901
      %v1576 = vunpack.c.h.b16 %v901
      %v1577 = vunpack.c.l.b16 %v902
      %v1578 = vunpack.c.h.b16 %v902
      %v1579 = vunpack.c.l.b16 %v903
      %v1580 = vunpack.c.h.b16 %v903
      %v1581 = vunpack.c.l.b16 %v904
      %v1582 = vunpack.c.h.b16 %v904
      %v1583 = vunpack.c.l.b16 %v905
      %v1584 = vunpack.c.h.b16 %v905
      %v1585 = vunpack.c.l.b16 %v906
      %v1586 = vunpack.c.h.b16 %v906
      %v1587 = vunpack.c.l.b16 %v907
      %v1588 = vunpack.c.h.b16 %v907
      %v1589 = vunpack.c.l.b16 %v908
      %v1590 = vunpack.c.h.b16 %v908
      %v1591 = vunpack.c.l.b16 %v909
      %v1592 = vunpack.c.h.b16 %v909
      %v1593 = vunpack.c.l.b16 %v910
      %v1594 = vunpack.c.h.b16 %v910
      %v1595 = vunpack.c.l.b16 %v911
      %v1596 = vunpack.c.h.b16 %v911
      %v1597 = vunpack.c.l.b16 %v912
      %v1598 = vunpack.c.h.b16 %v912
      %v1599 = vunpack.c.l.b16 %v913
      %v1600 = vunpack.c.h.b16 %v913
      %v1601 = vunpack.c.l.b16 %v914
      %v1602 = vunpack.c.h.b16 %v914
      %v1603 = vunpack.c.l.b16 %v915
      %v1604 = vunpack.c.h.b16 %v915
      %v1605 = vunpack.c.l.b16 %v916
      %v1606 = vunpack.c.h.b16 %v916
      %v1607 = vunpack.c.l.b16 %v917
      %v1608 = vunpack.c.h.b16 %v917
      %v1609 = vunpack.c.l.b16 %v918
      %v1610 = vunpack.c.h.b16 %v918
      %v1611 = vunpack.c.l.b16 %v919
      %v1612 = vunpack.c.h.b16 %v919
      %v1613 = vunpack.c.l.b16 %v920
      %v1614 = vunpack.c.h.b16 %v920
      %v1615 = vunpack.c.l.b16 %v921
      %v1616 = vunpack.c.h.b16 %v921
      %v1617 = vunpack.c.l.b16 %v922
      %v1618 = vunpack.c.h.b16 %v922
      %v1619 = vunpack.c.l.b16 %v923
      %v1620 = vunpack.c.h.b16 %v923
      %v1621 = vunpack.c.l.b16 %v924
      %v1622 = vunpack.c.h.b16 %v924
      %v1623 = vunpack.c.l.b16 %v925
      %v1624 = vunpack.c.h.b16 %v925
      %v1625 = vunpack.c.l.b16 %v926
      %v1626 = vunpack.c.h.b16 %v926
      %v1627 = vunpack.c.l.b16 %v927
      %v1628 = vunpack.c.h.b16 %v927
      %v1629 = vunpack.c.l.b16 %v928
      %v1630 = vunpack.c.h.b16 %v928
      %v1631 = vunpack.c.l.b16 %v929
      %v1632 = vunpack.c.h.b16 %v929
      %v1633 = vunpack.c.l.b16 %v930
      %v1634 = vunpack.c.h.b16 %v930
      %v1635 = vunpack.c.l.b16 %v931
      %v1636 = vunpack.c.h.b16 %v931
      %v1637 = vunpack.c.l.b16 %v932
      %v1638 = vunpack.c.h.b16 %v932
      %v1639 = vunpack.c.l.b16 %v933
      %v1640 = vunpack.c.h.b16 %v933
      %v1641 = vunpack.c.l.b16 %v934
      %v1642 = vunpack.c.h.b16 %v934
      %v1643 = vunpack.c.l.b16 %v935
      %v1644 = vunpack.c.h.b16 %v935
      %v1645 = vunpack.c.l.b16 %v936
      %v1646 = vunpack.c.h.b16 %v936
      %v1647 = vunpack.c.l.b16 %v937
      %v1648 = vunpack.c.h.b16 %v937
      %v1649 = vunpack.c.l.b16 %v938
      %v1650 = vunpack.c.h.b16 %v938
      %v1651 = vunpack.c.l.b16 %v939
      %v1652 = vunpack.c.h.b16 %v939
      %v1653 = vunpack.c.l.b16 %v940
      %v1654 = vunpack.c.h.b16 %v940
      %v1655 = vunpack.c.l.b16 %v941
      %v1656 = vunpack.c.h.b16 %v941
      %v1657 = vunpack.c.l.b16 %v942
      %v1658 = vunpack.c.h.b16 %v942
      %v1659 = vunpack.c.l.b16 %v943
      %v1660 = vunpack.c.h.b16 %v943
      %v1661 = vunpack.c.l.b16 %v944
      %v1662 = vunpack.c.h.b16 %v944
      %v1663 = vunpack.c.l.b16 %v945
      %v1664 = vunpack.c.h.b16 %v945
      %v1665 = vunpack.c.l.b16 %v946
      %v1666 = vunpack.c.h.b16 %v946
      %v1667 = vunpack.c.l.b16 %v947
      %v1668 = vunpack.c.h.b16 %v947
      %v1669 = vunpack.c.l.b16 %v948
      %v1670 = vunpack.c.h.b16 %v948
      %v1671 = vunpack.c.l.b16 %v949
      %v1672 = vunpack.c.h.b16 %v949
      %v1673 = vunpack.c.l.b16 %v950
      %v1674 = vunpack.c.h.b16 %v950
      %v1675 = vunpack.c.l.b16 %v951
      %v1676 = vunpack.c.h.b16 %v951
      %v1677 = vunpack.c.l.b16 %v952
      %v1678 = vunpack.c.h.b16 %v952
      %v1679 = vunpack.c.l.b16 %v953
      %v1680 = vunpack.c.h.b16 %v953
      %v1681 = vunpack.c.l.b16 %v954
      %v1682 = vunpack.c.h.b16 %v954
      %v1683 = vunpack.c.l.b16 %v955
      %v1684 = vunpack.c.h.b16 %v955
      %v1685 = vunpack.c.l.b16 %v956
      %v1686 = vunpack.c.h.b16 %v956
      %v1687 = vunpack.c.l.b16 %v957
      %v1688 = vunpack.c.h.b16 %v957
      %v1689 = vunpack.c.l.b16 %v958
      %v1690 = vunpack.c.h.b16 %v958
      %v1691 = vunpack.c.l.b16 %v959
      %v1692 = vunpack.c.h.b16 %v959
      %v1693 = vunpack.c.l.b16 %v960
      %v1694 = vunpack.c.h.b16 %v960
      %v1695 = vunpack.c.l.b16 %v961
      %v1696 = vunpack.c.h.b16 %v961
      %v1697 = vunpack.c.l.b16 %v962
      %v1698 = vunpack.c.h.b16 %v962
      %v1699 = vunpack.c.l.b16 %v963
      %v1700 = vunpack.c.h.b16 %v963
      %v1701 = vunpack.c.l.b16 %v964
      %v1702 = vunpack.c.h.b16 %v964
      %v1703 = vunpack.c.l.b16 %v965
      %v1704 = vunpack.c.h.b16 %v965
      %v1705 = vunpack.c.l.b16 %v966
      %v1706 = vunpack.c.h.b16 %v966
      %v1707 = vunpack.c.l.b16 %v967
      %v1708 = vunpack.c.h.b16 %v967
      %v1709 = vunpack.c.l.b16 %v968
      %v1710 = vunpack.c.h.b16 %v968
      %v1711 = vunpack.c.l.b16 %v969
      %v1712 = vunpack.c.h.b16 %v969
      %v1713 = vunpack.c.l.b16 %v970
      %v1714 = vunpack.c.h.b16 %v970
      %v1715 = vunpack.c.l.b16 %v971
      %v1716 = vunpack.c.h.b16 %v971
      %v1717 = vunpack.c.l.b16 %v972
      %v1718 = vunpack.c.h.b16 %v972
      %v1719 = vunpack.c.l.b16 %v973
      %v1720 = vunpack.c.h.b16 %v973
      %v1721 = vunpack.c.l.b16 %v974
      %v1722 = vunpack.c.h.b16 %v974
      %v1723 = vunpack.c.l.b16 %v975
      %v1724 = vunpack.c.h.b16 %v975
      %v1725 = vunpack.c.l.b16 %v976
      %v1726 = vunpack.c.h.b16 %v976
      %v1727 = vunpack.c.l.b16 %v977
      %v1728 = vunpack.c.h.b16 %v977
      %v1729 = vunpack.c.l.b16 %v978
      %v1730 = vunpack.c.h.b16 %v978
      %v1731 = vunpack.c.l.b16 %v979
      %v1732 = vunpack.c.h.b16 %v979
      %v1733 = vunpack.c.l.b16 %v980
      %v1734 = vunpack.c.h.b16 %v980
      %v1735 = vunpack.c.l.b16 %v981
      %v1736 = vunpack.c.h.b16 %v981
      %v1737 = vunpack.c.l.b16 %v982
      %v1738 = vunpack.c.h.b16 %v982
      %v1739 = vunpack.c.l.b16 %v983
      %v1740 = vunpack.c.h.b16 %v983
      %v1741 = vunpack.c.l.b16 %v984
      %v1742 = vunpack.c.h.b16 %v984
      %v1743 = vunpack.c.l.b16 %v985
      %v1744 = vunpack.c.h.b16 %v985
      %v1745 = vunpack.c.l.b16 %v986
      %v1746 = vunpack.c.h.b16 %v986
      %v1747 = vunpack.c.l.b16 %v987
      %v1748 = vunpack.c.h.b16 %v987
      %v1749 = vunpack.c.l.b16 %v988
      %v1750 = vunpack.c.h.b16 %v988
      %v1751 = vunpack.c.l.b16 %v989
      %v1752 = vunpack.c.h.b16 %v989
      %v1753 = vunpack.c.l.b16 %v990
      %v1754 = vunpack.c.h.b16 %v990
      %v1755 = vunpack.c.l.b16 %v991
      %v1756 = vunpack.c.h.b16 %v991
      %v1757 = vunpack.c.l.b16 %v992
      %v1758 = vunpack.c.h.b16 %v992
      %v1759 = vunpack.c.l.b16 %v993
      %v1760 = vunpack.c.h.b16 %v993
      %v1761 = vunpack.c.l.b16 %v994
      %v1762 = vunpack.c.h.b16 %v994
      %v1763 = vunpack.c.l.b16 %v995
      %v1764 = vunpack.c.h.b16 %v995
      %v1765 = vunpack.c.l.b16 %v996
      %v1766 = vunpack.c.h.b16 %v996
      %v1767 = vunpack.c.l.b16 %v997
      %v1768 = vunpack.c.h.b16 %v997
      %v1769 = vunpack.c.l.b16 %v998
      %v1770 = vunpack.c.h.b16 %v998
      %v1771 = vunpack.c.l.b16 %v999
      %v1772 = vunpack.c.h.b16 %v999
      %v1773 = vunpack.c.l.b16 %v1000
      %v1774 = vunpack.c.h.b16 %v1000
      %v1775 = vunpack.c.l.b16 %v1001
      %v1776 = vunpack.c.h.b16 %v1001
      %v1777 = vunpack.c.l.b16 %v1002
      %v1778 = vunpack.c.h.b16 %v1002
      %v1779 = vunpack.c.l.b16 %v1003
      %v1780 = vunpack.c.h.b16 %v1003
      %v1781 = vunpack.c.l.b16 %v1004
      %v1782 = vunpack.c.h.b16 %v1004
      %v1783 = vunpack.c.l.b16 %v1005
      %v1784 = vunpack.c.h.b16 %v1005
      %v1785 = vunpack.c.l.b16 %v1006
      %v1786 = vunpack.c.h.b16 %v1006
      %v1787 = vunpack.c.l.b16 %v1007
      %v1788 = vunpack.c.h.b16 %v1007
      %v1789 = vunpack.c.l.b16 %v1008
      %v1790 = vunpack.c.h.b16 %v1008
      %v1791 = vunpack.c.l.b16 %v1009
      %v1792 = vunpack.c.h.b16 %v1009
      %v1793 = vunpack.c.l.b16 %v1010
      %v1794 = vunpack.c.h.b16 %v1010
      %v1795 = vunpack.c.l.b16 %v1011
      %v1796 = vunpack.c.h.b16 %v1011
      %v1797 = vunpack.c.l.b16 %v1012
      %v1798 = vunpack.c.h.b16 %v1012
      %v1799 = vunpack.c.l.b16 %v1013
      %v1800 = vunpack.c.h.b16 %v1013
      %v1801 = vunpack.c.l.b16 %v1014
      %v1802 = vunpack.c.h.b16 %v1014
      %v1803 = vunpack.c.l.b16 %v1015
      %v1804 = vunpack.c.h.b16 %v1015
      %v1805 = vunpack.c.l.b16 %v1016
      %v1806 = vunpack.c.h.b16 %v1016
      %v1807 = vunpack.c.l.b16 %v1017
      %v1808 = vunpack.c.h.b16 %v1017
      %v1809 = vunpack.c.l.b16 %v1018
      %v1810 = vunpack.c.h.b16 %v1018
      %v1811 = vunpack.c.l.b16 %v1019
      %v1812 = vunpack.c.h.b16 %v1019
      %v1813 = vunpack.c.l.b16 %v1020
      %v1814 = vunpack.c.h.b16 %v1020
      %v1815 = vunpack.c.l.b16 %v1021
      %v1816 = vunpack.c.h.b16 %v1021
      %v1817 = vunpack.c.l.b16 %v1022
      %v1818 = vunpack.c.h.b16 %v1022
      %v1819 = vunpack.c.l.b16 %v1023
      %v1820 = vunpack.c.h.b16 %v1023
      %v1821 = vunpack.c.l.b16 %v1024
      %v1822 = vunpack.c.h.b16 %v1024
      %v1823 = vunpack.c.l.b16 %v1025
      %v1824 = vunpack.c.h.b16 %v1025
      %v1825 = vunpack.c.l.b16 %v1026
      %v1826 = vunpack.c.h.b16 %v1026
      %v1827 = vunpack.c.l.b16 %v1027
      %v1828 = vunpack.c.h.b16 %v1027
      %v1829 = vunpack.c.l.b16 %v1028
      %v1830 = vunpack.c.h.b16 %v1028
      %v1831 = vunpack.c.l.b16 %v1029
      %v1832 = vunpack.c.h.b16 %v1029
      %v1833 = vunpack.c.l.b16 %v1030
      %v1834 = vunpack.c.h.b16 %v1030
      %v1835 = vunpack.c.l.b16 %v1031
      %v1836 = vunpack.c.h.b16 %v1031
      %v1837 = vunpack.c.l.b16 %v1032
      %v1838 = vunpack.c.h.b16 %v1032
      %v1839 = vunpack.c.l.b16 %v1033
      %v1840 = vunpack.c.h.b16 %v1033
      %v1841 = vunpack.c.l.b16 %v1034
      %v1842 = vunpack.c.h.b16 %v1034
      %v1843 = vunpack.c.l.b16 %v1035
      %v1844 = vunpack.c.h.b16 %v1035
      %v1845 = vunpack.c.l.b16 %v1036
      %v1846 = vunpack.c.h.b16 %v1036
      %v1847 = vunpack.c.l.b16 %v1037
      %v1848 = vunpack.c.h.b16 %v1037
      %v1849 = vunpack.c.l.b16 %v1038
      %v1850 = vunpack.c.h.b16 %v1038
      %v1851 = vunpack.c.l.b16 %v1039
      %v1852 = vunpack.c.h.b16 %v1039
      %v1853 = vunpack.c.l.b16 %v1040
      %v1854 = vunpack.c.h.b16 %v1040
      %v1855 = vunpack.c.l.b16 %v1041
      %v1856 = vunpack.c.h.b16 %v1041
      %v1857 = vunpack.c.l.b16 %v1042
      %v1858 = vunpack.c.h.b16 %v1042
      %v1859 = vunpack.c.l.b16 %v1043
      %v1860 = vunpack.c.h.b16 %v1043
      %v1861 = vunpack.c.l.b16 %v1044
      %v1862 = vunpack.c.h.b16 %v1044
      %v1863 = vunpack.c.l.b16 %v1045
      %v1864 = vunpack.c.h.b16 %v1045
      %v1865 = vunpack.c.l.b16 %v1046
      %v1866 = vunpack.c.h.b16 %v1046
      %v1867 = vunpack.c.l.b16 %v1047
      %v1868 = vunpack.c.h.b16 %v1047
      %v1869 = vunpack.c.l.b16 %v1048
      %v1870 = vunpack.c.h.b16 %v1048
      %v1871 = vunpack.c.l.b16 %v1049
      %v1872 = vunpack.c.h.b16 %v1049
      %v1873 = vunpack.c.l.b16 %v1050
      %v1874 = vunpack.c.h.b16 %v1050
      %v1875 = vunpack.c.l.b16 %v1051
      %v1876 = vunpack.c.h.b16 %v1051
      %v1877 = vunpack.c.l.b16 %v1052
      %v1878 = vunpack.c.h.b16 %v1052
      %v1879 = vunpack.c.l.b16 %v1053
      %v1880 = vunpack.c.h.b16 %v1053
      %v1881 = vunpack.c.l.b16 %v1054
      %v1882 = vunpack.c.h.b16 %v1054
      %v1883 = vunpack.c.l.b16 %v1055
      %v1884 = vunpack.c.h.b16 %v1055
      %v1885 = vunpack.c.l.b16 %v1056
      %v1886 = vunpack.c.h.b16 %v1056
      %v1887 = vunpack.c.l.b16 %v1057
      %v1888 = vunpack.c.h.b16 %v1057
      %v1889 = vunpack.c.l.b16 %v1058
      %v1890 = vunpack.c.h.b16 %v1058
      %v1891 = vunpack.c.l.b16 %v1059
      %v1892 = vunpack.c.h.b16 %v1059
      %v1893 = vunpack.c.l.b16 %v1060
      %v1894 = vunpack.c.h.b16 %v1060
      %v1895 = vunpack.c.l.b16 %v1061
      %v1896 = vunpack.c.h.b16 %v1061
      %v1897 = vunpack.c.l.b16 %v1062
      %v1898 = vunpack.c.h.b16 %v1062
      %v1899 = vunpack.c.l.b16 %v1063
      %v1900 = vunpack.c.h.b16 %v1063
      %v1901 = vunpack.c.l.b16 %v1064
      %v1902 = vunpack.c.h.b16 %v1064
      %v1903 = vunpack.c.l.b16 %v1065
      %v1904 = vunpack.c.h.b16 %v1065
      %v1905 = vunpack.c.l.b16 %v1066
      %v1906 = vunpack.c.h.b16 %v1066
      %v1907 = vunpack.c.l.b16 %v1067
      %v1908 = vunpack.c.h.b16 %v1067
      %v1909 = vunpack.c.l.b16 %v1068
      %v1910 = vunpack.c.h.b16 %v1068
      %v1911 = vunpack.c.l.b16 %v1069
      %v1912 = vunpack.c.h.b16 %v1069
      %v1913 = vunpack.c.l.b16 %v1070
      %v1914 = vunpack.c.h.b16 %v1070
      %v1915 = vunpack.c.l.b16 %v1071
      %v1916 = vunpack.c.h.b16 %v1071
      %v1917 = vunpack.c.l.b16 %v1072
      %v1918 = vunpack.c.h.b16 %v1072
      %v1919 = vunpack.c.l.b16 %v1073
      %v1920 = vunpack.c.h.b16 %v1073
      %v1921 = vunpack.c.l.b16 %v1074
      %v1922 = vunpack.c.h.b16 %v1074
      %v1923 = vunpack.c.l.b16 %v1075
      %v1924 = vunpack.c.h.b16 %v1075
      %v1925 = vunpack.c.l.b16 %v1076
      %v1926 = vunpack.c.h.b16 %v1076
      %v1927 = vunpack.c.l.b16 %v1077
      %v1928 = vunpack.c.h.b16 %v1077
      %v1929 = vunpack.c.l.b16 %v1078
      %v1930 = vunpack.c.h.b16 %v1078
      %v1931 = vunpack.c.l.b16 %v1079
      %v1932 = vunpack.c.h.b16 %v1079
      %v1933 = vunpack.c.l.b16 %v1080
      %v1934 = vunpack.c.h.b16 %v1080
      %v1935 = vunpack.c.l.b16 %v1081
      %v1936 = vunpack.c.h.b16 %v1081
      %v1937 = vunpack.c.l.b16 %v1082
      %v1938 = vunpack.c.h.b16 %v1082
      %v1939 = vunpack.c.l.b16 %v1083
      %v1940 = vunpack.c.h.b16 %v1083
      %v1941 = vunpack.c.l.b16 %v1084
      %v1942 = vunpack.c.h.b16 %v1084
      %v1943 = vunpack.c.l.b16 %v1085
      %v1944 = vunpack.c.h.b16 %v1085
      %v1945 = vunpack.c.l.b16 %v1086
      %v1946 = vunpack.c.h.b16 %v1086
      %v1947 = vunpack.c.l.b16 %v1087
      %v1948 = vunpack.c.h.b16 %v1087
      %v1949 = vunpack.c.l.b16 %v1088
      %v1950 = vunpack.c.h.b16 %v1088
      %v1951 = vunpack.c.l.b16 %v1089
      %v1952 = vunpack.c.h.b16 %v1089
      %v1953 = vunpack.c.l.b16 %v1090
      %v1954 = vunpack.c.h.b16 %v1090
      %v1955 = vunpack.c.l.b16 %v1091
      %v1956 = vunpack.c.h.b16 %v1091
      %v1957 = vunpack.c.l.b16 %v1092
      %v1958 = vunpack.c.h.b16 %v1092
      %v1959 = vunpack.c.l.b16 %v1093
      %v1960 = vunpack.c.h.b16 %v1093
      %v1961 = vunpack.c.l.b16 %v1094
      %v1962 = vunpack.c.h.b16 %v1094
      %v1963 = vunpack.c.l.b16 %v1095
      %v1964 = vunpack.c.h.b16 %v1095
      %v1965 = vunpack.c.l.b16 %v1096
      %v1966 = vunpack.c.h.b16 %v1096
      %v1967 = vunpack.c.l.b16 %v1097
      %v1968 = vunpack.c.h.b16 %v1097
      %v1969 = vunpack.c.l.b16 %v1098
      %v1970 = vunpack.c.h.b16 %v1098
      %v1971 = vunpack.c.l.b16 %v1099
      %v1972 = vunpack.c.h.b16 %v1099
      %v1973 = vunpack.c.l.b16 %v1100
      %v1974 = vunpack.c.h.b16 %v1100
      %v1975 = vunpack.c.l.b16 %v1101
      %v1976 = vunpack.c.h.b16 %v1101
      %v1977 = vunpack.c.l.b16 %v1102
      %v1978 = vunpack.c.h.b16 %v1102
      %v1979 = vunpack.c.l.b16 %v1103
      %v1980 = vunpack.c.h.b16 %v1103
      %v1981 = vunpack.c.l.b16 %v1104
      %v1982 = vunpack.c.h.b16 %v1104
      %v1983 = vunpack.c.l.b16 %v1105
      %v1984 = vunpack.c.h.b16 %v1105
      %v1985 = vunpack.c.l.b16 %v1106
      %v1986 = vunpack.c.h.b16 %v1106
      %v1987 = vunpack.c.l.b16 %v1107
      %v1988 = vunpack.c.h.b16 %v1107
      %v1989 = vunpack.c.l.b16 %v1108
      %v1990 = vunpack.c.h.b16 %v1108
      %v1991 = vunpack.c.l.b16 %v1109
      %v1992 = vunpack.c.h.b16 %v1109
      %v1993 = vunpack.c.l.b16 %v1110
      %v1994 = vunpack.c.h.b16 %v1110
      %v1995 = vunpack.c.l.b16 %v1111
      %v1996 = vunpack.c.h.b16 %v1111
      %v1997 = vunpack.c.l.b16 %v1112
      %v1998 = vunpack.c.h.b16 %v1112
      %v1999 = vunpack.c.l.b16 %v1113
      %v2000 = vunpack.c.h.b16 %v1113
      %v2001 = vunpack.c.l.b16 %v1114
      %v2002 = vunpack.c.h.b16 %v1114
      %v2003 = vunpack.c.l.b16 %v1115
      %v2004 = vunpack.c.h.b16 %v1115
      %v2005 = vunpack.c.l.b16 %v1116
      %v2006 = vunpack.c.h.b16 %v1116
      %v2007 = vunpack.c.l.b16 %v1117
      %v2008 = vunpack.c.h.b16 %v1117
      %v2009 = vunpack.c.l.b16 %v1118
      %v2010 = vunpack.c.h.b16 %v1118
      %v2011 = vunpack.c.l.b16 %v1119
      %v2012 = vunpack.c.h.b16 %v1119
      %v2013 = vunpack.c.l.b16 %v1120
      %v2014 = vunpack.c.h.b16 %v1120
      %v2015 = vunpack.c.l.b16 %v1121
      %v2016 = vunpack.c.h.b16 %v1121
      %v2017 = vunpack.c.l.b16 %v1122
      %v2018 = vunpack.c.h.b16 %v1122
      %v2019 = vpack.c.b16 %v1449, %v1443
      %v2020 = vpack.c.b16 %v1450, %v1444
      %v2021 = vpack.c.b16 %v1451, %v1445
      %v2022 = vpack.c.b16 %v1452, %v1446
      %v2023 = vpack.c.b16 %v1453, %v1447
      %v2024 = vpack.c.b16 %v1454, %v1448
      %v2025 = vpack.c.b16 %v1461, %v1455
      %v2026 = vpack.c.b16 %v1462, %v1456
      %v2027 = vpack.c.b16 %v1463, %v1457
      %v2028 = vpack.c.b16 %v1464, %v1458
      %v2029 = vpack.c.b16 %v1465, %v1459
      %v2030 = vpack.c.b16 %v1466, %v1460
      %v2031 = vpack.c.b16 %v1473, %v1467
      %v2032 = vpack.c.b16 %v1474, %v1468
      %v2033 = vpack.c.b16 %v1475, %v1469
      %v2034 = vpack.c.b16 %v1476, %v1470
      %v2035 = vpack.c.b16 %v1477, %v1471
      %v2036 = vpack.c.b16 %v1478, %v1472
      %v2037 = vpack.c.b16 %v1485, %v1479
      %v2038 = vpack.c.b16 %v1486, %v1480
      %v2039 = vpack.c.b16 %v1487, %v1481
      %v2040 = vpack.c.b16 %v1488, %v1482
      %v2041 = vpack.c.b16 %v1489, %v1483
      %v2042 = vpack.c.b16 %v1490, %v1484
      %v2043 = vpack.c.b16 %v1497, %v1491
      %v2044 = vpack.c.b16 %v1498, %v1492
      %v2045 = vpack.c.b16 %v1499, %v1493
      %v2046 = vpack.c.b16 %v1500, %v1494
      %v2047 = vpack.c.b16 %v1501, %v1495
      %v2048 = vpack.c.b16 %v1502, %v1496
      %v2049 = vpack.c.b16 %v1509, %v1503
      %v2050 = vpack.c.b16 %v1510, %v1504
      %v2051 = vpack.c.b16 %v1511, %v1505
      %v2052 = vpack.c.b16 %v1512, %v1506
      %v2053 = vpack.c.b16 %v1513, %v1507
      %v2054 = vpack.c.b16 %v1514, %v1508
      %v2055 = vpack.c.b16 %v1521, %v1515
      %v2056 = vpack.c.b16 %v1522, %v1516
      %v2057 = vpack.c.b16 %v1523, %v1517
      %v2058 = vpack.c.b16 %v1524, %v1518
      %v2059 = vpack.c.b16 %v1525, %v1519
      %v2060 = vpack.c.b16 %v1526, %v1520
      %v2061 = vpack.c.b16 %v1533, %v1527
      %v2062 = vpack.c.b16 %v1534, %v1528
      %v2063 = vpack.c.b16 %v1535, %v1529
      %v2064 = vpack.c.b16 %v1536, %v1530
      %v2065 = vpack.c.b16 %v1537, %v1531
      %v2066 = vpack.c.b16 %v1538, %v1532
      %v2067 = vpack.c.b16 %v1545, %v1539
      %v2068 = vpack.c.b16 %v1546, %v1540
      %v2069 = vpack.c.b16 %v1547, %v1541
      %v2070 = vpack.c.b16 %v1548, %v1542
      %v2071 = vpack.c.b16 %v1549, %v1543
      %v2072 = vpack.c.b16 %v1550, %v1544
      %v2073 = vpack.c.b16 %v1557, %v1551
      %v2074 = vpack.c.b16 %v1558, %v1552
      %v2075 = vpack.c.b16 %v1559, %v1553
      %v2076 = vpack.c.b16 %v1560, %v1554
      %v2077 = vpack.c.b16 %v1561, %v1555
      %v2078 = vpack.c.b16 %v1562, %v1556
      %v2079 = vpack.c.b16 %v1569, %v1563
      %v2080 = vpack.c.b16 %v1570, %v1564
      %v2081 = vpack.c.b16 %v1571, %v1565
      %v2082 = vpack.c.b16 %v1572, %v1566
      %v2083 = vpack.c.b16 %v1573, %v1567
      %v2084 = vpack.c.b16 %v1574, %v1568
      %v2085 = vpack.c.b16 %v1581, %v1575
      %v2086 = vpack.c.b16 %v1582, %v1576
      %v2087 = vpack.c.b16 %v1583, %v1577
      %v2088 = vpack.c.b16 %v1584, %v1578
      %v2089 = vpack.c.b16 %v1585, %v1579
      %v2090 = vpack.c.b16 %v1586, %v1580
      %v2091 = vpack.c.b16 %v1593, %v1587
      %v2092 = vpack.c.b16 %v1594, %v1588
      %v2093 = vpack.c.b16 %v1595, %v1589
      %v2094 = vpack.c.b16 %v1596, %v1590
      %v2095 = vpack.c.b16 %v1597, %v1591
      %v2096 = vpack.c.b16 %v1598, %v1592
      %v2097 = vpack.c.b16 %v1605, %v1599
      %v2098 = vpack.c.b16 %v1606, %v1600
      %v2099 = vpack.c.b16 %v1607, %v1601
      %v2100 = vpack.c.b16 %v1608, %v1602
      %v2101 = vpack.c.b16 %v1609, %v1603
      %v2102 = vpack.c.b16 %v1610, %v1604
      %v2103 = vpack.c.b16 %v1617, %v1611
      %v2104 = vpack.c.b16 %v1618, %v1612
      %v2105 = vpack.c.b16 %v1619, %v1613
      %v2106 = vpack.c.b16 %v1620, %v1614
      %v2107 = vpack.c.b16 %v1621, %v1615
      %v2108 = vpack.c.b16 %v1622, %v1616
      %v2109 = vpack.c.b16 %v1629, %v1623
      %v2110 = vpack.c.b16 %v1630, %v1624
      %v2111 = vpack.c.b16 %v1631, %v1625
      %v2112 = vpack.c.b16 %v1632, %v1626
      %v2113 = vpack.c.b16 %v1633, %v1627
      %v2114 = vpack.c.b16 %v1634, %v1628
      %v2115 = vpack.c.b16 %v1641, %v1635
      %v2116 = vpack.c.b16 %v1642, %v1636
      %v2117 = vpack.c.b16 %v1643, %v1637
      %v2118 = vpack.c.b16 %v1644, %v1638
      %v2119 = vpack.c.b16 %v1645, %v1639
      %v2120 = vpack.c.b16 %v1646, %v1640
      %v2121 = vpack.c.b16 %v1653, %v1647
      %v2122 = vpack.c.b16 %v1654, %v1648
      %v2123 = vpack.c.b16 %v1655, %v1649
      %v2124 = vpack.c.b16 %v1656, %v1650
      %v2125 = vpack.c.b16 %v1657, %v1651
      %v2126 = vpack.c.b16 %v1658, %v1652
      %v2127 = vpack.c.b16 %v1665, %v1659
      %v2128 = vpack.c.b16 %v1666, %v1660
      %v2129 = vpack.c.b16 %v1667, %v1661
      %v2130 = vpack.c.b16 %v1668, %v1662
      %v2131 = vpack.c.b16 %v1669, %v1663
      %v2132 = vpack.c.b16 %v1670, %v1664
      %v2133 = vpack.c.b16 %v1677, %v1671
      %v2134 = vpack.c.b16 %v1678, %v1672
      %v2135 = vpack.c.b16 %v1679, %v1673
      %v2136 = vpack.c.b16 %v1680, %v1674
      %v2137 = vpack.c.b16 %v1681, %v1675
      %v2138 = vpack.c.b16 %v1682, %v1676
      %v2139 = vpack.c.b16 %v1689, %v1683
      %v2140 = vpack.c.b16 %v1690, %v1684
      %v2141 = vpack.c.b16 %v1691, %v1685
      %v2142 = vpack.c.b16 %v1692, %v1686
      %v2143 = vpack.c.b16 %v1693, %v1687
      %v2144 = vpack.c.b16 %v1694, %v1688
      %v2145 = vpack.c.b16 %v1701, %v1695
      %v2146 = vpack.c.b16 %v1702, %v1696
      %v2147 = vpack.c.b16 %v1703, %v1697
      %v2148 = vpack.c.b16 %v1704, %v1698
      %v2149 = vpack.c.b16 %v1705, %v1699
      %v2150 = vpack.c.b16 %v1706, %v1700
      %v2151 = vpack.c.b16 %v1713, %v1707
      %v2152 = vpack.c.b16 %v1714, %v1708
      %v2153 = vpack.c.b16 %v1715, %v1709
      %v2154 = vpack.c.b16 %v1716, %v1710
      %v2155 = vpack.c.b16 %v1717, %v1711
      %v2156 = vpack.c.b16 %v1718, %v1712
      %v2157 = vpack.c.b16 %v1725, %v1719
      %v2158 = vpack.c.b16 %v1726, %v1720
      %v2159 = vpack.c.b16 %v1727, %v1721
      %v2160 = vpack.c.b16 %v1728, %v1722
      %v2161 = vpack.c.b16 %v1729, %v1723
      %v2162 = vpack.c.b16 %v1730, %v1724
      %v2163 = vpack.c.b16 %v1737, %v1731
      %v2164 = vpack.c.b16 %v1738, %v1732
      %v2165 = vpack.c.b16 %v1739, %v1733
      %v2166 = vpack.c.b16 %v1740, %v1734
      %v2167 = vpack.c.b16 %v1741, %v1735
      %v2168 = vpack.c.b16 %v1742, %v1736
      %v2169 = vpack.c.b16 %v1749, %v1743
      %v2170 = vpack.c.b16 %v1750, %v1744
      %v2171 = vpack.c.b16 %v1751, %v1745
      %v2172 = vpack.c.b16 %v1752, %v1746
      %v2173 = vpack.c.b16 %v1753, %v1747
      %v2174 = vpack.c.b16 %v1754, %v1748
      %v2175 = vpack.c.b16 %v1761, %v1755
      %v2176 = vpack.c.b16 %v1762, %v1756
      %v2177 = vpack.c.b16 %v1763, %v1757
      %v2178 = vpack.c.b16 %v1764, %v1758
      %v2179 = vpack.c.b16 %v1765, %v1759
      %v2180 = vpack.c.b16 %v1766, %v1760
      %v2181 = vpack.c.b16 %v1773, %v1767
      %v2182 = vpack.c.b16 %v1774, %v1768
      %v2183 = vpack.c.b16 %v1775, %v1769
      %v2184 = vpack.c.b16 %v1776, %v1770
      %v2185 = vpack.c.b16 %v1777, %v1771
      %v2186 = vpack.c.b16 %v1778, %v1772
      %v2187 = vpack.c.b16 %v1785, %v1779
      %v2188 = vpack.c.b16 %v1786, %v1780
      %v2189 = vpack.c.b16 %v1787, %v1781
      %v2190 = vpack.c.b16 %v1788, %v1782
      %v2191 = vpack.c.b16 %v1789, %v1783
      %v2192 = vpack.c.b16 %v1790, %v1784
      %v2193 = vpack.c.b16 %v1797, %v1791
      %v2194 = vpack.c.b16 %v1798, %v1792
      %v2195 = vpack.c.b16 %v1799, %v1793
      %v2196 = vpack.c.b16 %v1800, %v1794
      %v2197 = vpack.c.b16 %v1801, %v1795
      %v2198 = vpack.c.b16 %v1802, %v1796
      %v2199 = vpack.c.b16 %v1809, %v1803
      %v2200 = vpack.c.b16 %v1810, %v1804
      %v2201 = vpack.c.b16 %v1811, %v1805
      %v2202 = vpack.c.b16 %v1812, %v1806
      %v2203 = vpack.c.b16 %v1813, %v1807
      %v2204 = vpack.c.b16 %v1814, %v1808
      %v2205 = vpack.c.b16 %v1821, %v1815
      %v2206 = vpack.c.b16 %v1822, %v1816
      %v2207 = vpack.c.b16 %v1823, %v1817
      %v2208 = vpack.c.b16 %v1824, %v1818
      %v2209 = vpack.c.b16 %v1825, %v1819
      %v2210 = vpack.c.b16 %v1826, %v1820
      %v2211 = vpack.c.b16 %v1833, %v1827
      %v2212 = vpack.c.b16 %v1834, %v1828
      %v2213 = vpack.c.b16 %v1835, %v1829
      %v2214 = vpack.c.b16 %v1836, %v1830
      %v2215 = vpack.c.b16 %v1837, %v1831
      %v2216 = vpack.c.b16 %v1838, %v1832
      %v2217 = vpack.c.b16 %v1845, %v1839
      %v2218 = vpack.c.b16 %v1846, %v1840
      %v2219 = vpack.c.b16 %v1847, %v1841
      %v2220 = vpack.c.b16 %v1848, %v1842
      %v2221 = vpack.c.b16 %v1849, %v1843
      %v2222 = vpack.c.b16 %v1850, %v1844
      %v2223 = vpack.c.b16 %v1857, %v1851
      %v2224 = vpack.c.b16 %v1858, %v1852
      %v2225 = vpack.c.b16 %v1859, %v1853
      %v2226 = vpack.c.b16 %v1860, %v1854
      %v2227 = vpack.c.b16 %v1861, %v1855
      %v2228 = vpack.c.b16 %v1862, %v1856
      %v2229 = vpack.c.b16 %v1869, %v1863
      %v2230 = vpack.c.b16 %v1870, %v1864
      %v2231 = vpack.c.b16 %v1871, %v1865
      %v2232 = vpack.c.b16 %v1872, %v1866
      %v2233 = vpack.c.b16 %v1873, %v1867
      %v2234 = vpack.c.b16 %v1874, %v1868
      %v2235 = vpack.c.b16 %v1881, %v1875
      %v2236 = vpack.c.b16 %v1882, %v1876
      %v2237 = vpack.c.b16 %v1883, %v1877
      %v2238 = vpack.c.b16 %v1884, %v1878
      %v2239 = vpack.c.b16 %v1885, %v1879
      %v2240 = vpack.c.b16 %v1886, %v1880
      %v2241 = vpack.c.b16 %v1893, %v1887
      %v2242 = vpack.c.b16 %v1894, %v1888
      %v2243 = vpack.c.b16 %v1895, %v1889
      %v2244 = vpack.c.b16 %v1896, %v1890
      %v2245 = vpack.c.b16 %v1897, %v1891
      %v2246 = vpack.c.b16 %v1898, %v1892
      %v2247 = vpack.c.b16 %v1905, %v1899
      %v2248 = vpack.c.b16 %v1906, %v1900
      %v2249 = vpack.c.b16 %v1907, %v1901
      %v2250 = vpack.c.b16 %v1908, %v1902
      %v2251 = vpack.c.b16 %v1909, %v1903
      %v2252 = vpack.c.b16 %v1910, %v1904
      %v2253 = vpack.c.b16 %v1917, %v1911
      %v2254 = vpack.c.b16 %v1918, %v1912
      %v2255 = vpack.c.b16 %v1919, %v1913
      %v2256 = vpack.c.b16 %v1920, %v1914
      %v2257 = vpack.c.b16 %v1921, %v1915
      %v2258 = vpack.c.b16 %v1922, %v1916
      %v2259 = vpack.c.b16 %v1929, %v1923
      %v2260 = vpack.c.b16 %v1930, %v1924
      %v2261 = vpack.c.b16 %v1931, %v1925
      %v2262 = vpack.c.b16 %v1932, %v1926
      %v2263 = vpack.c.b16 %v1933, %v1927
      %v2264 = vpack.c.b16 %v1934, %v1928
      %v2265 = vpack.c.b16 %v1941, %v1935
      %v2266 = vpack.c.b16 %v1942, %v1936
      %v2267 = vpack.c.b16 %v1943, %v1937
      %v2268 = vpack.c.b16 %v1944, %v1938
      %v2269 = vpack.c.b16 %v1945, %v1939
      %v2270 = vpack.c.b16 %v1946, %v1940
      %v2271 = vpack.c.b16 %v1953, %v1947
      %v2272 = vpack.c.b16 %v1954, %v1948
      %v2273 = vpack.c.b16 %v1955, %v1949
      %v2274 = vpack.c.b16 %v1956, %v1950
      %v2275 = vpack.c.b16 %v1957, %v1951
      %v2276 = vpack.c.b16 %v1958, %v1952
      %v2277 = vpack.c.b16 %v1965, %v1959
      %v2278 = vpack.c.b16 %v1966, %v1960
      %v2279 = vpack.c.b16 %v1967, %v1961
      %v2280 = vpack.c.b16 %v1968, %v1962
      %v2281 = vpack.c.b16 %v1969, %v1963
      %v2282 = vpack.c.b16 %v1970, %v1964
      %v2283 = vpack.c.b16 %v1977, %v1971
      %v2284 = vpack.c.b16 %v1978, %v1972
      %v2285 = vpack.c.b16 %v1979, %v1973
      %v2286 = vpack.c.b16 %v1980, %v1974
      %v2287 = vpack.c.b16 %v1981, %v1975
      %v2288 = vpack.c.b16 %v1982, %v1976
      %v2289 = vpack.c.b16 %v1989, %v1983
      %v2290 = vpack.c.b16 %v1990, %v1984
      %v2291 = vpack.c.b16 %v1991, %v1985
      %v2292 = vpack.c.b16 %v1992, %v1986
      %v2293 = vpack.c.b16 %v1993, %v1987
      %v2294 = vpack.c.b16 %v1994, %v1988
      %v2295 = vpack.c.b16 %v2001, %v1995
      %v2296 = vpack.c.b16 %v2002, %v1996
      %v2297 = vpack.c.b16 %v2003, %v1997
      %v2298 = vpack.c.b16 %v2004, %v1998
      %v2299 = vpack.c.b16 %v2005, %v1999
      %v2300 = vpack.c.b16 %v2006, %v2000
      %v2301 = vpack.c.b16 %v2013, %v2007
      %v2302 = vpack.c.b16 %v2014, %v2008
      %v2303 = vpack.c.b16 %v2015, %v2009
      %v2304 = vpack.c.b16 %v2016, %v2010
      %v2305 = vpack.c.b16 %v2017, %v2011
      %v2306 = vpack.c.b16 %v2018, %v2012
      %2595 = vmatprep.subr.bf16.mxu0 %v2020
      %2596 = vmatpush1.bf16.msra.mxu0 %v2019
      %2597 = vmatprep.subr.bf16.mxu0 %v2026
      %2598 = vmatpush1.bf16.msra.mxu0 %v2025
      %2599 = vmatprep.subr.bf16.mxu0 %v2032
      %2600 = vmatpush1.bf16.msra.mxu0 %v2031
      %2601 = vmatprep.subr.bf16.mxu0 %v2038
      %2602 = vmatpush1.bf16.msra.mxu0 %v2037
      %2603 = vmatprep.subr.bf16.mxu0 %v2044
      %2604 = vmatpush1.bf16.msra.mxu0 %v2043
      %2605 = vmatprep.subr.bf16.mxu0 %v2050
      %2606 = vmatpush1.bf16.msra.mxu0 %v2049
      %2607 = vmatprep.subr.bf16.mxu0 %v2056
      %2608 = vmatpush1.bf16.msra.mxu0 %v2055
      %2609 = vmatprep.subr.bf16.mxu0 %v2062
      %2610 = vmatpush1.bf16.msra.mxu0 %v2061
      %2611 = vmatprep.subr.bf16.mxu0 %v2068
      %2612 = vmatpush1.bf16.msra.mxu0 %v2067
      %2613 = vmatprep.subr.bf16.mxu0 %v2074
      %2614 = vmatpush1.bf16.msra.mxu0 %v2073
      %2615 = vmatprep.subr.bf16.mxu0 %v2080
      %2616 = vmatpush1.bf16.msra.mxu0 %v2079
      %2617 = vmatprep.subr.bf16.mxu0 %v2086
      %2618 = vmatpush1.bf16.msra.mxu0 %v2085
      %2619 = vmatprep.subr.bf16.mxu0 %v2092
      %2620 = vmatpush1.bf16.msra.mxu0 %v2091
      %2621 = vmatprep.subr.bf16.mxu0 %v2098
      %2622 = vmatpush1.bf16.msra.mxu0 %v2097
      %2623 = vmatprep.subr.bf16.mxu0 %v2104
      %2624 = vmatpush1.bf16.msra.mxu0 %v2103
      %2625 = vmatprep.subr.bf16.mxu0 %v2110
      %2626 = vmatpush1.bf16.msra.mxu0 %v2109
      %2627 = vmatprep.mubr.bf16.mxu0 %v830
      %2628 = vmatmul.mubr.bf16.gmra.mrb[0].mxu0 %v829
      %v2629 = vpop.f32.mrb[0].mxu0
      %v2630 = vadd.f32 %v1128, %v2629
      %v2631 = vpop.f32.mrb[0].mxu0
      %v2632 = vadd.f32 %v1132, %v2631
      %v2633 = vpop.f32.mrb[0].mxu0
      %v2634 = vpop.f32.mrb[0].mxu0
      %2635 = vdwg.mxu0
      %2636 = vmatprep.subr.bf16.mxu0 %v2116
      %2637 = vmatpush1.bf16.msra.mxu0 %v2115
      %2638 = vmatprep.subr.bf16.mxu0 %v2122
      %2639 = vmatpush1.bf16.msra.mxu0 %v2121
      %2640 = vmatprep.subr.bf16.mxu0 %v2128
      %2641 = vmatpush1.bf16.msra.mxu0 %v2127
      %2642 = vmatprep.subr.bf16.mxu0 %v2134
      %2643 = vmatpush1.bf16.msra.mxu0 %v2133
      %2644 = vmatprep.subr.bf16.mxu0 %v2140
      %2645 = vmatpush1.bf16.msra.mxu0 %v2139
      %2646 = vmatprep.subr.bf16.mxu0 %v2146
      %2647 = vmatpush1.bf16.msra.mxu0 %v2145
      %2648 = vmatprep.subr.bf16.mxu0 %v2152
      %2649 = vmatpush1.bf16.msra.mxu0 %v2151
      %2650 = vmatprep.subr.bf16.mxu0 %v2158
      %2651 = vmatpush1.bf16.msra.mxu0 %v2157
      %2652 = vmatprep.subr.bf16.mxu0 %v2164
      %2653 = vmatpush1.bf16.msra.mxu0 %v2163
      %2654 = vmatprep.subr.bf16.mxu0 %v2170
      %2655 = vmatpush1.bf16.msra.mxu0 %v2169
      %2656 = vmatprep.subr.bf16.mxu0 %v2176
      %2657 = vmatpush1.bf16.msra.mxu0 %v2175
      %2658 = vmatprep.subr.bf16.mxu0 %v2182
      %2659 = vmatpush1.bf16.msra.mxu0 %v2181
      %2660 = vmatprep.subr.bf16.mxu0 %v2188
      %2661 = vmatpush1.bf16.msra.mxu0 %v2187
      %2662 = vmatprep.subr.bf16.mxu0 %v2194
      %2663 = vmatpush1.bf16.msra.mxu0 %v2193
      %2664 = vmatprep.subr.bf16.mxu0 %v2200
      %2665 = vmatpush1.bf16.msra.mxu0 %v2199
      %2666 = vmatprep.subr.bf16.mxu0 %v2206
      %2667 = vmatpush1.bf16.msra.mxu0 %v2205
      %2668 = vmatprep.mubr.bf16.mxu0 %v832
      %2669 = vmatmul.mubr.bf16.gmra.mrb[0].mxu0 %v831
      %v2670 = vpop.f32.mrb[0].mxu0
      %v2671 = vadd.f32 %v2630, %v2670
      %v2672 = vpop.f32.mrb[0].mxu0
      %v2673 = vadd.f32 %v2632, %v2672
      %v2674 = vpop.f32.mrb[0].mxu0
      %v2675 = vpop.f32.mrb[0].mxu0
      %2676 = vdwg.mxu0
      %2677 = vmatprep.subr.bf16.mxu0 %v2212
      %2678 = vmatpush1.bf16.msra.mxu0 %v2211
      %2679 = vmatprep.subr.bf16.mxu0 %v2218
      %2680 = vmatpush1.bf16.msra.mxu0 %v2217
      %2681 = vmatprep.subr.bf16.mxu0 %v2224
      %2682 = vmatpush1.bf16.msra.mxu0 %v2223
      %2683 = vmatprep.subr.bf16.mxu0 %v2230
      %2684 = vmatpush1.bf16.msra.mxu0 %v2229
      %2685 = vmatprep.subr.bf16.mxu0 %v2236
      %2686 = vmatpush1.bf16.msra.mxu0 %v2235
      %2687 = vmatprep.subr.bf16.mxu0 %v2242
      %2688 = vmatpush1.bf16.msra.mxu0 %v2241
      %2689 = vmatprep.subr.bf16.mxu0 %v2248
      %2690 = vmatpush1.bf16.msra.mxu0 %v2247
      %2691 = vmatprep.subr.bf16.mxu0 %v2254
      %2692 = vmatpush1.bf16.msra.mxu0 %v2253
      %2693 = vmatprep.subr.bf16.mxu0 %v2260
      %2694 = vmatpush1.bf16.msra.mxu0 %v2259
      %2695 = vmatprep.subr.bf16.mxu0 %v2266
      %2696 = vmatpush1.bf16.msra.mxu0 %v2265
      %2697 = vmatprep.subr.bf16.mxu0 %v2272
      %2698 = vmatpush1.bf16.msra.mxu0 %v2271
      %2699 = vmatprep.subr.bf16.mxu0 %v2278
      %2700 = vmatpush1.bf16.msra.mxu0 %v2277
      %2701 = vmatprep.subr.bf16.mxu0 %v2284
      %2702 = vmatpush1.bf16.msra.mxu0 %v2283
      %2703 = vmatprep.subr.bf16.mxu0 %v2290
      %2704 = vmatpush1.bf16.msra.mxu0 %v2289
      %2705 = vmatprep.subr.bf16.mxu0 %v2296
      %2706 = vmatpush1.bf16.msra.mxu0 %v2295
      %2707 = vmatprep.subr.bf16.mxu0 %v2302
      %2708 = vmatpush1.bf16.msra.mxu0 %v2301
      %2709 = vmatprep.mubr.bf16.mxu0 %v834
      %2710 = vmatmul.mubr.bf16.gmra.mrb[0].mxu0 %v833
      %v2711 = vpop.f32.mrb[0].mxu0
      %v2712 = vadd.f32 %v2671, %v2711
      %v2713 = vpop.f32.mrb[0].mxu0
      %v2714 = vadd.f32 %v2673, %v2713
      %v2715 = vpop.f32.mrb[0].mxu0
      %v2716 = vpop.f32.mrb[0].mxu0
      %2717 = vdwg.mxu0
      %2718 = vmatprep.subr.bf16.mxu0 %v2022
      %2719 = vmatpush1.bf16.msra.mxu0 %v2021
      %2720 = vmatprep.subr.bf16.mxu0 %v2028
      %2721 = vmatpush1.bf16.msra.mxu0 %v2027
      %2722 = vmatprep.subr.bf16.mxu0 %v2034
      %2723 = vmatpush1.bf16.msra.mxu0 %v2033
      %2724 = vmatprep.subr.bf16.mxu0 %v2040
      %2725 = vmatpush1.bf16.msra.mxu0 %v2039
      %2726 = vmatprep.subr.bf16.mxu0 %v2046
      %2727 = vmatpush1.bf16.msra.mxu0 %v2045
      %2728 = vmatprep.subr.bf16.mxu0 %v2052
      %2729 = vmatpush1.bf16.msra.mxu0 %v2051
      %2730 = vmatprep.subr.bf16.mxu0 %v2058
      %2731 = vmatpush1.bf16.msra.mxu0 %v2057
      %2732 = vmatprep.subr.bf16.mxu0 %v2064
      %2733 = vmatpush1.bf16.msra.mxu0 %v2063
      %2734 = vmatprep.subr.bf16.mxu0 %v2070
      %2735 = vmatpush1.bf16.msra.mxu0 %v2069
      %2736 = vmatprep.subr.bf16.mxu0 %v2076
      %2737 = vmatpush1.bf16.msra.mxu0 %v2075
      %2738 = vmatprep.subr.bf16.mxu0 %v2082
      %2739 = vmatpush1.bf16.msra.mxu0 %v2081
      %2740 = vmatprep.subr.bf16.mxu0 %v2088
      %2741 = vmatpush1.bf16.msra.mxu0 %v2087
      %2742 = vmatprep.subr.bf16.mxu0 %v2094
      %2743 = vmatpush1.bf16.msra.mxu0 %v2093
      %2744 = vmatprep.subr.bf16.mxu0 %v2100
      %2745 = vmatpush1.bf16.msra.mxu0 %v2099
      %2746 = vmatprep.subr.bf16.mxu0 %v2106
      %2747 = vmatpush1.bf16.msra.mxu0 %v2105
      %2748 = vmatprep.subr.bf16.mxu0 %v2112
      %2749 = vmatpush1.bf16.msra.mxu0 %v2111
      %2750 = vmatprep.mubr.bf16.mxu0 %v830
      %2751 = vmatmul.mubr.bf16.gmra.mrb[0].mxu0 %v829
      %v2752 = vpop.f32.mrb[0].mxu0
      %v2753 = vadd.f32 %v1136, %v2752
      %v2754 = vpop.f32.mrb[0].mxu0
      %v2755 = vadd.f32 %v1140, %v2754
      %v2756 = vpop.f32.mrb[0].mxu0
      %v2757 = vpop.f32.mrb[0].mxu0
      %2758 = vdwg.mxu0
      %2759 = vmatprep.subr.bf16.mxu0 %v2118
      %2760 = vmatpush1.bf16.msra.mxu0 %v2117
      %2761 = vmatprep.subr.bf16.mxu0 %v2124
      %2762 = vmatpush1.bf16.msra.mxu0 %v2123
      %2763 = vmatprep.subr.bf16.mxu0 %v2130
      %2764 = vmatpush1.bf16.msra.mxu0 %v2129
      %2765 = vmatprep.subr.bf16.mxu0 %v2136
      %2766 = vmatpush1.bf16.msra.mxu0 %v2135
      %2767 = vmatprep.subr.bf16.mxu0 %v2142
      %2768 = vmatpush1.bf16.msra.mxu0 %v2141
      %2769 = vmatprep.subr.bf16.mxu0 %v2148
      %2770 = vmatpush1.bf16.msra.mxu0 %v2147
      %2771 = vmatprep.subr.bf16.mxu0 %v2154
      %2772 = vmatpush1.bf16.msra.mxu0 %v2153
      %2773 = vmatprep.subr.bf16.mxu0 %v2160
      %2774 = vmatpush1.bf16.msra.mxu0 %v2159
      %2775 = vmatprep.subr.bf16.mxu0 %v2166
      %2776 = vmatpush1.bf16.msra.mxu0 %v2165
      %2777 = vmatprep.subr.bf16.mxu0 %v2172
      %2778 = vmatpush1.bf16.msra.mxu0 %v2171
      %2779 = vmatprep.subr.bf16.mxu0 %v2178
      %2780 = vmatpush1.bf16.msra.mxu0 %v2177
      %2781 = vmatprep.subr.bf16.mxu0 %v2184
      %2782 = vmatpush1.bf16.msra.mxu0 %v2183
      %2783 = vmatprep.subr.bf16.mxu0 %v2190
      %2784 = vmatpush1.bf16.msra.mxu0 %v2189
      %2785 = vmatprep.subr.bf16.mxu0 %v2196
      %2786 = vmatpush1.bf16.msra.mxu0 %v2195
      %2787 = vmatprep.subr.bf16.mxu0 %v2202
      %2788 = vmatpush1.bf16.msra.mxu0 %v2201
      %2789 = vmatprep.subr.bf16.mxu0 %v2208
      %2790 = vmatpush1.bf16.msra.mxu0 %v2207
      %2791 = vmatprep.mubr.bf16.mxu0 %v832
      %2792 = vmatmul.mubr.bf16.gmra.mrb[0].mxu0 %v831
      %v2793 = vpop.f32.mrb[0].mxu0
      %v2794 = vadd.f32 %v2753, %v2793
      %v2795 = vpop.f32.mrb[0].mxu0
      %v2796 = vadd.f32 %v2755, %v2795
      %v2797 = vpop.f32.mrb[0].mxu0
      %v2798 = vpop.f32.mrb[0].mxu0
      %2799 = vdwg.mxu0
      %2800 = vmatprep.subr.bf16.mxu0 %v2214
      %2801 = vmatpush1.bf16.msra.mxu0 %v2213
      %2802 = vmatprep.subr.bf16.mxu0 %v2220
      %2803 = vmatpush1.bf16.msra.mxu0 %v2219
      %2804 = vmatprep.subr.bf16.mxu0 %v2226
      %2805 = vmatpush1.bf16.msra.mxu0 %v2225
      %2806 = vmatprep.subr.bf16.mxu0 %v2232
      %2807 = vmatpush1.bf16.msra.mxu0 %v2231
      %2808 = vmatprep.subr.bf16.mxu0 %v2238
      %2809 = vmatpush1.bf16.msra.mxu0 %v2237
      %2810 = vmatprep.subr.bf16.mxu0 %v2244
      %2811 = vmatpush1.bf16.msra.mxu0 %v2243
      %2812 = vmatprep.subr.bf16.mxu0 %v2250
      %2813 = vmatpush1.bf16.msra.mxu0 %v2249
      %2814 = vmatprep.subr.bf16.mxu0 %v2256
      %2815 = vmatpush1.bf16.msra.mxu0 %v2255
      %2816 = vmatprep.subr.bf16.mxu0 %v2262
      %2817 = vmatpush1.bf16.msra.mxu0 %v2261
      %2818 = vmatprep.subr.bf16.mxu0 %v2268
      %2819 = vmatpush1.bf16.msra.mxu0 %v2267
      %2820 = vmatprep.subr.bf16.mxu0 %v2274
      %2821 = vmatpush1.bf16.msra.mxu0 %v2273
      %2822 = vmatprep.subr.bf16.mxu0 %v2280
      %2823 = vmatpush1.bf16.msra.mxu0 %v2279
      %2824 = vmatprep.subr.bf16.mxu0 %v2286
      %2825 = vmatpush1.bf16.msra.mxu0 %v2285
      %2826 = vmatprep.subr.bf16.mxu0 %v2292
      %2827 = vmatpush1.bf16.msra.mxu0 %v2291
      %2828 = vmatprep.subr.bf16.mxu0 %v2298
      %2829 = vmatpush1.bf16.msra.mxu0 %v2297
      %2830 = vmatprep.subr.bf16.mxu0 %v2304
      %2831 = vmatpush1.bf16.msra.mxu0 %v2303
      %2832 = vmatprep.mubr.bf16.mxu0 %v834
      %2833 = vmatmul.mubr.bf16.gmra.mrb[0].mxu0 %v833
      %v2834 = vpop.f32.mrb[0].mxu0
      %v2835 = vadd.f32 %v2794, %v2834
      %v2836 = vpop.f32.mrb[0].mxu0
      %v2837 = vadd.f32 %v2796, %v2836
      %v2838 = vpop.f32.mrb[0].mxu0
      %v2839 = vpop.f32.mrb[0].mxu0
      %2840 = vdwg.mxu0
      %2841 = vmatprep.subr.bf16.mxu0 %v2024
      %2842 = vmatpush1.bf16.msra.mxu0 %v2023
      %2843 = vmatprep.subr.bf16.mxu0 %v2030
      %2844 = vmatpush1.bf16.msra.mxu0 %v2029
      %2845 = vmatprep.subr.bf16.mxu0 %v2036
      %2846 = vmatpush1.bf16.msra.mxu0 %v2035
      %2847 = vmatprep.subr.bf16.mxu0 %v2042
      %2848 = vmatpush1.bf16.msra.mxu0 %v2041
      %2849 = vmatprep.subr.bf16.mxu0 %v2048
      %2850 = vmatpush1.bf16.msra.mxu0 %v2047
      %2851 = vmatprep.subr.bf16.mxu0 %v2054
      %2852 = vmatpush1.bf16.msra.mxu0 %v2053
      %2853 = vmatprep.subr.bf16.mxu0 %v2060
      %2854 = vmatpush1.bf16.msra.mxu0 %v2059
      %2855 = vmatprep.subr.bf16.mxu0 %v2066
      %2856 = vmatpush1.bf16.msra.mxu0 %v2065
      %2857 = vmatprep.subr.bf16.mxu0 %v2072
      %2858 = vmatpush1.bf16.msra.mxu0 %v2071
      %2859 = vmatprep.subr.bf16.mxu0 %v2078
      %2860 = vmatpush1.bf16.msra.mxu0 %v2077
      %2861 = vmatprep.subr.bf16.mxu0 %v2084
      %2862 = vmatpush1.bf16.msra.mxu0 %v2083
      %2863 = vmatprep.subr.bf16.mxu0 %v2090
      %2864 = vmatpush1.bf16.msra.mxu0 %v2089
      %2865 = vmatprep.subr.bf16.mxu0 %v2096
      %2866 = vmatpush1.bf16.msra.mxu0 %v2095
      %2867 = vmatprep.subr.bf16.mxu0 %v2102
      %2868 = vmatpush1.bf16.msra.mxu0 %v2101
      %2869 = vmatprep.subr.bf16.mxu0 %v2108
      %2870 = vmatpush1.bf16.msra.mxu0 %v2107
      %2871 = vmatprep.subr.bf16.mxu0 %v2114
      %2872 = vmatpush1.bf16.msra.mxu0 %v2113
      %2873 = vmatprep.mubr.bf16.mxu0 %v830
      %2874 = vmatmul.mubr.bf16.gmra.mrb[0].mxu0 %v829
      %v2875 = vpop.f32.mrb[0].mxu0
      %v2876 = vadd.f32 %v1144, %v2875
      %v2877 = vpop.f32.mrb[0].mxu0
      %v2878 = vadd.f32 %v1148, %v2877
      %v2879 = vpop.f32.mrb[0].mxu0
      %v2880 = vpop.f32.mrb[0].mxu0
      %2881 = vdwg.mxu0
      %2882 = vmatprep.subr.bf16.mxu0 %v2120
      %2883 = vmatpush1.bf16.msra.mxu0 %v2119
      %2884 = vmatprep.subr.bf16.mxu0 %v2126
      %2885 = vmatpush1.bf16.msra.mxu0 %v2125
      %2886 = vmatprep.subr.bf16.mxu0 %v2132
      %2887 = vmatpush1.bf16.msra.mxu0 %v2131
      %2888 = vmatprep.subr.bf16.mxu0 %v2138
      %2889 = vmatpush1.bf16.msra.mxu0 %v2137
      %2890 = vmatprep.subr.bf16.mxu0 %v2144
      %2891 = vmatpush1.bf16.msra.mxu0 %v2143
      %2892 = vmatprep.subr.bf16.mxu0 %v2150
      %2893 = vmatpush1.bf16.msra.mxu0 %v2149
      %2894 = vmatprep.subr.bf16.mxu0 %v2156
      %2895 = vmatpush1.bf16.msra.mxu0 %v2155
      %2896 = vmatprep.subr.bf16.mxu0 %v2162
      %2897 = vmatpush1.bf16.msra.mxu0 %v2161
      %2898 = vmatprep.subr.bf16.mxu0 %v2168
      %2899 = vmatpush1.bf16.msra.mxu0 %v2167
      %2900 = vmatprep.subr.bf16.mxu0 %v2174
      %2901 = vmatpush1.bf16.msra.mxu0 %v2173
      %2902 = vmatprep.subr.bf16.mxu0 %v2180
      %2903 = vmatpush1.bf16.msra.mxu0 %v2179
      %2904 = vmatprep.subr.bf16.mxu0 %v2186
      %2905 = vmatpush1.bf16.msra.mxu0 %v2185
      %2906 = vmatprep.subr.bf16.mxu0 %v2192
      %2907 = vmatpush1.bf16.msra.mxu0 %v2191
      %2908 = vmatprep.subr.bf16.mxu0 %v2198
      %2909 = vmatpush1.bf16.msra.mxu0 %v2197
      %2910 = vmatprep.subr.bf16.mxu0 %v2204
      %2911 = vmatpush1.bf16.msra.mxu0 %v2203
      %2912 = vmatprep.subr.bf16.mxu0 %v2210
      %2913 = vmatpush1.bf16.msra.mxu0 %v2209
      %2914 = vmatprep.mubr.bf16.mxu0 %v832
      %2915 = vmatmul.mubr.bf16.gmra.mrb[0].mxu0 %v831
      %v2916 = vpop.f32.mrb[0].mxu0
      %v2917 = vadd.f32 %v2876, %v2916
      %v2918 = vpop.f32.mrb[0].mxu0
      %v2919 = vadd.f32 %v2878, %v2918
      %v2920 = vpop.f32.mrb[0].mxu0
      %v2921 = vpop.f32.mrb[0].mxu0
      %2922 = vdwg.mxu0
      %2923 = vmatprep.subr.bf16.mxu0 %v2216
      %2924 = vmatpush1.bf16.msra.mxu0 %v2215
      %2925 = vmatprep.subr.bf16.mxu0 %v2222
      %2926 = vmatpush1.bf16.msra.mxu0 %v2221
      %2927 = vmatprep.subr.bf16.mxu0 %v2228
      %2928 = vmatpush1.bf16.msra.mxu0 %v2227
      %2929 = vmatprep.subr.bf16.mxu0 %v2234
      %2930 = vmatpush1.bf16.msra.mxu0 %v2233
      %2931 = vmatprep.subr.bf16.mxu0 %v2240
      %2932 = vmatpush1.bf16.msra.mxu0 %v2239
      %2933 = vmatprep.subr.bf16.mxu0 %v2246
      %2934 = vmatpush1.bf16.msra.mxu0 %v2245
      %2935 = vmatprep.subr.bf16.mxu0 %v2252
      %2936 = vmatpush1.bf16.msra.mxu0 %v2251
      %2937 = vmatprep.subr.bf16.mxu0 %v2258
      %2938 = vmatpush1.bf16.msra.mxu0 %v2257
      %2939 = vmatprep.subr.bf16.mxu0 %v2264
      %2940 = vmatpush1.bf16.msra.mxu0 %v2263
      %2941 = vmatprep.subr.bf16.mxu0 %v2270
      %2942 = vmatpush1.bf16.msra.mxu0 %v2269
      %2943 = vmatprep.subr.bf16.mxu0 %v2276
      %2944 = vmatpush1.bf16.msra.mxu0 %v2275
      %2945 = vmatprep.subr.bf16.mxu0 %v2282
      %2946 = vmatpush1.bf16.msra.mxu0 %v2281
      %2947 = vmatprep.subr.bf16.mxu0 %v2288
      %2948 = vmatpush1.bf16.msra.mxu0 %v2287
      %2949 = vmatprep.subr.bf16.mxu0 %v2294
      %2950 = vmatpush1.bf16.msra.mxu0 %v2293
      %2951 = vmatprep.subr.bf16.mxu0 %v2300
      %2952 = vmatpush1.bf16.msra.mxu0 %v2299
      %2953 = vmatprep.subr.bf16.mxu0 %v2306
      %2954 = vmatpush1.bf16.msra.mxu0 %v2305
      %2955 = vmatprep.mubr.bf16.mxu0 %v834
      %2956 = vmatmul.mubr.bf16.gmra.mrb[0].mxu0 %v833
      %v2957 = vpop.f32.mrb[0].mxu0
      %v2958 = vadd.f32 %v2917, %v2957
      %v2959 = vpop.f32.mrb[0].mxu0
      %v2960 = vadd.f32 %v2919, %v2959
      %v2961 = vpop.f32.mrb[0].mxu0
      %v2962 = vpop.f32.mrb[0].mxu0
      %2963 = vdwg.mxu0
      %v2964 = vtanh.pop %v2712
      %v2965 = vtanh.pop %v2714
      %v2966 = vtanh.pop %v2835
      %v2967 = vtanh.pop %v2837
      %v2968 = vtanh.pop %v2958
      %v2969 = vtanh.pop %v2960
      %v2970 = vpack.c.bf16 %v2964, %v2964
      %v2971 = vpack.c.bf16 %v2965, %v2965
      %v2972 = vpack.c.bf16 %v2966, %v2966
      %v2973 = vpack.c.bf16 %v2967, %v2967
      %v2974 = vpack.c.bf16 %v2968, %v2968
      %v2975 = vpack.c.bf16 %v2969, %v2969
      %v2976 = vld [vmem:[#allocation9] sm:$0xff]
      %v2977 = vld [vmem:[#allocation9 + $0x8] sm:$0xff]
      %v2978 = vld [vmem:[#allocation9 + $0x10] sm:$0xff]
      %v2979 = vld [vmem:[#allocation9 + $0x18] sm:$0xff]
      %v2980 = vld [vmem:[#allocation9 + $0x20] sm:$0xff]
      %v2981 = vld [vmem:[#allocation9 + $0x28] sm:$0xff]
      %v2982 = vld [vmem:[#allocation9 + $0x30] sm:$0xff]
      %v2983 = vld [vmem:[#allocation9 + $0x38] sm:$0xff]
      %v2984 = vld [vmem:[#allocation9 + $0x40] sm:$0xff]
      %v2985 = vld [vmem:[#allocation9 + $0x48] sm:$0xff]
      %v2986 = vld [vmem:[#allocation9 + $0x50] sm:$0xff]
      %v2987 = vld [vmem:[#allocation9 + $0x58] sm:$0xff]
      %v2988 = vld [vmem:[#allocation9 + $0x60] sm:$0xff]
      %v2989 = vld [vmem:[#allocation9 + $0x68] sm:$0xff]
      %v2990 = vld [vmem:[#allocation9 + $0x70] sm:$0xff]
      %v2991 = vld [vmem:[#allocation9 + $0x78] sm:$0xff]
      %v2992 = vld [vmem:[#allocation9 + $0x80] sm:$0xff]
      %v2993 = vld [vmem:[#allocation9 + $0x88] sm:$0xff]
      %v2994 = vld [vmem:[#allocation9 + $0x90] sm:$0xff]
      %v2995 = vld [vmem:[#allocation9 + $0x98] sm:$0xff]
      %v2996 = vld [vmem:[#allocation9 + $0xa0] sm:$0xff]
      %v2997 = vld [vmem:[#allocation9 + $0xa8] sm:$0xff]
      %v2998 = vld [vmem:[#allocation9 + $0xb0] sm:$0xff]
      %v2999 = vld [vmem:[#allocation9 + $0xb8] sm:$0xff]
      %v3000 = vld [vmem:[#allocation9 + $0xc0] sm:$0xff]
      %v3001 = vld [vmem:[#allocation9 + $0xc8] sm:$0xff]
      %v3002 = vld [vmem:[#allocation9 + $0xd0] sm:$0xff]
      %v3003 = vld [vmem:[#allocation9 + $0xd8] sm:$0xff]
      %v3004 = vld [vmem:[#allocation9 + $0xe0] sm:$0xff]
      %v3005 = vld [vmem:[#allocation9 + $0xe8] sm:$0xff]
      %v3006 = vld [vmem:[#allocation9 + $0xf0] sm:$0xff]
      %v3007 = vld [vmem:[#allocation9 + $0xf8] sm:$0xff]
      %v3008 = vld [vmem:[#allocation9 + $0x100] sm:$0xff]
      %v3009 = vld [vmem:[#allocation9 + $0x108] sm:$0xff]
      %v3010 = vld [vmem:[#allocation9 + $0x110] sm:$0xff]
      %v3011 = vld [vmem:[#allocation9 + $0x118] sm:$0xff]
      %v3012 = vld [vmem:[#allocation9 + $0x120] sm:$0xff]
      %v3013 = vld [vmem:[#allocation9 + $0x128] sm:$0xff]
      %v3014 = vld [vmem:[#allocation9 + $0x130] sm:$0xff]
      %v3015 = vld [vmem:[#allocation9 + $0x138] sm:$0xff]
      %v3016 = vld [vmem:[#allocation9 + $0x140] sm:$0xff]
      %v3017 = vld [vmem:[#allocation9 + $0x148] sm:$0xff]
      %v3018 = vld [vmem:[#allocation9 + $0x150] sm:$0xff]
      %v3019 = vld [vmem:[#allocation9 + $0x158] sm:$0xff]
      %v3020 = vld [vmem:[#allocation9 + $0x160] sm:$0xff]
      %v3021 = vld [vmem:[#allocation9 + $0x168] sm:$0xff]
      %v3022 = vld [vmem:[#allocation9 + $0x170] sm:$0xff]
      %v3023 = vld [vmem:[#allocation9 + $0x178] sm:$0xff]
      %v3024 = vld [vmem:[#allocation9 + $0x180] sm:$0xff]
      %v3025 = vld [vmem:[#allocation9 + $0x188] sm:$0xff]
      %v3026 = vld [vmem:[#allocation9 + $0x190] sm:$0xff]
      %v3027 = vld [vmem:[#allocation9 + $0x198] sm:$0xff]
      %v3028 = vld [vmem:[#allocation9 + $0x1a0] sm:$0xff]
      %v3029 = vld [vmem:[#allocation9 + $0x1a8] sm:$0xff]
      %v3030 = vld [vmem:[#allocation9 + $0x1b0] sm:$0xff]
      %v3031 = vld [vmem:[#allocation9 + $0x1b8] sm:$0xff]
      %v3032 = vld [vmem:[#allocation9 + $0x1c0] sm:$0xff]
      %v3033 = vld [vmem:[#allocation9 + $0x1c8] sm:$0xff]
      %v3034 = vld [vmem:[#allocation9 + $0x1d0] sm:$0xff]
      %v3035 = vld [vmem:[#allocation9 + $0x1d8] sm:$0xff]
      %v3036 = vld [vmem:[#allocation9 + $0x1e0] sm:$0xff]
      %v3037 = vld [vmem:[#allocation9 + $0x1e8] sm:$0xff]
      %v3038 = vld [vmem:[#allocation9 + $0x1f0] sm:$0xff]
      %v3039 = vld [vmem:[#allocation9 + $0x1f8] sm:$0xff]
      %v3040 = vld [vmem:[#allocation9 + $0x200] sm:$0xff]
      %v3041 = vld [vmem:[#allocation9 + $0x208] sm:$0xff]
      %v3042 = vld [vmem:[#allocation9 + $0x210] sm:$0xff]
      %v3043 = vld [vmem:[#allocation9 + $0x218] sm:$0xff]
      %v3044 = vld [vmem:[#allocation9 + $0x220] sm:$0xff]
      %v3045 = vld [vmem:[#allocation9 + $0x228] sm:$0xff]
      %v3046 = vld [vmem:[#allocation9 + $0x230] sm:$0xff]
      %v3047 = vld [vmem:[#allocation9 + $0x238] sm:$0xff]
      %v3048 = vld [vmem:[#allocation9 + $0x240] sm:$0xff]
      %v3049 = vld [vmem:[#allocation9 + $0x248] sm:$0xff]
      %v3050 = vld [vmem:[#allocation9 + $0x250] sm:$0xff]
      %v3051 = vld [vmem:[#allocation9 + $0x258] sm:$0xff]
      %v3052 = vld [vmem:[#allocation9 + $0x260] sm:$0xff]
      %v3053 = vld [vmem:[#allocation9 + $0x268] sm:$0xff]
      %v3054 = vld [vmem:[#allocation9 + $0x270] sm:$0xff]
      %v3055 = vld [vmem:[#allocation9 + $0x278] sm:$0xff]
      %v3056 = vld [vmem:[#allocation9 + $0x280] sm:$0xff]
      %v3057 = vld [vmem:[#allocation9 + $0x288] sm:$0xff]
      %v3058 = vld [vmem:[#allocation9 + $0x290] sm:$0xff]
      %v3059 = vld [vmem:[#allocation9 + $0x298] sm:$0xff]
      %v3060 = vld [vmem:[#allocation9 + $0x2a0] sm:$0xff]
      %v3061 = vld [vmem:[#allocation9 + $0x2a8] sm:$0xff]
      %v3062 = vld [vmem:[#allocation9 + $0x2b0] sm:$0xff]
      %v3063 = vld [vmem:[#allocation9 + $0x2b8] sm:$0xff]
      %v3064 = vld [vmem:[#allocation9 + $0x2c0] sm:$0xff]
      %v3065 = vld [vmem:[#allocation9 + $0x2c8] sm:$0xff]
      %v3066 = vld [vmem:[#allocation9 + $0x2d0] sm:$0xff]
      %v3067 = vld [vmem:[#allocation9 + $0x2d8] sm:$0xff]
      %v3068 = vld [vmem:[#allocation9 + $0x2e0] sm:$0xff]
      %v3069 = vld [vmem:[#allocation9 + $0x2e8] sm:$0xff]
      %v3070 = vld [vmem:[#allocation9 + $0x2f0] sm:$0xff]
      %v3071 = vld [vmem:[#allocation9 + $0x2f8] sm:$0xff]
      %v3072 = vld [vmem:[#allocation9 + $0x300] sm:$0xff]
      %v3073 = vld [vmem:[#allocation9 + $0x308] sm:$0xff]
      %v3074 = vld [vmem:[#allocation9 + $0x310] sm:$0xff]
      %v3075 = vld [vmem:[#allocation9 + $0x318] sm:$0xff]
      %v3076 = vld [vmem:[#allocation9 + $0x320] sm:$0xff]
      %v3077 = vld [vmem:[#allocation9 + $0x328] sm:$0xff]
      %v3078 = vld [vmem:[#allocation9 + $0x330] sm:$0xff]
      %v3079 = vld [vmem:[#allocation9 + $0x338] sm:$0xff]
      %v3080 = vld [vmem:[#allocation9 + $0x340] sm:$0xff]
      %v3081 = vld [vmem:[#allocation9 + $0x348] sm:$0xff]
      %v3082 = vld [vmem:[#allocation9 + $0x350] sm:$0xff]
      %v3083 = vld [vmem:[#allocation9 + $0x358] sm:$0xff]
      %v3084 = vld [vmem:[#allocation9 + $0x360] sm:$0xff]
      %v3085 = vld [vmem:[#allocation9 + $0x368] sm:$0xff]
      %v3086 = vld [vmem:[#allocation9 + $0x370] sm:$0xff]
      %v3087 = vld [vmem:[#allocation9 + $0x378] sm:$0xff]
      %v3088 = vld [vmem:[#allocation9 + $0x380] sm:$0xff]
      %v3089 = vld [vmem:[#allocation9 + $0x388] sm:$0xff]
      %v3090 = vld [vmem:[#allocation9 + $0x390] sm:$0xff]
      %v3091 = vld [vmem:[#allocation9 + $0x398] sm:$0xff]
      %v3092 = vld [vmem:[#allocation9 + $0x3a0] sm:$0xff]
      %v3093 = vld [vmem:[#allocation9 + $0x3a8] sm:$0xff]
      %v3094 = vld [vmem:[#allocation9 + $0x3b0] sm:$0xff]
      %v3095 = vld [vmem:[#allocation9 + $0x3b8] sm:$0xff]
      %v3096 = vld [vmem:[#allocation9 + $0x3c0] sm:$0xff]
      %v3097 = vld [vmem:[#allocation9 + $0x3c8] sm:$0xff]
      %v3098 = vld [vmem:[#allocation9 + $0x3d0] sm:$0xff]
      %v3099 = vld [vmem:[#allocation9 + $0x3d8] sm:$0xff]
      %v3100 = vld [vmem:[#allocation9 + $0x3e0] sm:$0xff]
      %v3101 = vld [vmem:[#allocation9 + $0x3e8] sm:$0xff]
      %v3102 = vld [vmem:[#allocation9 + $0x3f0] sm:$0xff]
      %v3103 = vld [vmem:[#allocation9 + $0x3f8] sm:$0xff]
      %v3104 = vld [vmem:[#allocation9 + $0x400] sm:$0xff]
      %v3105 = vld [vmem:[#allocation9 + $0x408] sm:$0xff]
      %v3106 = vld [vmem:[#allocation9 + $0x410] sm:$0xff]
      %v3107 = vld [vmem:[#allocation9 + $0x418] sm:$0xff]
      %v3108 = vld [vmem:[#allocation9 + $0x420] sm:$0xff]
      %v3109 = vld [vmem:[#allocation9 + $0x428] sm:$0xff]
      %v3110 = vld [vmem:[#allocation9 + $0x430] sm:$0xff]
      %v3111 = vld [vmem:[#allocation9 + $0x438] sm:$0xff]
      %v3112 = vld [vmem:[#allocation9 + $0x440] sm:$0xff]
      %v3113 = vld [vmem:[#allocation9 + $0x448] sm:$0xff]
      %v3114 = vld [vmem:[#allocation9 + $0x450] sm:$0xff]
      %v3115 = vld [vmem:[#allocation9 + $0x458] sm:$0xff]
      %v3116 = vld [vmem:[#allocation9 + $0x460] sm:$0xff]
      %v3117 = vld [vmem:[#allocation9 + $0x468] sm:$0xff]
      %v3118 = vld [vmem:[#allocation9 + $0x470] sm:$0xff]
      %v3119 = vld [vmem:[#allocation9 + $0x478] sm:$0xff]
      %v3120 = vld [vmem:[#allocation9 + $0x480] sm:$0xff]
      %v3121 = vld [vmem:[#allocation9 + $0x488] sm:$0xff]
      %v3122 = vld [vmem:[#allocation9 + $0x490] sm:$0xff]
      %v3123 = vld [vmem:[#allocation9 + $0x498] sm:$0xff]
      %v3124 = vld [vmem:[#allocation9 + $0x4a0] sm:$0xff]
      %v3125 = vld [vmem:[#allocation9 + $0x4a8] sm:$0xff]
      %v3126 = vld [vmem:[#allocation9 + $0x4b0] sm:$0xff]
      %v3127 = vld [vmem:[#allocation9 + $0x4b8] sm:$0xff]
      %v3128 = vld [vmem:[#allocation9 + $0x4c0] sm:$0xff]
      %v3129 = vld [vmem:[#allocation9 + $0x4c8] sm:$0xff]
      %v3130 = vld [vmem:[#allocation9 + $0x4d0] sm:$0xff]
      %v3131 = vld [vmem:[#allocation9 + $0x4d8] sm:$0xff]
      %v3132 = vld [vmem:[#allocation9 + $0x4e0] sm:$0xff]
      %v3133 = vld [vmem:[#allocation9 + $0x4e8] sm:$0xff]
      %v3134 = vld [vmem:[#allocation9 + $0x4f0] sm:$0xff]
      %v3135 = vld [vmem:[#allocation9 + $0x4f8] sm:$0xff]
      %v3136 = vld [vmem:[#allocation9 + $0x500] sm:$0xff]
      %v3137 = vld [vmem:[#allocation9 + $0x508] sm:$0xff]
      %v3138 = vld [vmem:[#allocation9 + $0x510] sm:$0xff]
      %v3139 = vld [vmem:[#allocation9 + $0x518] sm:$0xff]
      %v3140 = vld [vmem:[#allocation9 + $0x520] sm:$0xff]
      %v3141 = vld [vmem:[#allocation9 + $0x528] sm:$0xff]
      %v3142 = vld [vmem:[#allocation9 + $0x530] sm:$0xff]
      %v3143 = vld [vmem:[#allocation9 + $0x538] sm:$0xff]
      %v3144 = vld [vmem:[#allocation9 + $0x540] sm:$0xff]
      %v3145 = vld [vmem:[#allocation9 + $0x548] sm:$0xff]
      %v3146 = vld [vmem:[#allocation9 + $0x550] sm:$0xff]
      %v3147 = vld [vmem:[#allocation9 + $0x558] sm:$0xff]
      %v3148 = vld [vmem:[#allocation9 + $0x560] sm:$0xff]
      %v3149 = vld [vmem:[#allocation9 + $0x568] sm:$0xff]
      %v3150 = vld [vmem:[#allocation9 + $0x570] sm:$0xff]
      %v3151 = vld [vmem:[#allocation9 + $0x578] sm:$0xff]
      %v3152 = vld [vmem:[#allocation9 + $0x580] sm:$0xff]
      %v3153 = vld [vmem:[#allocation9 + $0x588] sm:$0xff]
      %v3154 = vld [vmem:[#allocation9 + $0x590] sm:$0xff]
      %v3155 = vld [vmem:[#allocation9 + $0x598] sm:$0xff]
      %v3156 = vld [vmem:[#allocation9 + $0x5a0] sm:$0xff]
      %v3157 = vld [vmem:[#allocation9 + $0x5a8] sm:$0xff]
      %v3158 = vld [vmem:[#allocation9 + $0x5b0] sm:$0xff]
      %v3159 = vld [vmem:[#allocation9 + $0x5b8] sm:$0xff]
      %v3160 = vld [vmem:[#allocation9 + $0x5c0] sm:$0xff]
      %v3161 = vld [vmem:[#allocation9 + $0x5c8] sm:$0xff]
      %v3162 = vld [vmem:[#allocation9 + $0x5d0] sm:$0xff]
      %v3163 = vld [vmem:[#allocation9 + $0x5d8] sm:$0xff]
      %v3164 = vld [vmem:[#allocation9 + $0x5e0] sm:$0xff]
      %v3165 = vld [vmem:[#allocation9 + $0x5e8] sm:$0xff]
      %v3166 = vld [vmem:[#allocation9 + $0x5f0] sm:$0xff]
      %v3167 = vld [vmem:[#allocation9 + $0x5f8] sm:$0xff]
      %v3168 = vld [vmem:[#allocation11] sm:$0xf]
      %v3170 = vlaneseq
      %v3171 = vshrl.u32 %v3170, 7
      %v3172 = vsub.s32 0, %v3171
      %v3173 = vrot.slane %v3168, %v3172
      %v3174 = vlaneseq
      %v3175 = vshrl.u32 %v3174, 7
      %v3176 = vsub.s32 1, %v3175
      %v3177 = vrot.slane %v3168, %v3176
      %v3178 = vlaneseq
      %v3179 = vshrl.u32 %v3178, 7
      %v3180 = vsub.s32 2, %v3179
      %v3181 = vrot.slane %v3168, %v3180
      %v3182 = vlaneseq
      %v3183 = vshrl.u32 %v3182, 7
      %v3184 = vsub.s32 3, %v3183
      %v3185 = vrot.slane %v3168, %v3184
      %v3382 = vunpack.c.l.b16 %v2976
      %v3383 = vunpack.c.h.b16 %v2976
      %v3384 = vunpack.c.l.b16 %v2977
      %v3385 = vunpack.c.h.b16 %v2977
      %v3386 = vunpack.c.l.b16 %v2978
      %v3387 = vunpack.c.h.b16 %v2978
      %v3388 = vunpack.c.l.b16 %v2979
      %v3389 = vunpack.c.h.b16 %v2979
      %v3390 = vunpack.c.l.b16 %v2980
      %v3391 = vunpack.c.h.b16 %v2980
      %v3392 = vunpack.c.l.b16 %v2981
      %v3393 = vunpack.c.h.b16 %v2981
      %v3394 = vunpack.c.l.b16 %v2982
      %v3395 = vunpack.c.h.b16 %v2982
      %v3396 = vunpack.c.l.b16 %v2983
      %v3397 = vunpack.c.h.b16 %v2983
      %v3398 = vunpack.c.l.b16 %v2984
      %v3399 = vunpack.c.h.b16 %v2984
      %v3400 = vunpack.c.l.b16 %v2985
      %v3401 = vunpack.c.h.b16 %v2985
      %v3402 = vunpack.c.l.b16 %v2986
      %v3403 = vunpack.c.h.b16 %v2986
      %v3404 = vunpack.c.l.b16 %v2987
      %v3405 = vunpack.c.h.b16 %v2987
      %v3406 = vunpack.c.l.b16 %v2988
      %v3407 = vunpack.c.h.b16 %v2988
      %v3408 = vunpack.c.l.b16 %v2989
      %v3409 = vunpack.c.h.b16 %v2989
      %v3410 = vunpack.c.l.b16 %v2990
      %v3411 = vunpack.c.h.b16 %v2990
      %v3412 = vunpack.c.l.b16 %v2991
      %v3413 = vunpack.c.h.b16 %v2991
      %v3414 = vunpack.c.l.b16 %v2992
      %v3415 = vunpack.c.h.b16 %v2992
      %v3416 = vunpack.c.l.b16 %v2993
      %v3417 = vunpack.c.h.b16 %v2993
      %v3418 = vunpack.c.l.b16 %v2994
      %v3419 = vunpack.c.h.b16 %v2994
      %v3420 = vunpack.c.l.b16 %v2995
      %v3421 = vunpack.c.h.b16 %v2995
      %v3422 = vunpack.c.l.b16 %v2996
      %v3423 = vunpack.c.h.b16 %v2996
      %v3424 = vunpack.c.l.b16 %v2997
      %v3425 = vunpack.c.h.b16 %v2997
      %v3426 = vunpack.c.l.b16 %v2998
      %v3427 = vunpack.c.h.b16 %v2998
      %v3428 = vunpack.c.l.b16 %v2999
      %v3429 = vunpack.c.h.b16 %v2999
      %v3430 = vunpack.c.l.b16 %v3000
      %v3431 = vunpack.c.h.b16 %v3000
      %v3432 = vunpack.c.l.b16 %v3001
      %v3433 = vunpack.c.h.b16 %v3001
      %v3434 = vunpack.c.l.b16 %v3002
      %v3435 = vunpack.c.h.b16 %v3002
      %v3436 = vunpack.c.l.b16 %v3003
      %v3437 = vunpack.c.h.b16 %v3003
      %v3438 = vunpack.c.l.b16 %v3004
      %v3439 = vunpack.c.h.b16 %v3004
      %v3440 = vunpack.c.l.b16 %v3005
      %v3441 = vunpack.c.h.b16 %v3005
      %v3442 = vunpack.c.l.b16 %v3006
      %v3443 = vunpack.c.h.b16 %v3006
      %v3444 = vunpack.c.l.b16 %v3007
      %v3445 = vunpack.c.h.b16 %v3007
      %v3446 = vunpack.c.l.b16 %v3008
      %v3447 = vunpack.c.h.b16 %v3008
      %v3448 = vunpack.c.l.b16 %v3009
      %v3449 = vunpack.c.h.b16 %v3009
      %v3450 = vunpack.c.l.b16 %v3010
      %v3451 = vunpack.c.h.b16 %v3010
      %v3452 = vunpack.c.l.b16 %v3011
      %v3453 = vunpack.c.h.b16 %v3011
      %v3454 = vunpack.c.l.b16 %v3012
      %v3455 = vunpack.c.h.b16 %v3012
      %v3456 = vunpack.c.l.b16 %v3013
      %v3457 = vunpack.c.h.b16 %v3013
      %v3458 = vunpack.c.l.b16 %v3014
      %v3459 = vunpack.c.h.b16 %v3014
      %v3460 = vunpack.c.l.b16 %v3015
      %v3461 = vunpack.c.h.b16 %v3015
      %v3462 = vunpack.c.l.b16 %v3016
      %v3463 = vunpack.c.h.b16 %v3016
      %v3464 = vunpack.c.l.b16 %v3017
      %v3465 = vunpack.c.h.b16 %v3017
      %v3466 = vunpack.c.l.b16 %v3018
      %v3467 = vunpack.c.h.b16 %v3018
      %v3468 = vunpack.c.l.b16 %v3019
      %v3469 = vunpack.c.h.b16 %v3019
      %v3470 = vunpack.c.l.b16 %v3020
      %v3471 = vunpack.c.h.b16 %v3020
      %v3472 = vunpack.c.l.b16 %v3021
      %v3473 = vunpack.c.h.b16 %v3021
      %v3474 = vunpack.c.l.b16 %v3022
      %v3475 = vunpack.c.h.b16 %v3022
      %v3476 = vunpack.c.l.b16 %v3023
      %v3477 = vunpack.c.h.b16 %v3023
      %v3478 = vunpack.c.l.b16 %v3024
      %v3479 = vunpack.c.h.b16 %v3024
      %v3480 = vunpack.c.l.b16 %v3025
      %v3481 = vunpack.c.h.b16 %v3025
      %v3482 = vunpack.c.l.b16 %v3026
      %v3483 = vunpack.c.h.b16 %v3026
      %v3484 = vunpack.c.l.b16 %v3027
      %v3485 = vunpack.c.h.b16 %v3027
      %v3486 = vunpack.c.l.b16 %v3028
      %v3487 = vunpack.c.h.b16 %v3028
      %v3488 = vunpack.c.l.b16 %v3029
      %v3489 = vunpack.c.h.b16 %v3029
      %v3490 = vunpack.c.l.b16 %v3030
      %v3491 = vunpack.c.h.b16 %v3030
      %v3492 = vunpack.c.l.b16 %v3031
      %v3493 = vunpack.c.h.b16 %v3031
      %v3494 = vunpack.c.l.b16 %v3032
      %v3495 = vunpack.c.h.b16 %v3032
      %v3496 = vunpack.c.l.b16 %v3033
      %v3497 = vunpack.c.h.b16 %v3033
      %v3498 = vunpack.c.l.b16 %v3034
      %v3499 = vunpack.c.h.b16 %v3034
      %v3500 = vunpack.c.l.b16 %v3035
      %v3501 = vunpack.c.h.b16 %v3035
      %v3502 = vunpack.c.l.b16 %v3036
      %v3503 = vunpack.c.h.b16 %v3036
      %v3504 = vunpack.c.l.b16 %v3037
      %v3505 = vunpack.c.h.b16 %v3037
      %v3506 = vunpack.c.l.b16 %v3038
      %v3507 = vunpack.c.h.b16 %v3038
      %v3508 = vunpack.c.l.b16 %v3039
      %v3509 = vunpack.c.h.b16 %v3039
      %v3510 = vunpack.c.l.b16 %v3040
      %v3511 = vunpack.c.h.b16 %v3040
      %v3512 = vunpack.c.l.b16 %v3041
      %v3513 = vunpack.c.h.b16 %v3041
      %v3514 = vunpack.c.l.b16 %v3042
      %v3515 = vunpack.c.h.b16 %v3042
      %v3516 = vunpack.c.l.b16 %v3043
      %v3517 = vunpack.c.h.b16 %v3043
      %v3518 = vunpack.c.l.b16 %v3044
      %v3519 = vunpack.c.h.b16 %v3044
      %v3520 = vunpack.c.l.b16 %v3045
      %v3521 = vunpack.c.h.b16 %v3045
      %v3522 = vunpack.c.l.b16 %v3046
      %v3523 = vunpack.c.h.b16 %v3046
      %v3524 = vunpack.c.l.b16 %v3047
      %v3525 = vunpack.c.h.b16 %v3047
      %v3526 = vunpack.c.l.b16 %v3048
      %v3527 = vunpack.c.h.b16 %v3048
      %v3528 = vunpack.c.l.b16 %v3049
      %v3529 = vunpack.c.h.b16 %v3049
      %v3530 = vunpack.c.l.b16 %v3050
      %v3531 = vunpack.c.h.b16 %v3050
      %v3532 = vunpack.c.l.b16 %v3051
      %v3533 = vunpack.c.h.b16 %v3051
      %v3534 = vunpack.c.l.b16 %v3052
      %v3535 = vunpack.c.h.b16 %v3052
      %v3536 = vunpack.c.l.b16 %v3053
      %v3537 = vunpack.c.h.b16 %v3053
      %v3538 = vunpack.c.l.b16 %v3054
      %v3539 = vunpack.c.h.b16 %v3054
      %v3540 = vunpack.c.l.b16 %v3055
      %v3541 = vunpack.c.h.b16 %v3055
      %v3542 = vunpack.c.l.b16 %v3056
      %v3543 = vunpack.c.h.b16 %v3056
      %v3544 = vunpack.c.l.b16 %v3057
      %v3545 = vunpack.c.h.b16 %v3057
      %v3546 = vunpack.c.l.b16 %v3058
      %v3547 = vunpack.c.h.b16 %v3058
      %v3548 = vunpack.c.l.b16 %v3059
      %v3549 = vunpack.c.h.b16 %v3059
      %v3550 = vunpack.c.l.b16 %v3060
      %v3551 = vunpack.c.h.b16 %v3060
      %v3552 = vunpack.c.l.b16 %v3061
      %v3553 = vunpack.c.h.b16 %v3061
      %v3554 = vunpack.c.l.b16 %v3062
      %v3555 = vunpack.c.h.b16 %v3062
      %v3556 = vunpack.c.l.b16 %v3063
      %v3557 = vunpack.c.h.b16 %v3063
      %v3558 = vunpack.c.l.b16 %v3064
      %v3559 = vunpack.c.h.b16 %v3064
      %v3560 = vunpack.c.l.b16 %v3065
      %v3561 = vunpack.c.h.b16 %v3065
      %v3562 = vunpack.c.l.b16 %v3066
      %v3563 = vunpack.c.h.b16 %v3066
      %v3564 = vunpack.c.l.b16 %v3067
      %v3565 = vunpack.c.h.b16 %v3067
      %v3566 = vunpack.c.l.b16 %v3068
      %v3567 = vunpack.c.h.b16 %v3068
      %v3568 = vunpack.c.l.b16 %v3069
      %v3569 = vunpack.c.h.b16 %v3069
      %v3570 = vunpack.c.l.b16 %v3070
      %v3571 = vunpack.c.h.b16 %v3070
      %v3572 = vunpack.c.l.b16 %v3071
      %v3573 = vunpack.c.h.b16 %v3071
      %v3574 = vunpack.c.l.b16 %v3072
      %v3575 = vunpack.c.h.b16 %v3072
      %v3576 = vunpack.c.l.b16 %v3073
      %v3577 = vunpack.c.h.b16 %v3073
      %v3578 = vunpack.c.l.b16 %v3074
      %v3579 = vunpack.c.h.b16 %v3074
      %v3580 = vunpack.c.l.b16 %v3075
      %v3581 = vunpack.c.h.b16 %v3075
      %v3582 = vunpack.c.l.b16 %v3076
      %v3583 = vunpack.c.h.b16 %v3076
      %v3584 = vunpack.c.l.b16 %v3077
      %v3585 = vunpack.c.h.b16 %v3077
      %v3586 = vunpack.c.l.b16 %v3078
      %v3587 = vunpack.c.h.b16 %v3078
      %v3588 = vunpack.c.l.b16 %v3079
      %v3589 = vunpack.c.h.b16 %v3079
      %v3590 = vunpack.c.l.b16 %v3080
      %v3591 = vunpack.c.h.b16 %v3080
      %v3592 = vunpack.c.l.b16 %v3081
      %v3593 = vunpack.c.h.b16 %v3081
      %v3594 = vunpack.c.l.b16 %v3082
      %v3595 = vunpack.c.h.b16 %v3082
      %v3596 = vunpack.c.l.b16 %v3083
      %v3597 = vunpack.c.h.b16 %v3083
      %v3598 = vunpack.c.l.b16 %v3084
      %v3599 = vunpack.c.h.b16 %v3084
      %v3600 = vunpack.c.l.b16 %v3085
      %v3601 = vunpack.c.h.b16 %v3085
      %v3602 = vunpack.c.l.b16 %v3086
      %v3603 = vunpack.c.h.b16 %v3086
      %v3604 = vunpack.c.l.b16 %v3087
      %v3605 = vunpack.c.h.b16 %v3087
      %v3606 = vunpack.c.l.b16 %v3088
      %v3607 = vunpack.c.h.b16 %v3088
      %v3608 = vunpack.c.l.b16 %v3089
      %v3609 = vunpack.c.h.b16 %v3089
      %v3610 = vunpack.c.l.b16 %v3090
      %v3611 = vunpack.c.h.b16 %v3090
      %v3612 = vunpack.c.l.b16 %v3091
      %v3613 = vunpack.c.h.b16 %v3091
      %v3614 = vunpack.c.l.b16 %v3092
      %v3615 = vunpack.c.h.b16 %v3092
      %v3616 = vunpack.c.l.b16 %v3093
      %v3617 = vunpack.c.h.b16 %v3093
      %v3618 = vunpack.c.l.b16 %v3094
      %v3619 = vunpack.c.h.b16 %v3094
      %v3620 = vunpack.c.l.b16 %v3095
      %v3621 = vunpack.c.h.b16 %v3095
      %v3622 = vunpack.c.l.b16 %v3096
      %v3623 = vunpack.c.h.b16 %v3096
      %v3624 = vunpack.c.l.b16 %v3097
      %v3625 = vunpack.c.h.b16 %v3097
      %v3626 = vunpack.c.l.b16 %v3098
      %v3627 = vunpack.c.h.b16 %v3098
      %v3628 = vunpack.c.l.b16 %v3099
      %v3629 = vunpack.c.h.b16 %v3099
      %v3630 = vunpack.c.l.b16 %v3100
      %v3631 = vunpack.c.h.b16 %v3100
      %v3632 = vunpack.c.l.b16 %v3101
      %v3633 = vunpack.c.h.b16 %v3101
      %v3634 = vunpack.c.l.b16 %v3102
      %v3635 = vunpack.c.h.b16 %v3102
      %v3636 = vunpack.c.l.b16 %v3103
      %v3637 = vunpack.c.h.b16 %v3103
      %v3638 = vunpack.c.l.b16 %v3104
      %v3639 = vunpack.c.h.b16 %v3104
      %v3640 = vunpack.c.l.b16 %v3105
      %v3641 = vunpack.c.h.b16 %v3105
      %v3642 = vunpack.c.l.b16 %v3106
      %v3643 = vunpack.c.h.b16 %v3106
      %v3644 = vunpack.c.l.b16 %v3107
      %v3645 = vunpack.c.h.b16 %v3107
      %v3646 = vunpack.c.l.b16 %v3108
      %v3647 = vunpack.c.h.b16 %v3108
      %v3648 = vunpack.c.l.b16 %v3109
      %v3649 = vunpack.c.h.b16 %v3109
      %v3650 = vunpack.c.l.b16 %v3110
      %v3651 = vunpack.c.h.b16 %v3110
      %v3652 = vunpack.c.l.b16 %v3111
      %v3653 = vunpack.c.h.b16 %v3111
      %v3654 = vunpack.c.l.b16 %v3112
      %v3655 = vunpack.c.h.b16 %v3112
      %v3656 = vunpack.c.l.b16 %v3113
      %v3657 = vunpack.c.h.b16 %v3113
      %v3658 = vunpack.c.l.b16 %v3114
      %v3659 = vunpack.c.h.b16 %v3114
      %v3660 = vunpack.c.l.b16 %v3115
      %v3661 = vunpack.c.h.b16 %v3115
      %v3662 = vunpack.c.l.b16 %v3116
      %v3663 = vunpack.c.h.b16 %v3116
      %v3664 = vunpack.c.l.b16 %v3117
      %v3665 = vunpack.c.h.b16 %v3117
      %v3666 = vunpack.c.l.b16 %v3118
      %v3667 = vunpack.c.h.b16 %v3118
      %v3668 = vunpack.c.l.b16 %v3119
      %v3669 = vunpack.c.h.b16 %v3119
      %v3670 = vunpack.c.l.b16 %v3120
      %v3671 = vunpack.c.h.b16 %v3120
      %v3672 = vunpack.c.l.b16 %v3121
      %v3673 = vunpack.c.h.b16 %v3121
      %v3674 = vunpack.c.l.b16 %v3122
      %v3675 = vunpack.c.h.b16 %v3122
      %v3676 = vunpack.c.l.b16 %v3123
      %v3677 = vunpack.c.h.b16 %v3123
      %v3678 = vunpack.c.l.b16 %v3124
      %v3679 = vunpack.c.h.b16 %v3124
      %v3680 = vunpack.c.l.b16 %v3125
      %v3681 = vunpack.c.h.b16 %v3125
      %v3682 = vunpack.c.l.b16 %v3126
      %v3683 = vunpack.c.h.b16 %v3126
      %v3684 = vunpack.c.l.b16 %v3127
      %v3685 = vunpack.c.h.b16 %v3127
      %v3686 = vunpack.c.l.b16 %v3128
      %v3687 = vunpack.c.h.b16 %v3128
      %v3688 = vunpack.c.l.b16 %v3129
      %v3689 = vunpack.c.h.b16 %v3129
      %v3690 = vunpack.c.l.b16 %v3130
      %v3691 = vunpack.c.h.b16 %v3130
      %v3692 = vunpack.c.l.b16 %v3131
      %v3693 = vunpack.c.h.b16 %v3131
      %v3694 = vunpack.c.l.b16 %v3132
      %v3695 = vunpack.c.h.b16 %v3132
      %v3696 = vunpack.c.l.b16 %v3133
      %v3697 = vunpack.c.h.b16 %v3133
      %v3698 = vunpack.c.l.b16 %v3134
      %v3699 = vunpack.c.h.b16 %v3134
      %v3700 = vunpack.c.l.b16 %v3135
      %v3701 = vunpack.c.h.b16 %v3135
      %v3702 = vunpack.c.l.b16 %v3136
      %v3703 = vunpack.c.h.b16 %v3136
      %v3704 = vunpack.c.l.b16 %v3137
      %v3705 = vunpack.c.h.b16 %v3137
      %v3706 = vunpack.c.l.b16 %v3138
      %v3707 = vunpack.c.h.b16 %v3138
      %v3708 = vunpack.c.l.b16 %v3139
      %v3709 = vunpack.c.h.b16 %v3139
      %v3710 = vunpack.c.l.b16 %v3140
      %v3711 = vunpack.c.h.b16 %v3140
      %v3712 = vunpack.c.l.b16 %v3141
      %v3713 = vunpack.c.h.b16 %v3141
      %v3714 = vunpack.c.l.b16 %v3142
      %v3715 = vunpack.c.h.b16 %v3142
      %v3716 = vunpack.c.l.b16 %v3143
      %v3717 = vunpack.c.h.b16 %v3143
      %v3718 = vunpack.c.l.b16 %v3144
      %v3719 = vunpack.c.h.b16 %v3144
      %v3720 = vunpack.c.l.b16 %v3145
      %v3721 = vunpack.c.h.b16 %v3145
      %v3722 = vunpack.c.l.b16 %v3146
      %v3723 = vunpack.c.h.b16 %v3146
      %v3724 = vunpack.c.l.b16 %v3147
      %v3725 = vunpack.c.h.b16 %v3147
      %v3726 = vunpack.c.l.b16 %v3148
      %v3727 = vunpack.c.h.b16 %v3148
      %v3728 = vunpack.c.l.b16 %v3149
      %v3729 = vunpack.c.h.b16 %v3149
      %v3730 = vunpack.c.l.b16 %v3150
      %v3731 = vunpack.c.h.b16 %v3150
      %v3732 = vunpack.c.l.b16 %v3151
      %v3733 = vunpack.c.h.b16 %v3151
      %v3734 = vunpack.c.l.b16 %v3152
      %v3735 = vunpack.c.h.b16 %v3152
      %v3736 = vunpack.c.l.b16 %v3153
      %v3737 = vunpack.c.h.b16 %v3153
      %v3738 = vunpack.c.l.b16 %v3154
      %v3739 = vunpack.c.h.b16 %v3154
      %v3740 = vunpack.c.l.b16 %v3155
      %v3741 = vunpack.c.h.b16 %v3155
      %v3742 = vunpack.c.l.b16 %v3156
      %v3743 = vunpack.c.h.b16 %v3156
      %v3744 = vunpack.c.l.b16 %v3157
      %v3745 = vunpack.c.h.b16 %v3157
      %v3746 = vunpack.c.l.b16 %v3158
      %v3747 = vunpack.c.h.b16 %v3158
      %v3748 = vunpack.c.l.b16 %v3159
      %v3749 = vunpack.c.h.b16 %v3159
      %v3750 = vunpack.c.l.b16 %v3160
      %v3751 = vunpack.c.h.b16 %v3160
      %v3752 = vunpack.c.l.b16 %v3161
      %v3753 = vunpack.c.h.b16 %v3161
      %v3754 = vunpack.c.l.b16 %v3162
      %v3755 = vunpack.c.h.b16 %v3162
      %v3756 = vunpack.c.l.b16 %v3163
      %v3757 = vunpack.c.h.b16 %v3163
      %v3758 = vunpack.c.l.b16 %v3164
      %v3759 = vunpack.c.h.b16 %v3164
      %v3760 = vunpack.c.l.b16 %v3165
      %v3761 = vunpack.c.h.b16 %v3165
      %v3762 = vunpack.c.l.b16 %v3166
      %v3763 = vunpack.c.h.b16 %v3166
      %v3764 = vunpack.c.l.b16 %v3167
      %v3765 = vunpack.c.h.b16 %v3167
      %v3766 = vpack.c.b16 %v3386, %v3382
      %v3767 = vpack.c.b16 %v3387, %v3383
      %v3768 = vpack.c.b16 %v3388, %v3384
      %v3769 = vpack.c.b16 %v3389, %v3385
      %v3770 = vpack.c.b16 %v3394, %v3390
      %v3771 = vpack.c.b16 %v3395, %v3391
      %v3772 = vpack.c.b16 %v3396, %v3392
      %v3773 = vpack.c.b16 %v3397, %v3393
      %v3774 = vpack.c.b16 %v3402, %v3398
      %v3775 = vpack.c.b16 %v3403, %v3399
      %v3776 = vpack.c.b16 %v3404, %v3400
      %v3777 = vpack.c.b16 %v3405, %v3401
      %v3778 = vpack.c.b16 %v3410, %v3406
      %v3779 = vpack.c.b16 %v3411, %v3407
      %v3780 = vpack.c.b16 %v3412, %v3408
      %v3781 = vpack.c.b16 %v3413, %v3409
      %v3782 = vpack.c.b16 %v3418, %v3414
      %v3783 = vpack.c.b16 %v3419, %v3415
      %v3784 = vpack.c.b16 %v3420, %v3416
      %v3785 = vpack.c.b16 %v3421, %v3417
      %v3786 = vpack.c.b16 %v3426, %v3422
      %v3787 = vpack.c.b16 %v3427, %v3423
      %v3788 = vpack.c.b16 %v3428, %v3424
      %v3789 = vpack.c.b16 %v3429, %v3425
      %v3790 = vpack.c.b16 %v3434, %v3430
      %v3791 = vpack.c.b16 %v3435, %v3431
      %v3792 = vpack.c.b16 %v3436, %v3432
      %v3793 = vpack.c.b16 %v3437, %v3433
      %v3794 = vpack.c.b16 %v3442, %v3438
      %v3795 = vpack.c.b16 %v3443, %v3439
      %v3796 = vpack.c.b16 %v3444, %v3440
      %v3797 = vpack.c.b16 %v3445, %v3441
      %v3798 = vpack.c.b16 %v3450, %v3446
      %v3799 = vpack.c.b16 %v3451, %v3447
      %v3800 = vpack.c.b16 %v3452, %v3448
      %v3801 = vpack.c.b16 %v3453, %v3449
      %v3802 = vpack.c.b16 %v3458, %v3454
      %v3803 = vpack.c.b16 %v3459, %v3455
      %v3804 = vpack.c.b16 %v3460, %v3456
      %v3805 = vpack.c.b16 %v3461, %v3457
      %v3806 = vpack.c.b16 %v3466, %v3462
      %v3807 = vpack.c.b16 %v3467, %v3463
      %v3808 = vpack.c.b16 %v3468, %v3464
      %v3809 = vpack.c.b16 %v3469, %v3465
      %v3810 = vpack.c.b16 %v3474, %v3470
      %v3811 = vpack.c.b16 %v3475, %v3471
      %v3812 = vpack.c.b16 %v3476, %v3472
      %v3813 = vpack.c.b16 %v3477, %v3473
      %v3814 = vpack.c.b16 %v3482, %v3478
      %v3815 = vpack.c.b16 %v3483, %v3479
      %v3816 = vpack.c.b16 %v3484, %v3480
      %v3817 = vpack.c.b16 %v3485, %v3481
      %v3818 = vpack.c.b16 %v3490, %v3486
      %v3819 = vpack.c.b16 %v3491, %v3487
      %v3820 = vpack.c.b16 %v3492, %v3488
      %v3821 = vpack.c.b16 %v3493, %v3489
      %v3822 = vpack.c.b16 %v3498, %v3494
      %v3823 = vpack.c.b16 %v3499, %v3495
      %v3824 = vpack.c.b16 %v3500, %v3496
      %v3825 = vpack.c.b16 %v3501, %v3497
      %v3826 = vpack.c.b16 %v3506, %v3502
      %v3827 = vpack.c.b16 %v3507, %v3503
      %v3828 = vpack.c.b16 %v3508, %v3504
      %v3829 = vpack.c.b16 %v3509, %v3505
      %v3830 = vpack.c.b16 %v3514, %v3510
      %v3831 = vpack.c.b16 %v3515, %v3511
      %v3832 = vpack.c.b16 %v3516, %v3512
      %v3833 = vpack.c.b16 %v3517, %v3513
      %v3834 = vpack.c.b16 %v3522, %v3518
      %v3835 = vpack.c.b16 %v3523, %v3519
      %v3836 = vpack.c.b16 %v3524, %v3520
      %v3837 = vpack.c.b16 %v3525, %v3521
      %v3838 = vpack.c.b16 %v3530, %v3526
      %v3839 = vpack.c.b16 %v3531, %v3527
      %v3840 = vpack.c.b16 %v3532, %v3528
      %v3841 = vpack.c.b16 %v3533, %v3529
      %v3842 = vpack.c.b16 %v3538, %v3534
      %v3843 = vpack.c.b16 %v3539, %v3535
      %v3844 = vpack.c.b16 %v3540, %v3536
      %v3845 = vpack.c.b16 %v3541, %v3537
      %v3846 = vpack.c.b16 %v3546, %v3542
      %v3847 = vpack.c.b16 %v3547, %v3543
      %v3848 = vpack.c.b16 %v3548, %v3544
      %v3849 = vpack.c.b16 %v3549, %v3545
      %v3850 = vpack.c.b16 %v3554, %v3550
      %v3851 = vpack.c.b16 %v3555, %v3551
      %v3852 = vpack.c.b16 %v3556, %v3552
      %v3853 = vpack.c.b16 %v3557, %v3553
      %v3854 = vpack.c.b16 %v3562, %v3558
      %v3855 = vpack.c.b16 %v3563, %v3559
      %v3856 = vpack.c.b16 %v3564, %v3560
      %v3857 = vpack.c.b16 %v3565, %v3561
      %v3858 = vpack.c.b16 %v3570, %v3566
      %v3859 = vpack.c.b16 %v3571, %v3567
      %v3860 = vpack.c.b16 %v3572, %v3568
      %v3861 = vpack.c.b16 %v3573, %v3569
      %v3862 = vpack.c.b16 %v3578, %v3574
      %v3863 = vpack.c.b16 %v3579, %v3575
      %v3864 = vpack.c.b16 %v3580, %v3576
      %v3865 = vpack.c.b16 %v3581, %v3577
      %v3866 = vpack.c.b16 %v3586, %v3582
      %v3867 = vpack.c.b16 %v3587, %v3583
      %v3868 = vpack.c.b16 %v3588, %v3584
      %v3869 = vpack.c.b16 %v3589, %v3585
      %v3870 = vpack.c.b16 %v3594, %v3590
      %v3871 = vpack.c.b16 %v3595, %v3591
      %v3872 = vpack.c.b16 %v3596, %v3592
      %v3873 = vpack.c.b16 %v3597, %v3593
      %v3874 = vpack.c.b16 %v3602, %v3598
      %v3875 = vpack.c.b16 %v3603, %v3599
      %v3876 = vpack.c.b16 %v3604, %v3600
      %v3877 = vpack.c.b16 %v3605, %v3601
      %v3878 = vpack.c.b16 %v3610, %v3606
      %v3879 = vpack.c.b16 %v3611, %v3607
      %v3880 = vpack.c.b16 %v3612, %v3608
      %v3881 = vpack.c.b16 %v3613, %v3609
      %v3882 = vpack.c.b16 %v3618, %v3614
      %v3883 = vpack.c.b16 %v3619, %v3615
      %v3884 = vpack.c.b16 %v3620, %v3616
      %v3885 = vpack.c.b16 %v3621, %v3617
      %v3886 = vpack.c.b16 %v3626, %v3622
      %v3887 = vpack.c.b16 %v3627, %v3623
      %v3888 = vpack.c.b16 %v3628, %v3624
      %v3889 = vpack.c.b16 %v3629, %v3625
      %v3890 = vpack.c.b16 %v3634, %v3630
      %v3891 = vpack.c.b16 %v3635, %v3631
      %v3892 = vpack.c.b16 %v3636, %v3632
      %v3893 = vpack.c.b16 %v3637, %v3633
      %v3894 = vpack.c.b16 %v3642, %v3638
      %v3895 = vpack.c.b16 %v3643, %v3639
      %v3896 = vpack.c.b16 %v3644, %v3640
      %v3897 = vpack.c.b16 %v3645, %v3641
      %v3898 = vpack.c.b16 %v3650, %v3646
      %v3899 = vpack.c.b16 %v3651, %v3647
      %v3900 = vpack.c.b16 %v3652, %v3648
      %v3901 = vpack.c.b16 %v3653, %v3649
      %v3902 = vpack.c.b16 %v3658, %v3654
      %v3903 = vpack.c.b16 %v3659, %v3655
      %v3904 = vpack.c.b16 %v3660, %v3656
      %v3905 = vpack.c.b16 %v3661, %v3657
      %v3906 = vpack.c.b16 %v3666, %v3662
      %v3907 = vpack.c.b16 %v3667, %v3663
      %v3908 = vpack.c.b16 %v3668, %v3664
      %v3909 = vpack.c.b16 %v3669, %v3665
      %v3910 = vpack.c.b16 %v3674, %v3670
      %v3911 = vpack.c.b16 %v3675, %v3671
      %v3912 = vpack.c.b16 %v3676, %v3672
      %v3913 = vpack.c.b16 %v3677, %v3673
      %v3914 = vpack.c.b16 %v3682, %v3678
      %v3915 = vpack.c.b16 %v3683, %v3679
      %v3916 = vpack.c.b16 %v3684, %v3680
      %v3917 = vpack.c.b16 %v3685, %v3681
      %v3918 = vpack.c.b16 %v3690, %v3686
      %v3919 = vpack.c.b16 %v3691, %v3687
      %v3920 = vpack.c.b16 %v3692, %v3688
      %v3921 = vpack.c.b16 %v3693, %v3689
      %v3922 = vpack.c.b16 %v3698, %v3694
      %v3923 = vpack.c.b16 %v3699, %v3695
      %v3924 = vpack.c.b16 %v3700, %v3696
      %v3925 = vpack.c.b16 %v3701, %v3697
      %v3926 = vpack.c.b16 %v3706, %v3702
      %v3927 = vpack.c.b16 %v3707, %v3703
      %v3928 = vpack.c.b16 %v3708, %v3704
      %v3929 = vpack.c.b16 %v3709, %v3705
      %v3930 = vpack.c.b16 %v3714, %v3710
      %v3931 = vpack.c.b16 %v3715, %v3711
      %v3932 = vpack.c.b16 %v3716, %v3712
      %v3933 = vpack.c.b16 %v3717, %v3713
      %v3934 = vpack.c.b16 %v3722, %v3718
      %v3935 = vpack.c.b16 %v3723, %v3719
      %v3936 = vpack.c.b16 %v3724, %v3720
      %v3937 = vpack.c.b16 %v3725, %v3721
      %v3938 = vpack.c.b16 %v3730, %v3726
      %v3939 = vpack.c.b16 %v3731, %v3727
      %v3940 = vpack.c.b16 %v3732, %v3728
      %v3941 = vpack.c.b16 %v3733, %v3729
      %v3942 = vpack.c.b16 %v3738, %v3734
      %v3943 = vpack.c.b16 %v3739, %v3735
      %v3944 = vpack.c.b16 %v3740, %v3736
      %v3945 = vpack.c.b16 %v3741, %v3737
      %v3946 = vpack.c.b16 %v3746, %v3742
      %v3947 = vpack.c.b16 %v3747, %v3743
      %v3948 = vpack.c.b16 %v3748, %v3744
      %v3949 = vpack.c.b16 %v3749, %v3745
      %v3950 = vpack.c.b16 %v3754, %v3750
      %v3951 = vpack.c.b16 %v3755, %v3751
      %v3952 = vpack.c.b16 %v3756, %v3752
      %v3953 = vpack.c.b16 %v3757, %v3753
      %v3954 = vpack.c.b16 %v3762, %v3758
      %v3955 = vpack.c.b16 %v3763, %v3759
      %v3956 = vpack.c.b16 %v3764, %v3760
      %v3957 = vpack.c.b16 %v3765, %v3761
      %4150 = vmatprep.subr.bf16.mxu0 %v3767
      %4151 = vmatpush1.bf16.msra.mxu0 %v3766
      %4152 = vmatprep.subr.bf16.mxu0 %v3771
      %4153 = vmatpush1.bf16.msra.mxu0 %v3770
      %4154 = vmatprep.subr.bf16.mxu0 %v3775
      %4155 = vmatpush1.bf16.msra.mxu0 %v3774
      %4156 = vmatprep.subr.bf16.mxu0 %v3779
      %4157 = vmatpush1.bf16.msra.mxu0 %v3778
      %4158 = vmatprep.subr.bf16.mxu0 %v3783
      %4159 = vmatpush1.bf16.msra.mxu0 %v3782
      %4160 = vmatprep.subr.bf16.mxu0 %v3787
      %4161 = vmatpush1.bf16.msra.mxu0 %v3786
      %4162 = vmatprep.subr.bf16.mxu0 %v3791
      %4163 = vmatpush1.bf16.msra.mxu0 %v3790
      %4164 = vmatprep.subr.bf16.mxu0 %v3795
      %4165 = vmatpush1.bf16.msra.mxu0 %v3794
      %4166 = vmatprep.subr.bf16.mxu0 %v3799
      %4167 = vmatpush1.bf16.msra.mxu0 %v3798
      %4168 = vmatprep.subr.bf16.mxu0 %v3803
      %4169 = vmatpush1.bf16.msra.mxu0 %v3802
      %4170 = vmatprep.subr.bf16.mxu0 %v3807
      %4171 = vmatpush1.bf16.msra.mxu0 %v3806
      %4172 = vmatprep.subr.bf16.mxu0 %v3811
      %4173 = vmatpush1.bf16.msra.mxu0 %v3810
      %4174 = vmatprep.subr.bf16.mxu0 %v3815
      %4175 = vmatpush1.bf16.msra.mxu0 %v3814
      %4176 = vmatprep.subr.bf16.mxu0 %v3819
      %4177 = vmatpush1.bf16.msra.mxu0 %v3818
      %4178 = vmatprep.subr.bf16.mxu0 %v3823
      %4179 = vmatpush1.bf16.msra.mxu0 %v3822
      %4180 = vmatprep.subr.bf16.mxu0 %v3827
      %4181 = vmatpush1.bf16.msra.mxu0 %v3826
      %4182 = vmatprep.mubr.bf16.mxu0 %v2971
      %4183 = vmatmul.mubr.bf16.gmra.mrb[0].mxu0 %v2970
      %v4184 = vpop.f32.mrb[0].mxu0
      %v4185 = vadd.f32 %v3173, %v4184
      %v4186 = vpop.f32.mrb[0].mxu0
      %v4187 = vadd.f32 %v3177, %v4186
      %v4188 = vpop.f32.mrb[0].mxu0
      %v4189 = vpop.f32.mrb[0].mxu0
      %4190 = vdwg.mxu0
      %4191 = vmatprep.subr.bf16.mxu0 %v3831
      %4192 = vmatpush1.bf16.msra.mxu0 %v3830
      %4193 = vmatprep.subr.bf16.mxu0 %v3835
      %4194 = vmatpush1.bf16.msra.mxu0 %v3834
      %4195 = vmatprep.subr.bf16.mxu0 %v3839
      %4196 = vmatpush1.bf16.msra.mxu0 %v3838
      %4197 = vmatprep.subr.bf16.mxu0 %v3843
      %4198 = vmatpush1.bf16.msra.mxu0 %v3842
      %4199 = vmatprep.subr.bf16.mxu0 %v3847
      %4200 = vmatpush1.bf16.msra.mxu0 %v3846
      %4201 = vmatprep.subr.bf16.mxu0 %v3851
      %4202 = vmatpush1.bf16.msra.mxu0 %v3850
      %4203 = vmatprep.subr.bf16.mxu0 %v3855
      %4204 = vmatpush1.bf16.msra.mxu0 %v3854
      %4205 = vmatprep.subr.bf16.mxu0 %v3859
      %4206 = vmatpush1.bf16.msra.mxu0 %v3858
      %4207 = vmatprep.subr.bf16.mxu0 %v3863
      %4208 = vmatpush1.bf16.msra.mxu0 %v3862
      %4209 = vmatprep.subr.bf16.mxu0 %v3867
      %4210 = vmatpush1.bf16.msra.mxu0 %v3866
      %4211 = vmatprep.subr.bf16.mxu0 %v3871
      %4212 = vmatpush1.bf16.msra.mxu0 %v3870
      %4213 = vmatprep.subr.bf16.mxu0 %v3875
      %4214 = vmatpush1.bf16.msra.mxu0 %v3874
      %4215 = vmatprep.subr.bf16.mxu0 %v3879
      %4216 = vmatpush1.bf16.msra.mxu0 %v3878
      %4217 = vmatprep.subr.bf16.mxu0 %v3883
      %4218 = vmatpush1.bf16.msra.mxu0 %v3882
      %4219 = vmatprep.subr.bf16.mxu0 %v3887
      %4220 = vmatpush1.bf16.msra.mxu0 %v3886
      %4221 = vmatprep.subr.bf16.mxu0 %v3891
      %4222 = vmatpush1.bf16.msra.mxu0 %v3890
      %4223 = vmatprep.mubr.bf16.mxu0 %v2973
      %4224 = vmatmul.mubr.bf16.gmra.mrb[0].mxu0 %v2972
      %v4225 = vpop.f32.mrb[0].mxu0
      %v4226 = vadd.f32 %v4185, %v4225
      %v4227 = vpop.f32.mrb[0].mxu0
      %v4228 = vadd.f32 %v4187, %v4227
      %v4229 = vpop.f32.mrb[0].mxu0
      %v4230 = vpop.f32.mrb[0].mxu0
      %4231 = vdwg.mxu0
      %4232 = vmatprep.subr.bf16.mxu0 %v3895
      %4233 = vmatpush1.bf16.msra.mxu0 %v3894
      %4234 = vmatprep.subr.bf16.mxu0 %v3899
      %4235 = vmatpush1.bf16.msra.mxu0 %v3898
      %4236 = vmatprep.subr.bf16.mxu0 %v3903
      %4237 = vmatpush1.bf16.msra.mxu0 %v3902
      %4238 = vmatprep.subr.bf16.mxu0 %v3907
      %4239 = vmatpush1.bf16.msra.mxu0 %v3906
      %4240 = vmatprep.subr.bf16.mxu0 %v3911
      %4241 = vmatpush1.bf16.msra.mxu0 %v3910
      %4242 = vmatprep.subr.bf16.mxu0 %v3915
      %4243 = vmatpush1.bf16.msra.mxu0 %v3914
      %4244 = vmatprep.subr.bf16.mxu0 %v3919
      %4245 = vmatpush1.bf16.msra.mxu0 %v3918
      %4246 = vmatprep.subr.bf16.mxu0 %v3923
      %4247 = vmatpush1.bf16.msra.mxu0 %v3922
      %4248 = vmatprep.subr.bf16.mxu0 %v3927
      %4249 = vmatpush1.bf16.msra.mxu0 %v3926
      %4250 = vmatprep.subr.bf16.mxu0 %v3931
      %4251 = vmatpush1.bf16.msra.mxu0 %v3930
      %4252 = vmatprep.subr.bf16.mxu0 %v3935
      %4253 = vmatpush1.bf16.msra.mxu0 %v3934
      %4254 = vmatprep.subr.bf16.mxu0 %v3939
      %4255 = vmatpush1.bf16.msra.mxu0 %v3938
      %4256 = vmatprep.subr.bf16.mxu0 %v3943
      %4257 = vmatpush1.bf16.msra.mxu0 %v3942
      %4258 = vmatprep.subr.bf16.mxu0 %v3947
      %4259 = vmatpush1.bf16.msra.mxu0 %v3946
      %4260 = vmatprep.subr.bf16.mxu0 %v3951
      %4261 = vmatpush1.bf16.msra.mxu0 %v3950
      %4262 = vmatprep.subr.bf16.mxu0 %v3955
      %4263 = vmatpush1.bf16.msra.mxu0 %v3954
      %4264 = vmatprep.mubr.bf16.mxu0 %v2975
      %4265 = vmatmul.mubr.bf16.gmra.mrb[0].mxu0 %v2974
      %v4266 = vpop.f32.mrb[0].mxu0
      %v4267 = vadd.f32 %v4226, %v4266
      %v4268 = vpop.f32.mrb[0].mxu0
      %v4269 = vadd.f32 %v4228, %v4268
      %v4270 = vpop.f32.mrb[0].mxu0
      %v4271 = vpop.f32.mrb[0].mxu0
      %4272 = vdwg.mxu0
      %4273 = vmatprep.subr.bf16.mxu0 %v3769
      %4274 = vmatpush1.bf16.msra.mxu0 %v3768
      %4275 = vmatprep.subr.bf16.mxu0 %v3773
      %4276 = vmatpush1.bf16.msra.mxu0 %v3772
      %4277 = vmatprep.subr.bf16.mxu0 %v3777
      %4278 = vmatpush1.bf16.msra.mxu0 %v3776
      %4279 = vmatprep.subr.bf16.mxu0 %v3781
      %4280 = vmatpush1.bf16.msra.mxu0 %v3780
      %4281 = vmatprep.subr.bf16.mxu0 %v3785
      %4282 = vmatpush1.bf16.msra.mxu0 %v3784
      %4283 = vmatprep.subr.bf16.mxu0 %v3789
      %4284 = vmatpush1.bf16.msra.mxu0 %v3788
      %4285 = vmatprep.subr.bf16.mxu0 %v3793
      %4286 = vmatpush1.bf16.msra.mxu0 %v3792
      %4287 = vmatprep.subr.bf16.mxu0 %v3797
      %4288 = vmatpush1.bf16.msra.mxu0 %v3796
      %4289 = vmatprep.subr.bf16.mxu0 %v3801
      %4290 = vmatpush1.bf16.msra.mxu0 %v3800
      %4291 = vmatprep.subr.bf16.mxu0 %v3805
      %4292 = vmatpush1.bf16.msra.mxu0 %v3804
      %4293 = vmatprep.subr.bf16.mxu0 %v3809
      %4294 = vmatpush1.bf16.msra.mxu0 %v3808
      %4295 = vmatprep.subr.bf16.mxu0 %v3813
      %4296 = vmatpush1.bf16.msra.mxu0 %v3812
      %4297 = vmatprep.subr.bf16.mxu0 %v3817
      %4298 = vmatpush1.bf16.msra.mxu0 %v3816
      %4299 = vmatprep.subr.bf16.mxu0 %v3821
      %4300 = vmatpush1.bf16.msra.mxu0 %v3820
      %4301 = vmatprep.subr.bf16.mxu0 %v3825
      %4302 = vmatpush1.bf16.msra.mxu0 %v3824
      %4303 = vmatprep.subr.bf16.mxu0 %v3829
      %4304 = vmatpush1.bf16.msra.mxu0 %v3828
      %4305 = vmatprep.mubr.bf16.mxu0 %v2971
      %4306 = vmatmul.mubr.bf16.gmra.mrb[0].mxu0 %v2970
      %v4307 = vpop.f32.mrb[0].mxu0
      %v4308 = vadd.f32 %v3181, %v4307
      %v4309 = vpop.f32.mrb[0].mxu0
      %v4310 = vadd.f32 %v3185, %v4309
      %v4311 = vpop.f32.mrb[0].mxu0
      %v4312 = vpop.f32.mrb[0].mxu0
      %4313 = vdwg.mxu0
      %4314 = vmatprep.subr.bf16.mxu0 %v3833
      %4315 = vmatpush1.bf16.msra.mxu0 %v3832
      %4316 = vmatprep.subr.bf16.mxu0 %v3837
      %4317 = vmatpush1.bf16.msra.mxu0 %v3836
      %4318 = vmatprep.subr.bf16.mxu0 %v3841
      %4319 = vmatpush1.bf16.msra.mxu0 %v3840
      %4320 = vmatprep.subr.bf16.mxu0 %v3845
      %4321 = vmatpush1.bf16.msra.mxu0 %v3844
      %4322 = vmatprep.subr.bf16.mxu0 %v3849
      %4323 = vmatpush1.bf16.msra.mxu0 %v3848
      %4324 = vmatprep.subr.bf16.mxu0 %v3853
      %4325 = vmatpush1.bf16.msra.mxu0 %v3852
      %4326 = vmatprep.subr.bf16.mxu0 %v3857
      %4327 = vmatpush1.bf16.msra.mxu0 %v3856
      %4328 = vmatprep.subr.bf16.mxu0 %v3861
      %4329 = vmatpush1.bf16.msra.mxu0 %v3860
      %4330 = vmatprep.subr.bf16.mxu0 %v3865
      %4331 = vmatpush1.bf16.msra.mxu0 %v3864
      %4332 = vmatprep.subr.bf16.mxu0 %v3869
      %4333 = vmatpush1.bf16.msra.mxu0 %v3868
      %4334 = vmatprep.subr.bf16.mxu0 %v3873
      %4335 = vmatpush1.bf16.msra.mxu0 %v3872
      %4336 = vmatprep.subr.bf16.mxu0 %v3877
      %4337 = vmatpush1.bf16.msra.mxu0 %v3876
      %4338 = vmatprep.subr.bf16.mxu0 %v3881
      %4339 = vmatpush1.bf16.msra.mxu0 %v3880
      %4340 = vmatprep.subr.bf16.mxu0 %v3885
      %4341 = vmatpush1.bf16.msra.mxu0 %v3884
      %4342 = vmatprep.subr.bf16.mxu0 %v3889
      %4343 = vmatpush1.bf16.msra.mxu0 %v3888
      %4344 = vmatprep.subr.bf16.mxu0 %v3893
      %4345 = vmatpush1.bf16.msra.mxu0 %v3892
      %4346 = vmatprep.mubr.bf16.mxu0 %v2973
      %4347 = vmatmul.mubr.bf16.gmra.mrb[0].mxu0 %v2972
      %v4348 = vpop.f32.mrb[0].mxu0
      %v4349 = vadd.f32 %v4308, %v4348
      %v4350 = vpop.f32.mrb[0].mxu0
      %v4351 = vadd.f32 %v4310, %v4350
      %v4352 = vpop.f32.mrb[0].mxu0
      %v4353 = vpop.f32.mrb[0].mxu0
      %4354 = vdwg.mxu0
      %4355 = vmatprep.subr.bf16.mxu0 %v3897
      %4356 = vmatpush1.bf16.msra.mxu0 %v3896
      %4357 = vmatprep.subr.bf16.mxu0 %v3901
      %4358 = vmatpush1.bf16.msra.mxu0 %v3900
      %4359 = vmatprep.subr.bf16.mxu0 %v3905
      %4360 = vmatpush1.bf16.msra.mxu0 %v3904
      %4361 = vmatprep.subr.bf16.mxu0 %v3909
      %4362 = vmatpush1.bf16.msra.mxu0 %v3908
      %4363 = vmatprep.subr.bf16.mxu0 %v3913
      %4364 = vmatpush1.bf16.msra.mxu0 %v3912
      %4365 = vmatprep.subr.bf16.mxu0 %v3917
      %4366 = vmatpush1.bf16.msra.mxu0 %v3916
      %4367 = vmatprep.subr.bf16.mxu0 %v3921
      %4368 = vmatpush1.bf16.msra.mxu0 %v3920
      %4369 = vmatprep.subr.bf16.mxu0 %v3925
      %4370 = vmatpush1.bf16.msra.mxu0 %v3924
      %4371 = vmatprep.subr.bf16.mxu0 %v3929
      %4372 = vmatpush1.bf16.msra.mxu0 %v3928
      %4373 = vmatprep.subr.bf16.mxu0 %v3933
      %4374 = vmatpush1.bf16.msra.mxu0 %v3932
      %4375 = vmatprep.subr.bf16.mxu0 %v3937
      %4376 = vmatpush1.bf16.msra.mxu0 %v3936
      %4377 = vmatprep.subr.bf16.mxu0 %v3941
      %4378 = vmatpush1.bf16.msra.mxu0 %v3940
      %4379 = vmatprep.subr.bf16.mxu0 %v3945
      %4380 = vmatpush1.bf16.msra.mxu0 %v3944
      %4381 = vmatprep.subr.bf16.mxu0 %v3949
      %4382 = vmatpush1.bf16.msra.mxu0 %v3948
      %4383 = vmatprep.subr.bf16.mxu0 %v3953
      %4384 = vmatpush1.bf16.msra.mxu0 %v3952
      %4385 = vmatprep.subr.bf16.mxu0 %v3957
      %4386 = vmatpush1.bf16.msra.mxu0 %v3956
      %4387 = vmatprep.mubr.bf16.mxu0 %v2975
      %4388 = vmatmul.mubr.bf16.gmra.mrb[0].mxu0 %v2974
      %v4389 = vpop.f32.mrb[0].mxu0
      %v4390 = vadd.f32 %v4349, %v4389
      %v4391 = vpop.f32.mrb[0].mxu0
      %v4392 = vadd.f32 %v4351, %v4391
      %v4393 = vpop.f32.mrb[0].mxu0
      %v4394 = vpop.f32.mrb[0].mxu0
      %4395 = vdwg.mxu0
      %v4396 = vmax.f32 %v4267, 0.0
      %v4397 = vmax.f32 %v4269, 0.0
      %v4398 = vmax.f32 %v4390, 0.0
      %v4399 = vmax.f32 %v4392, 0.0
      %v4400 = vpack.c.bf16 %v4396, %v4396
      %v4401 = vpack.c.bf16 %v4397, %v4397
      %v4402 = vpack.c.bf16 %v4398, %v4398
      %v4403 = vpack.c.bf16 %v4399, %v4399
      %v4404 = vld [vmem:[#allocation12] sm:$0xf]
      %v4405 = vld [vmem:[#allocation12 + $0x4] sm:$0xf]
      %v4406 = vld [vmem:[#allocation12 + $0x8] sm:$0xf]
      %v4407 = vld [vmem:[#allocation12 + $0xc] sm:$0xf]
      %v4408 = vld [vmem:[#allocation12 + $0x10] sm:$0xf]
      %v4409 = vld [vmem:[#allocation12 + $0x14] sm:$0xf]
      %v4410 = vld [vmem:[#allocation12 + $0x18] sm:$0xf]
      %v4411 = vld [vmem:[#allocation12 + $0x1c] sm:$0xf]
      %v4412 = vld [vmem:[#allocation12 + $0x20] sm:$0xf]
      %v4413 = vld [vmem:[#allocation12 + $0x24] sm:$0xf]
      %v4414 = vld [vmem:[#allocation12 + $0x28] sm:$0xf]
      %v4415 = vld [vmem:[#allocation12 + $0x2c] sm:$0xf]
      %v4416 = vld [vmem:[#allocation12 + $0x30] sm:$0xf]
      %v4417 = vld [vmem:[#allocation12 + $0x34] sm:$0xf]
      %v4418 = vld [vmem:[#allocation12 + $0x38] sm:$0xf]
      %v4419 = vld [vmem:[#allocation12 + $0x3c] sm:$0xf]
      %v4420 = vld [vmem:[#allocation12 + $0x40] sm:$0xf]
      %v4421 = vld [vmem:[#allocation12 + $0x44] sm:$0xf]
      %v4422 = vld [vmem:[#allocation12 + $0x48] sm:$0xf]
      %v4423 = vld [vmem:[#allocation12 + $0x4c] sm:$0xf]
      %v4424 = vld [vmem:[#allocation12 + $0x50] sm:$0xf]
      %v4425 = vld [vmem:[#allocation12 + $0x54] sm:$0xf]
      %v4426 = vld [vmem:[#allocation12 + $0x58] sm:$0xf]
      %v4427 = vld [vmem:[#allocation12 + $0x5c] sm:$0xf]
      %v4428 = vld [vmem:[#allocation12 + $0x60] sm:$0xf]
      %v4429 = vld [vmem:[#allocation12 + $0x64] sm:$0xf]
      %v4430 = vld [vmem:[#allocation12 + $0x68] sm:$0xf]
      %v4431 = vld [vmem:[#allocation12 + $0x6c] sm:$0xf]
      %v4432 = vld [vmem:[#allocation12 + $0x70] sm:$0xf]
      %v4433 = vld [vmem:[#allocation12 + $0x74] sm:$0xf]
      %v4434 = vld [vmem:[#allocation12 + $0x78] sm:$0xf]
      %v4435 = vld [vmem:[#allocation12 + $0x7c] sm:$0xf]
      %v4436 = vld [vmem:[#allocation12 + $0x80] sm:$0xf]
      %v4437 = vld [vmem:[#allocation12 + $0x84] sm:$0xf]
      %v4438 = vld [vmem:[#allocation12 + $0x88] sm:$0xf]
      %v4439 = vld [vmem:[#allocation12 + $0x8c] sm:$0xf]
      %v4440 = vld [vmem:[#allocation12 + $0x90] sm:$0xf]
      %v4441 = vld [vmem:[#allocation12 + $0x94] sm:$0xf]
      %v4442 = vld [vmem:[#allocation12 + $0x98] sm:$0xf]
      %v4443 = vld [vmem:[#allocation12 + $0x9c] sm:$0xf]
      %v4444 = vld [vmem:[#allocation12 + $0xa0] sm:$0xf]
      %v4445 = vld [vmem:[#allocation12 + $0xa4] sm:$0xf]
      %v4446 = vld [vmem:[#allocation12 + $0xa8] sm:$0xf]
      %v4447 = vld [vmem:[#allocation12 + $0xac] sm:$0xf]
      %v4448 = vld [vmem:[#allocation12 + $0xb0] sm:$0xf]
      %v4449 = vld [vmem:[#allocation12 + $0xb4] sm:$0xf]
      %v4450 = vld [vmem:[#allocation12 + $0xb8] sm:$0xf]
      %v4451 = vld [vmem:[#allocation12 + $0xbc] sm:$0xf]
      %v4452 = vld [vmem:[#allocation12 + $0xc0] sm:$0xf]
      %v4453 = vld [vmem:[#allocation12 + $0xc4] sm:$0xf]
      %v4454 = vld [vmem:[#allocation12 + $0xc8] sm:$0xf]
      %v4455 = vld [vmem:[#allocation12 + $0xcc] sm:$0xf]
      %v4456 = vld [vmem:[#allocation12 + $0xd0] sm:$0xf]
      %v4457 = vld [vmem:[#allocation12 + $0xd4] sm:$0xf]
      %v4458 = vld [vmem:[#allocation12 + $0xd8] sm:$0xf]
      %v4459 = vld [vmem:[#allocation12 + $0xdc] sm:$0xf]
      %v4460 = vld [vmem:[#allocation12 + $0xe0] sm:$0xf]
      %v4461 = vld [vmem:[#allocation12 + $0xe4] sm:$0xf]
      %v4462 = vld [vmem:[#allocation12 + $0xe8] sm:$0xf]
      %v4463 = vld [vmem:[#allocation12 + $0xec] sm:$0xf]
      %v4464 = vld [vmem:[#allocation12 + $0xf0] sm:$0xf]
      %v4465 = vld [vmem:[#allocation12 + $0xf4] sm:$0xf]
      %v4466 = vld [vmem:[#allocation12 + $0xf8] sm:$0xf]
      %v4467 = vld [vmem:[#allocation12 + $0xfc] sm:$0xf]
      %v4468 = vld [vmem:[#allocation14] sm:$0x1]
      %v4470 = vlaneseq
      %v4471 = vshrl.u32 %v4470, 7
      %v4472 = vsub.s32 0, %v4471
      %v4473 = vrot.slane %v4468, %v4472
      %v4539 = vunpack.c.l.b16 %v4404
      %v4540 = vunpack.c.l.b16 %v4405
      %v4541 = vunpack.c.l.b16 %v4406
      %v4542 = vunpack.c.l.b16 %v4407
      %v4543 = vunpack.c.l.b16 %v4408
      %v4544 = vunpack.c.l.b16 %v4409
      %v4545 = vunpack.c.l.b16 %v4410
      %v4546 = vunpack.c.l.b16 %v4411
      %v4547 = vunpack.c.l.b16 %v4412
      %v4548 = vunpack.c.l.b16 %v4413
      %v4549 = vunpack.c.l.b16 %v4414
      %v4550 = vunpack.c.l.b16 %v4415
      %v4551 = vunpack.c.l.b16 %v4416
      %v4552 = vunpack.c.l.b16 %v4417
      %v4553 = vunpack.c.l.b16 %v4418
      %v4554 = vunpack.c.l.b16 %v4419
      %v4555 = vunpack.c.l.b16 %v4420
      %v4556 = vunpack.c.l.b16 %v4421
      %v4557 = vunpack.c.l.b16 %v4422
      %v4558 = vunpack.c.l.b16 %v4423
      %v4559 = vunpack.c.l.b16 %v4424
      %v4560 = vunpack.c.l.b16 %v4425
      %v4561 = vunpack.c.l.b16 %v4426
      %v4562 = vunpack.c.l.b16 %v4427
      %v4563 = vunpack.c.l.b16 %v4428
      %v4564 = vunpack.c.l.b16 %v4429
      %v4565 = vunpack.c.l.b16 %v4430
      %v4566 = vunpack.c.l.b16 %v4431
      %v4567 = vunpack.c.l.b16 %v4432
      %v4568 = vunpack.c.l.b16 %v4433
      %v4569 = vunpack.c.l.b16 %v4434
      %v4570 = vunpack.c.l.b16 %v4435
      %v4571 = vunpack.c.l.b16 %v4436
      %v4572 = vunpack.c.l.b16 %v4437
      %v4573 = vunpack.c.l.b16 %v4438
      %v4574 = vunpack.c.l.b16 %v4439
      %v4575 = vunpack.c.l.b16 %v4440
      %v4576 = vunpack.c.l.b16 %v4441
      %v4577 = vunpack.c.l.b16 %v4442
      %v4578 = vunpack.c.l.b16 %v4443
      %v4579 = vunpack.c.l.b16 %v4444
      %v4580 = vunpack.c.l.b16 %v4445
      %v4581 = vunpack.c.l.b16 %v4446
      %v4582 = vunpack.c.l.b16 %v4447
      %v4583 = vunpack.c.l.b16 %v4448
      %v4584 = vunpack.c.l.b16 %v4449
      %v4585 = vunpack.c.l.b16 %v4450
      %v4586 = vunpack.c.l.b16 %v4451
      %v4587 = vunpack.c.l.b16 %v4452
      %v4588 = vunpack.c.l.b16 %v4453
      %v4589 = vunpack.c.l.b16 %v4454
      %v4590 = vunpack.c.l.b16 %v4455
      %v4591 = vunpack.c.l.b16 %v4456
      %v4592 = vunpack.c.l.b16 %v4457
      %v4593 = vunpack.c.l.b16 %v4458
      %v4594 = vunpack.c.l.b16 %v4459
      %v4595 = vunpack.c.l.b16 %v4460
      %v4596 = vunpack.c.l.b16 %v4461
      %v4597 = vunpack.c.l.b16 %v4462
      %v4598 = vunpack.c.l.b16 %v4463
      %v4599 = vunpack.c.l.b16 %v4464
      %v4600 = vunpack.c.l.b16 %v4465
      %v4601 = vunpack.c.l.b16 %v4466
      %v4602 = vunpack.c.l.b16 %v4467
      %v4603 = vpack.c.b16 %v4540, %v4539
      %v4604 = vpack.c.b16 %v4542, %v4541
      %v4605 = vpack.c.b16 %v4544, %v4543
      %v4606 = vpack.c.b16 %v4546, %v4545
      %v4607 = vpack.c.b16 %v4548, %v4547
      %v4608 = vpack.c.b16 %v4550, %v4549
      %v4609 = vpack.c.b16 %v4552, %v4551
      %v4610 = vpack.c.b16 %v4554, %v4553
      %v4611 = vpack.c.b16 %v4556, %v4555
      %v4612 = vpack.c.b16 %v4558, %v4557
      %v4613 = vpack.c.b16 %v4560, %v4559
      %v4614 = vpack.c.b16 %v4562, %v4561
      %v4615 = vpack.c.b16 %v4564, %v4563
      %v4616 = vpack.c.b16 %v4566, %v4565
      %v4617 = vpack.c.b16 %v4568, %v4567
      %v4618 = vpack.c.b16 %v4570, %v4569
      %v4619 = vpack.c.b16 %v4572, %v4571
      %v4620 = vpack.c.b16 %v4574, %v4573
      %v4621 = vpack.c.b16 %v4576, %v4575
      %v4622 = vpack.c.b16 %v4578, %v4577
      %v4623 = vpack.c.b16 %v4580, %v4579
      %v4624 = vpack.c.b16 %v4582, %v4581
      %v4625 = vpack.c.b16 %v4584, %v4583
      %v4626 = vpack.c.b16 %v4586, %v4585
      %v4627 = vpack.c.b16 %v4588, %v4587
      %v4628 = vpack.c.b16 %v4590, %v4589
      %v4629 = vpack.c.b16 %v4592, %v4591
      %v4630 = vpack.c.b16 %v4594, %v4593
      %v4631 = vpack.c.b16 %v4596, %v4595
      %v4632 = vpack.c.b16 %v4598, %v4597
      %v4633 = vpack.c.b16 %v4600, %v4599
      %v4634 = vpack.c.b16 %v4602, %v4601
      %4667 = vmatprep.subr.bf16.mxu0 0
      %4668 = vmatpush1.bf16.msra.mxu0 %v4603
      %4669 = vmatprep.subr.bf16.mxu0 0
      %4670 = vmatpush1.bf16.msra.mxu0 %v4604
      %4671 = vmatprep.subr.bf16.mxu0 0
      %4672 = vmatpush1.bf16.msra.mxu0 %v4605
      %4673 = vmatprep.subr.bf16.mxu0 0
      %4674 = vmatpush1.bf16.msra.mxu0 %v4606
      %4675 = vmatprep.subr.bf16.mxu0 0
      %4676 = vmatpush1.bf16.msra.mxu0 %v4607
      %4677 = vmatprep.subr.bf16.mxu0 0
      %4678 = vmatpush1.bf16.msra.mxu0 %v4608
      %4679 = vmatprep.subr.bf16.mxu0 0
      %4680 = vmatpush1.bf16.msra.mxu0 %v4609
      %4681 = vmatprep.subr.bf16.mxu0 0
      %4682 = vmatpush1.bf16.msra.mxu0 %v4610
      %4683 = vmatprep.subr.bf16.mxu0 0
      %4684 = vmatpush1.bf16.msra.mxu0 %v4611
      %4685 = vmatprep.subr.bf16.mxu0 0
      %4686 = vmatpush1.bf16.msra.mxu0 %v4612
      %4687 = vmatprep.subr.bf16.mxu0 0
      %4688 = vmatpush1.bf16.msra.mxu0 %v4613
      %4689 = vmatprep.subr.bf16.mxu0 0
      %4690 = vmatpush1.bf16.msra.mxu0 %v4614
      %4691 = vmatprep.subr.bf16.mxu0 0
      %4692 = vmatpush1.bf16.msra.mxu0 %v4615
      %4693 = vmatprep.subr.bf16.mxu0 0
      %4694 = vmatpush1.bf16.msra.mxu0 %v4616
      %4695 = vmatprep.subr.bf16.mxu0 0
      %4696 = vmatpush1.bf16.msra.mxu0 %v4617
      %4697 = vmatprep.subr.bf16.mxu0 0
      %4698 = vmatpush1.bf16.msra.mxu0 %v4618
      %4699 = vmatprep.mubr.bf16.mxu0 %v4401
      %4700 = vmatmul.mubr.bf16.gmra.mrb[0].mxu0 %v4400
      %v4701 = vpop.f32.mrb[0].mxu0
      %v4702 = vadd.f32 %v4473, %v4701
      %v4703 = vpop.f32.mrb[0].mxu0
      %v4704 = vpop.f32.mrb[0].mxu0
      %v4705 = vpop.f32.mrb[0].mxu0
      %4706 = vdwg.mxu0
      %4707 = vmatprep.subr.bf16.mxu0 0
      %4708 = vmatpush1.bf16.msra.mxu0 %v4619
      %4709 = vmatprep.subr.bf16.mxu0 0
      %4710 = vmatpush1.bf16.msra.mxu0 %v4620
      %4711 = vmatprep.subr.bf16.mxu0 0
      %4712 = vmatpush1.bf16.msra.mxu0 %v4621
      %4713 = vmatprep.subr.bf16.mxu0 0
      %4714 = vmatpush1.bf16.msra.mxu0 %v4622
      %4715 = vmatprep.subr.bf16.mxu0 0
      %4716 = vmatpush1.bf16.msra.mxu0 %v4623
      %4717 = vmatprep.subr.bf16.mxu0 0
      %4718 = vmatpush1.bf16.msra.mxu0 %v4624
      %4719 = vmatprep.subr.bf16.mxu0 0
      %4720 = vmatpush1.bf16.msra.mxu0 %v4625
      %4721 = vmatprep.subr.bf16.mxu0 0
      %4722 = vmatpush1.bf16.msra.mxu0 %v4626
      %4723 = vmatprep.subr.bf16.mxu0 0
      %4724 = vmatpush1.bf16.msra.mxu0 %v4627
      %4725 = vmatprep.subr.bf16.mxu0 0
      %4726 = vmatpush1.bf16.msra.mxu0 %v4628
      %4727 = vmatprep.subr.bf16.mxu0 0
      %4728 = vmatpush1.bf16.msra.mxu0 %v4629
      %4729 = vmatprep.subr.bf16.mxu0 0
      %4730 = vmatpush1.bf16.msra.mxu0 %v4630
      %4731 = vmatprep.subr.bf16.mxu0 0
      %4732 = vmatpush1.bf16.msra.mxu0 %v4631
      %4733 = vmatprep.subr.bf16.mxu0 0
      %4734 = vmatpush1.bf16.msra.mxu0 %v4632
      %4735 = vmatprep.subr.bf16.mxu0 0
      %4736 = vmatpush1.bf16.msra.mxu0 %v4633
      %4737 = vmatprep.subr.bf16.mxu0 0
      %4738 = vmatpush1.bf16.msra.mxu0 %v4634
      %4739 = vmatprep.mubr.bf16.mxu0 %v4403
      %4740 = vmatmul.mubr.bf16.gmra.mrb[0].mxu0 %v4402
      %v4741 = vpop.f32.mrb[0].mxu0
      %v4742 = vadd.f32 %v4702, %v4741
      %v4743 = vpop.f32.mrb[0].mxu0
      %v4744 = vpop.f32.mrb[0].mxu0
      %v4745 = vpop.f32.mrb[0].mxu0
      %4746 = vdwg.mxu0
      %vm4747 = vcmp.lt.s32.totalorder %v132, 2
      %v4748 = vsel %vm4747, %v4742, -1e+30
      %4749 = vmax.xlane.f32.xlu0 %v4748
      %v4750 = vpop.xlane.xlu0 %4749
      %v4751 = vsub.f32 %v4748, %v4750
      %v4752 = vmul.f32 %v4751, 1.442695
      %v4753 = vpow.pop %v4752
      %4754 = vadd.xlane.f32.xlu0 %v4753
      %v4755 = vpop.xlane.xlu0 %4754
      %v4756 = vlog2.pop %v4755
      %v4757 = vmul.f32 %v4756, 0.6931472
      %v4758 = vsub.f32 %v4751, %v4757
      %4759 = vst [vmem:[%s9] sm:$0xff] %v4758
    $region73: #{_bert_arch_forward_impl.1} parent=1 // pred_fallthru
      _
    // Predicated region
    $region74: #{_bert_arch_forward_impl.1} parent=1 // pred_check
      _
    $region75: #{_bert_arch_forward_impl.1} parent=1 // pred_check_branch
      %4761 = sbr.rel (0) target = $region77
    $region76: #{_bert_arch_forward_impl.1} parent=1 // pred_region
      _
    $region77: #{_bert_arch_forward_impl.1} parent=1 // pred_fallthru
      _
    // Predicated region
    $region78: #{_bert_arch_forward_impl.1} parent=1 // pred_check
      _
    $region79: #{_bert_arch_forward_impl.1} parent=1 // pred_check_branch
      %4763 = sbr.rel (0) target = $region81
    $region80: #{_bert_arch_forward_impl.1} parent=1 // pred_region
      _
    $region81: #{_bert_arch_forward_impl.1} parent=1 // pred_fallthru
      _
    %4764 = vsyncpa [#allocation5], 1
    %4765 = vsyncpa [#allocation7], 1
    %4766 = vsyncpa [#allocation10], 1
    %4767 = vsyncpa [#allocation13], 1

</llo_original>
